<compile_context>
chip_gen: v5e
topology: v5e:2x2
jax: 0.10.0
libtpu: 0.0.40
codegen_flags: <defaults>
</compile_context>

<pallas_src>
import functools

import numpy as np
import jax
import jax.numpy as jnp
from jax.experimental import pallas as pl
from jax.experimental.pallas import tpu as pltpu

T_TILE = 16      # frames per grid block (keeps bf16 sublane tiles aligned)
C_GFE1 = 64
C_GFE2 = 128

INDICES_25_TO_11 = [[0], [1, 20], [2, 3], [4, 5, 6], [7, 21, 22], [8, 9, 10],
                    [11, 23, 24], [12, 13], [14, 15], [16, 17], [18, 19]]
INDICES_11_TO_6 = [[0, 1], [2], [3, 4], [5, 6], [7, 8], [9, 10]]


# ----------------------------------------------------------------------------
# graph / pooling constants (numpy -> baked in at trace time)
# ----------------------------------------------------------------------------
def make_adjacency(v):
    # TODO(synk): external Graph class not provided; self-loop + ring stand-in.
    eye = np.eye(v, dtype=np.float32)
    a = eye + np.roll(eye, 1, axis=1) + np.roll(eye, -1, axis=1)
    return a / a.sum(axis=0, keepdims=True)


def make_pool_matrix(groups, v_in):
    p = np.zeros((v_in, len(groups)), dtype=np.float32)
    for i, idx in enumerate(groups):
        for j in idx:
            p[j, i] = 1.0 / len(idx)
    return p


def frame_block_diag(mat, t):
    """kron(I_t, mat.T):  out[(s, vo), c] = sum_v mat[v, vo] * in[(s, v), c]
    for a row-block stacking `t` frame slices of (V, C) data."""
    return np.kron(np.eye(t, dtype=np.float32), mat.T.astype(np.float32))


# ----------------------------------------------------------------------------
# Kernel 1: fused gfe_one (1x1 conv + adjacency + ReLU) + joint-group pooling
# ----------------------------------------------------------------------------
def _gfe1_pool_kernel(x_ref, w1_ref, a25_ref, p1_ref, p2_ref,
                      fm25_ref, fm11_ref, fm6_ref):
    x = x_ref[0]                                                  # (t*25, Cin) bf16
    # 1x1 channel conv (Cin -> 64), f32 accumulate
    h = jnp.dot(x, w1_ref[...], preferred_element_type=jnp.float32)
    # per-frame adjacency mix over joints (block-diagonal kron(I_t, A^T)) + ReLU
    z25 = jnp.dot(a25_ref[...], h.astype(jnp.bfloat16),
                  preferred_element_type=jnp.float32)
    z25 = jnp.maximum(z25, 0.0).astype(jnp.bfloat16)
    fm25_ref[0] = z25
    # joint-group mean pooling 25 -> 11 -> 6 (lane-dense over channels)
    z11 = jnp.dot(p1_ref[...], z25,
                  preferred_element_type=jnp.float32).astype(jnp.bfloat16)
    fm11_ref[0] = z11
    z6 = jnp.dot(p2_ref[...], z11,
                 preferred_element_type=jnp.float32).astype(jnp.bfloat16)
    fm6_ref[0] = z6


def gfe1_with_pool(x_cl, w1, a25_blk, p1_blk, p2_blk):
    """x_cl: (NM, T_pad*25, Cin_pad) bf16 -> fm25/fm11/fm6 channels-last bf16."""
    NM, r25_total, cin = x_cl.shape
    r25 = T_TILE * 25
    r11 = T_TILE * 11
    r6 = T_TILE * 6
    ntt = r25_total // r25
    out_shape = (
        jax.ShapeDtypeStruct((NM, ntt * r25, C_GFE1), jnp.bfloat16),
        jax.ShapeDtypeStruct((NM, ntt * r11, C_GFE1), jnp.bfloat16),
        jax.ShapeDtypeStruct((NM, ntt * r6, C_GFE1), jnp.bfloat16),
    )
    return pl.pallas_call(
        _gfe1_pool_kernel,
        out_shape=out_shape,
        grid=(NM, ntt),
        in_specs=[
            pl.BlockSpec((1, r25, cin), lambda n, t: (n, t, 0)),
            pl.BlockSpec((cin, C_GFE1), lambda n, t: (0, 0)),
            pl.BlockSpec((r25, r25), lambda n, t: (0, 0)),
            pl.BlockSpec((r11, r25), lambda n, t: (0, 0)),
            pl.BlockSpec((r6, r11), lambda n, t: (0, 0)),
        ],
        out_specs=(
            pl.BlockSpec((1, r25, C_GFE1), lambda n, t: (n, t, 0)),
            pl.BlockSpec((1, r11, C_GFE1), lambda n, t: (n, t, 0)),
            pl.BlockSpec((1, r6, C_GFE1), lambda n, t: (n, t, 0)),
        ),
        compiler_params=pltpu.CompilerParams(
            dimension_semantics=("parallel", "parallel")),
    )(x_cl, w1, a25_blk, p1_blk, p2_blk)


# ----------------------------------------------------------------------------
# Kernel 2: fused gfe_two (1x1 conv + adjacency + ReLU) + global average pool
# ----------------------------------------------------------------------------
def _make_gfe2_gap_kernel(inv_tv):
    def kernel(fm_ref, a_ref, w2_ref, gap_ref):
        tt = pl.program_id(1)
        x = fm_ref[0]                                             # (t*V, 64) bf16
        g = jnp.dot(a_ref[...], x, preferred_element_type=jnp.float32)
        z = jnp.dot(g.astype(jnp.bfloat16), w2_ref[...],
                    preferred_element_type=jnp.float32)           # (t*V, 128)
        z = jnp.maximum(z, 0.0)
        part = jnp.sum(z, axis=0)[None, None, :]                  # (1, 1, 128)

        @pl.when(tt == 0)
        def _init():
            gap_ref[...] = jnp.zeros_like(gap_ref)

        gap_ref[...] += part

        @pl.when(tt == pl.num_programs(1) - 1)
        def _finalize():
            gap_ref[...] = gap_ref[...] * inv_tv

    return kernel


def gfe2_gap(fm, a_blk, w2, v, true_tv):
    """fm: (NM, T_pad*v, 64) bf16 -> avg-pooled gfe_two features (NM, 128) f32."""
    NM, r_total, c = fm.shape
    rows = T_TILE * v
    ntt = r_total // rows
    gap = pl.pallas_call(
        _make_gfe2_gap_kernel(1.0 / float(true_tv)),
        out_shape=jax.ShapeDtypeStruct((NM, 1, C_GFE2), jnp.float32),
        grid=(NM, ntt),
        in_specs=[
            pl.BlockSpec((1, rows, c), lambda n, t: (n, t, 0)),
            pl.BlockSpec((rows, rows), lambda n, t: (0, 0)),
            pl.BlockSpec((c, C_GFE2), lambda n, t: (0, 0)),
        ],
        out_specs=pl.BlockSpec((1, 1, C_GFE2), lambda n, t: (n, 0, 0)),
        compiler_params=pltpu.CompilerParams(
            dimension_semantics=("parallel", "arbitrary")),
    )(fm, a_blk, w2)
    return gap.reshape(NM, C_GFE2)


# ----------------------------------------------------------------------------
# parameters & forward
# ----------------------------------------------------------------------------
def init_params(key, input_channels, num_classes):
    ks = jax.random.split(key, 6)
    scale = 0.1
    return {
        "w_gfe1": scale * jax.random.normal(ks[0], (C_GFE1, input_channels), jnp.float32),
        "w_gfe2": scale * jax.random.normal(ks[1], (C_GFE2, C_GFE1), jnp.float32),
        "w_fc_other": scale * jax.random.normal(ks[2], (num_classes, C_GFE2), jnp.float32),
        "b_fc_other": scale * jax.random.normal(ks[3], (num_classes,), jnp.float32),
        "w_fc": scale * jax.random.normal(ks[4], (num_classes, 3 * C_GFE2), jnp.float32),
        "b_fc": scale * jax.random.normal(ks[5], (num_classes,), jnp.float32),
    }


@functools.partial(jax.jit, static_argnames=("num_person",))
def forward(params, x, num_person):
    # x: (N*M, C_in, T, V=25), NCHW like the PyTorch module
    NM, cin, T, V = x.shape
    assert V == 25 and NM % num_person == 0

    # trace-time constants
    a25 = make_adjacency(25)
    a11 = make_adjacency(11)
    a6 = make_adjacency(6)
    p1 = make_pool_matrix(INDICES_25_TO_11, 25)
    p2 = make_pool_matrix(INDICES_11_TO_6, 11)
    a25_blk = jnp.asarray(frame_block_diag(a25, T_TILE), jnp.bfloat16)
    a11_blk = jnp.asarray(frame_block_diag(a11, T_TILE), jnp.bfloat16)
    a6_blk = jnp.asarray(frame_block_diag(a6, T_TILE), jnp.bfloat16)
    p1_blk = jnp.asarray(frame_block_diag(p1, T_TILE), jnp.bfloat16)
    p2_blk = jnp.asarray(frame_block_diag(p2, T_TILE), jnp.bfloat16)

    # channels-last bf16; pad T to a multiple of T_TILE and Cin to a multiple
    # of 8 (zero frames/channels propagate as exact zeros -> GAP still exact).
    t_pad = ((T + T_TILE - 1) // T_TILE) * T_TILE
    cin_pad = max(8, ((cin + 7) // 8) * 8)
    x_cl = jnp.transpose(x, (0, 2, 3, 1))                          # (NM, T, 25, Cin)
    x_cl = jnp.pad(x_cl, ((0, 0), (0, t_pad - T), (0, 0), (0, cin_pad - cin)))
    x_cl = x_cl.reshape(NM, t_pad * 25, cin_pad).astype(jnp.bfloat16)

    w1 = jnp.pad(params["w_gfe1"].T,
                 ((0, cin_pad - cin), (0, 0))).astype(jnp.bfloat16)   # (cin_pad, 64)
    w2 = params["w_gfe2"].T.astype(jnp.bfloat16)                      # (64, 128)

    # gfe_one + tsa_first + joint-group pooling (25 -> 11 -> 6), fused.
    # TODO(synk): GFE_one internals and tcn_unit_attention source unavailable;
    # stand-in = 1x1 conv + adjacency + ReLU, attention = identity.
    fm25, fm11, fm6 = gfe1_with_pool(x_cl, w1, a25_blk, p1_blk, p2_blk)

    # gfe_two + tsa_other (identity stand-in) + avg_pool2d over (T, V), fused.
    # TODO(synk): GFE_two internals unavailable; same 1x1-conv + adjacency + ReLU stand-in.
    gap25 = gfe2_gap(fm25, a25_blk, w2, 25, T * 25)                  # (NM, 128) f32
    gap11 = gfe2_gap(fm11, a11_blk, w2, 11, T * 11)
    gap6 = gfe2_gap(fm6, a6_blk, w2, 6, T * 6)

    # tiny classifier heads: person mean + 1x1 conv; left to XLA (per review).
    def person_mean(p):
        return p.reshape(NM // num_person, num_person, -1).mean(axis=1)

    wf_o, bf_o = params["w_fc_other"], params["b_fc_other"]
    out_25 = person_mean(gap25) @ wf_o.T + bf_o
    out_11 = person_mean(gap11) @ wf_o.T + bf_o
    out_6 = person_mean(gap6) @ wf_o.T + bf_o

    combined = person_mean(jnp.concatenate([gap25, gap11, gap6], axis=1))
    combined = combined @ params["w_fc"].T + params["b_fc"]

    return out_6, out_11, out_25, combined


# ----------------------------------------------------------------------------
if __name__ == "__main__":
    num_classes = 10
    num_person = 2
    batch = 2                     # leading dim of x is batch * num_person
    input_channels = 3
    T = 24                        # small stand-in for 300 frames (exercises padding)
    V = 25                        # skeleton joints

    key = jax.random.PRNGKey(0)
    k_param, k_x = jax.random.split(key)
    params = init_params(k_param, input_channels, num_classes)
    x = jax.random.normal(k_x, (batch * num_person, input_channels, T, V), jnp.float32)

    out_6, out_11, out_25, combined = forward(params, x, num_person)
    jax.block_until_ready((out_6, out_11, out_25, combined))

    assert out_6.shape == (batch, num_classes)
    assert out_11.shape == (batch, num_classes)
    assert out_25.shape == (batch, num_classes)
    assert combined.shape == (batch, num_classes)
    assert bool(jnp.all(jnp.isfinite(out_6)))
    assert bool(jnp.all(jnp.isfinite(combined)))
    print("KERNEL_OK")
</pallas_src>

<mosaic_0001>
module attributes {stable_mosaic.version = 11 : i64} {
  func.func @_gfe1_pool_kernel(%arg0: i32, %arg1: i32, %arg2: memref<1x400x8xbf16, #tpu.memory_space<vmem>>, %arg3: memref<8x64xbf16, #tpu.memory_space<vmem>>, %arg4: memref<400x400xbf16, #tpu.memory_space<vmem>>, %arg5: memref<176x400xbf16, #tpu.memory_space<vmem>>, %arg6: memref<96x176xbf16, #tpu.memory_space<vmem>>, %arg7: memref<1x400x64xbf16, #tpu.memory_space<vmem>>, %arg8: memref<1x176x64xbf16, #tpu.memory_space<vmem>>, %arg9: memref<1x96x64xbf16, #tpu.memory_space<vmem>>) attributes {dimension_semantics = [#tpu.dimension_semantics<parallel>, #tpu.dimension_semantics<parallel>], iteration_bounds = array<i64: 4, 2>, scalar_prefetch = 0 : i64, scratch_operands = 0 : i64, tpu.core_type = #tpu.core_type<tc>, window_params = [{transform_indices = @transform_0, window_bounds = array<i64: 1, 400, 8>}, {pipeline_mode = #tpu.pipeline_mode<synchronous>, transform_indices = @transform_1, window_bounds = array<i64: 8, 64>}, {pipeline_mode = #tpu.pipeline_mode<synchronous>, transform_indices = @transform_2, window_bounds = array<i64: 400, 400>}, {pipeline_mode = #tpu.pipeline_mode<synchronous>, transform_indices = @transform_3, window_bounds = array<i64: 176, 400>}, {pipeline_mode = #tpu.pipeline_mode<synchronous>, transform_indices = @transform_4, window_bounds = array<i64: 96, 176>}, {transform_indices = @transform_5, window_bounds = array<i64: 1, 400, 64>}, {transform_indices = @transform_6, window_bounds = array<i64: 1, 176, 64>}, {transform_indices = @transform_7, window_bounds = array<i64: 1, 96, 64>}]} {
    %c0 = arith.constant 0 : index
    %c0_0 = arith.constant 0 : index
    %c0_1 = arith.constant 0 : index
    %0 = vector.load %arg2[%c0, %c0_0, %c0_1] : memref<1x400x8xbf16, #tpu.memory_space<vmem>>, vector<1x400x8xbf16>
    %1 = vector.shape_cast %0 : vector<1x400x8xbf16> to vector<400x8xbf16>
    %c0_2 = arith.constant 0 : index
    %c0_3 = arith.constant 0 : index
    %2 = vector.load %arg3[%c0_2, %c0_3] : memref<8x64xbf16, #tpu.memory_space<vmem>>, vector<8x64xbf16>
    %cst = arith.constant dense<0.000000e+00> : vector<400x64xf32>
    %3 = tpu.matmul %1, %2, %cst {dimension_numbers = #tpu.dot_dimension_numbers<[1], [0], [0], [1], [0, 0, 1, 1], [], []>} : vector<400x8xbf16>, vector<8x64xbf16>, vector<400x64xf32> -> vector<400x64xf32>
    %c0_4 = arith.constant 0 : index
    %c0_5 = arith.constant 0 : index
    %4 = vector.load %arg4[%c0_4, %c0_5] : memref<400x400xbf16, #tpu.memory_space<vmem>>, vector<400x400xbf16>
    %5 = arith.truncf %3 : vector<400x64xf32> to vector<400x64xbf16>
    %cst_6 = arith.constant dense<0.000000e+00> : vector<400x64xf32>
    %6 = tpu.matmul %4, %5, %cst_6 {dimension_numbers = #tpu.dot_dimension_numbers<[1], [0], [0], [1], [0, 0, 1, 1], [], []>} : vector<400x400xbf16>, vector<400x64xbf16>, vector<400x64xf32> -> vector<400x64xf32>
    %cst_7 = arith.constant 0.000000e+00 : f32
    %7 = vector.broadcast %cst_7 : f32 to vector<400x64xf32>
    %8 = arith.maximumf %6, %7 : vector<400x64xf32>
    %9 = arith.truncf %8 : vector<400x64xf32> to vector<400x64xbf16>
    %c0_8 = arith.constant 0 : index
    %c0_9 = arith.constant 0 : index
    %c0_10 = arith.constant 0 : index
    %10 = vector.load %arg7[%c0_8, %c0_9, %c0_10] : memref<1x400x64xbf16, #tpu.memory_space<vmem>>, vector<1x400x64xbf16>
    %11 = vector.shape_cast %10 : vector<1x400x64xbf16> to vector<400x64xbf16>
    %12 = vector.shape_cast %9 : vector<400x64xbf16> to vector<1x400x64xbf16>
    tpu.vector_store %arg7[%c0_8, %c0_9, %c0_10], %12 {strides = array<i32>} : memref<1x400x64xbf16, #tpu.memory_space<vmem>>, vector<1x400x64xbf16>,
    %c0_11 = arith.constant 0 : index
    %c0_12 = arith.constant 0 : index
    %13 = vector.load %arg5[%c0_11, %c0_12] : memref<176x400xbf16, #tpu.memory_space<vmem>>, vector<176x400xbf16>
    %cst_13 = arith.constant dense<0.000000e+00> : vector<176x64xf32>
    %14 = tpu.matmul %13, %9, %cst_13 {dimension_numbers = #tpu.dot_dimension_numbers<[1], [0], [0], [1], [0, 0, 1, 1], [], []>} : vector<176x400xbf16>, vector<400x64xbf16>, vector<176x64xf32> -> vector<176x64xf32>
    %15 = arith.truncf %14 : vector<176x64xf32> to vector<176x64xbf16>
    %c0_14 = arith.constant 0 : index
    %c0_15 = arith.constant 0 : index
    %c0_16 = arith.constant 0 : index
    %16 = vector.load %arg8[%c0_14, %c0_15, %c0_16] : memref<1x176x64xbf16, #tpu.memory_space<vmem>>, vector<1x176x64xbf16>
    %17 = vector.shape_cast %16 : vector<1x176x64xbf16> to vector<176x64xbf16>
    %18 = vector.shape_cast %15 : vector<176x64xbf16> to vector<1x176x64xbf16>
    tpu.vector_store %arg8[%c0_14, %c0_15, %c0_16], %18 {strides = array<i32>} : memref<1x176x64xbf16, #tpu.memory_space<vmem>>, vector<1x176x64xbf16>,
    %c0_17 = arith.constant 0 : index
    %c0_18 = arith.constant 0 : index
    %19 = vector.load %arg6[%c0_17, %c0_18] : memref<96x176xbf16, #tpu.memory_space<vmem>>, vector<96x176xbf16>
    %cst_19 = arith.constant dense<0.000000e+00> : vector<96x64xf32>
    %20 = tpu.matmul %19, %15, %cst_19 {dimension_numbers = #tpu.dot_dimension_numbers<[1], [0], [0], [1], [0, 0, 1, 1], [], []>} : vector<96x176xbf16>, vector<176x64xbf16>, vector<96x64xf32> -> vector<96x64xf32>
    %21 = arith.truncf %20 : vector<96x64xf32> to vector<96x64xbf16>
    %c0_20 = arith.constant 0 : index
    %c0_21 = arith.constant 0 : index
    %c0_22 = arith.constant 0 : index
    %22 = vector.load %arg9[%c0_20, %c0_21, %c0_22] : memref<1x96x64xbf16, #tpu.memory_space<vmem>>, vector<1x96x64xbf16>
    %23 = vector.shape_cast %22 : vector<1x96x64xbf16> to vector<96x64xbf16>
    %24 = vector.shape_cast %21 : vector<96x64xbf16> to vector<1x96x64xbf16>
    tpu.vector_store %arg9[%c0_20, %c0_21, %c0_22], %24 {strides = array<i32>} : memref<1x96x64xbf16, #tpu.memory_space<vmem>>, vector<1x96x64xbf16>,
    return
  }
  func.func @transform_0(%arg0: i32, %arg1: i32) -> (i32, i32, i32) {
    %c0_i32 = arith.constant 0 : i32
    %c0_i32_0 = arith.constant 0 : i32
    return %arg0, %arg1, %c0_i32 : i32, i32, i32
  }
  func.func @transform_1(%arg0: i32, %arg1: i32) -> (i32, i32) {
    %c0_i32 = arith.constant 0 : i32
    %c0_i32_0 = arith.constant 0 : i32
    %c0_i32_1 = arith.constant 0 : i32
    return %c0_i32, %c0_i32_0 : i32, i32
  }
  func.func @transform_2(%arg0: i32, %arg1: i32) -> (i32, i32) {
    %c0_i32 = arith.constant 0 : i32
    %c0_i32_0 = arith.constant 0 : i32
    %c0_i32_1 = arith.constant 0 : i32
    return %c0_i32, %c0_i32_0 : i32, i32
  }
  func.func @transform_3(%arg0: i32, %arg1: i32) -> (i32, i32) {
    %c0_i32 = arith.constant 0 : i32
    %c0_i32_0 = arith.constant 0 : i32
    %c0_i32_1 = arith.constant 0 : i32
    return %c0_i32, %c0_i32_0 : i32, i32
  }
  func.func @transform_4(%arg0: i32, %arg1: i32) -> (i32, i32) {
    %c0_i32 = arith.constant 0 : i32
    %c0_i32_0 = arith.constant 0 : i32
    %c0_i32_1 = arith.constant 0 : i32
    return %c0_i32, %c0_i32_0 : i32, i32
  }
  func.func @transform_5(%arg0: i32, %arg1: i32) -> (i32, i32, i32) {
    %c0_i32 = arith.constant 0 : i32
    %c0_i32_0 = arith.constant 0 : i32
    return %arg0, %arg1, %c0_i32 : i32, i32, i32
  }
  func.func @transform_6(%arg0: i32, %arg1: i32) -> (i32, i32, i32) {
    %c0_i32 = arith.constant 0 : i32
    %c0_i32_0 = arith.constant 0 : i32
    return %arg0, %arg1, %c0_i32 : i32, i32, i32
  }
  func.func @transform_7(%arg0: i32, %arg1: i32) -> (i32, i32, i32) {
    %c0_i32 = arith.constant 0 : i32
    %c0_i32_0 = arith.constant 0 : i32
    return %arg0, %arg1, %c0_i32 : i32, i32, i32
  }
}

module attributes {stable_mosaic.version = 11 : i64} {
  func.func @kernel(%arg0: i32, %arg1: i32, %arg2: memref<1x96x64xbf16, #tpu.memory_space<vmem>>, %arg3: memref<96x96xbf16, #tpu.memory_space<vmem>>, %arg4: memref<64x128xbf16, #tpu.memory_space<vmem>>, %arg5: memref<1x1x128xf32, #tpu.memory_space<vmem>>) attributes {dimension_semantics = [#tpu.dimension_semantics<parallel>, #tpu.dimension_semantics<arbitrary>], iteration_bounds = array<i64: 4, 2>, scalar_prefetch = 0 : i64, scratch_operands = 0 : i64, tpu.core_type = #tpu.core_type<tc>, window_params = [{transform_indices = @transform_0, window_bounds = array<i64: 1, 96, 64>}, {pipeline_mode = #tpu.pipeline_mode<synchronous>, transform_indices = @transform_1, window_bounds = array<i64: 96, 96>}, {pipeline_mode = #tpu.pipeline_mode<synchronous>, transform_indices = @transform_2, window_bounds = array<i64: 64, 128>}, {transform_indices = @transform_3, window_bounds = array<i64: 1, 1, 128>}]} {
    %c0 = arith.constant 0 : index
    %c0_0 = arith.constant 0 : index
    %c0_1 = arith.constant 0 : index
    %0 = vector.load %arg2[%c0, %c0_0, %c0_1] : memref<1x96x64xbf16, #tpu.memory_space<vmem>>, vector<1x96x64xbf16>
    %1 = vector.shape_cast %0 : vector<1x96x64xbf16> to vector<96x64xbf16>
    %c0_2 = arith.constant 0 : index
    %c0_3 = arith.constant 0 : index
    %2 = vector.load %arg3[%c0_2, %c0_3] : memref<96x96xbf16, #tpu.memory_space<vmem>>, vector<96x96xbf16>
    %cst = arith.constant dense<0.000000e+00> : vector<96x64xf32>
    %3 = tpu.matmul %2, %1, %cst {dimension_numbers = #tpu.dot_dimension_numbers<[1], [0], [0], [1], [0, 0, 1, 1], [], []>} : vector<96x96xbf16>, vector<96x64xbf16>, vector<96x64xf32> -> vector<96x64xf32>
    %4 = arith.truncf %3 : vector<96x64xf32> to vector<96x64xbf16>
    %c0_4 = arith.constant 0 : index
    %c0_5 = arith.constant 0 : index
    %5 = vector.load %arg4[%c0_4, %c0_5] : memref<64x128xbf16, #tpu.memory_space<vmem>>, vector<64x128xbf16>
    %cst_6 = arith.constant dense<0.000000e+00> : vector<96x128xf32>
    %6 = tpu.matmul %4, %5, %cst_6 {dimension_numbers = #tpu.dot_dimension_numbers<[1], [0], [0], [1], [0, 0, 1, 1], [], []>} : vector<96x64xbf16>, vector<64x128xbf16>, vector<96x128xf32> -> vector<96x128xf32>
    %cst_7 = arith.constant 0.000000e+00 : f32
    %7 = vector.broadcast %cst_7 : f32 to vector<96x128xf32>
    %8 = arith.maximumf %6, %7 : vector<96x128xf32>
    %cst_8 = arith.constant dense<0.000000e+00> : vector<128xf32>
    %9 = vector.multi_reduction <add>, %8, %cst_8 [0] : vector<96x128xf32> to vector<128xf32>
    %10 = vector.shape_cast %9 : vector<128xf32> to vector<1x1x128xf32>
    %c0_i32 = arith.constant 0 : i32
    %11 = arith.cmpi eq, %arg1, %c0_i32 : i32
    %12 = arith.extui %11 : i1 to i32
    %c0_i32_9 = arith.constant 0 : i32
    %13 = arith.cmpi ne, %12, %c0_i32_9 : i32
    scf.if %13 {
      %cst_17 = arith.constant 0.000000e+00 : f32
      %20 = vector.broadcast %cst_17 : f32 to vector<1x1x128xf32>
      %c0_18 = arith.constant 0 : index
      %c0_19 = arith.constant 0 : index
      %c0_20 = arith.constant 0 : index
      %21 = vector.load %arg5[%c0_18, %c0_19, %c0_20] : memref<1x1x128xf32, #tpu.memory_space<vmem>>, vector<1x1x128xf32>
      tpu.vector_store %arg5[%c0_18, %c0_19, %c0_20], %20 {strides = array<i32>} : memref<1x1x128xf32, #tpu.memory_space<vmem>>, vector<1x1x128xf32>,
    } else {
    }
    %c0_10 = arith.constant 0 : index
    %c0_11 = arith.constant 0 : index
    %c0_12 = arith.constant 0 : index
    %14 = vector.load %arg5[%c0_10, %c0_11, %c0_12] : memref<1x1x128xf32, #tpu.memory_space<vmem>>, vector<1x1x128xf32>
    %15 = arith.addf %14, %10 : vector<1x1x128xf32>
    %c0_13 = arith.constant 0 : index
    %c0_14 = arith.constant 0 : index
    %c0_15 = arith.constant 0 : index
    %16 = vector.load %arg5[%c0_13, %c0_14, %c0_15] : memref<1x1x128xf32, #tpu.memory_space<vmem>>, vector<1x1x128xf32>
    tpu.vector_store %arg5[%c0_13, %c0_14, %c0_15], %15 {strides = array<i32>} : memref<1x1x128xf32, #tpu.memory_space<vmem>>, vector<1x1x128xf32>,
    %c1_i32 = arith.constant 1 : i32
    %17 = arith.cmpi eq, %arg1, %c1_i32 : i32
    %18 = arith.extui %17 : i1 to i32
    %c0_i32_16 = arith.constant 0 : i32
    %19 = arith.cmpi ne, %18, %c0_i32_16 : i32
    scf.if %19 {
      %c0_17 = arith.constant 0 : index
      %c0_18 = arith.constant 0 : index
      %c0_19 = arith.constant 0 : index
      %20 = vector.load %arg5[%c0_17, %c0_18, %c0_19] : memref<1x1x128xf32, #tpu.memory_space<vmem>>, vector<1x1x128xf32>
      %cst_20 = arith.constant 0.0069444445 : f32
      %21 = vector.broadcast %cst_20 : f32 to vector<1x1x128xf32>
      %22 = arith.mulf %20, %21 : vector<1x1x128xf32>
      %c0_21 = arith.constant 0 : index
      %c0_22 = arith.constant 0 : index
      %c0_23 = arith.constant 0 : index
      %23 = vector.load %arg5[%c0_21, %c0_22, %c0_23] : memref<1x1x128xf32, #tpu.memory_space<vmem>>, vector<1x1x128xf32>
      tpu.vector_store %arg5[%c0_21, %c0_22, %c0_23], %22 {strides = array<i32>} : memref<1x1x128xf32, #tpu.memory_space<vmem>>, vector<1x1x128xf32>,
    } else {
    }
    return
  }
  func.func @transform_0(%arg0: i32, %arg1: i32) -> (i32, i32, i32) {
    %c0_i32 = arith.constant 0 : i32
    %c0_i32_0 = arith.constant 0 : i32
    return %arg0, %arg1, %c0_i32 : i32, i32, i32
  }
  func.func @transform_1(%arg0: i32, %arg1: i32) -> (i32, i32) {
    %c0_i32 = arith.constant 0 : i32
    %c0_i32_0 = arith.constant 0 : i32
    %c0_i32_1 = arith.constant 0 : i32
    return %c0_i32, %c0_i32_0 : i32, i32
  }
  func.func @transform_2(%arg0: i32, %arg1: i32) -> (i32, i32) {
    %c0_i32 = arith.constant 0 : i32
    %c0_i32_0 = arith.constant 0 : i32
    %c0_i32_1 = arith.constant 0 : i32
    return %c0_i32, %c0_i32_0 : i32, i32
  }
  func.func @transform_3(%arg0: i32, %arg1: i32) -> (i32, i32, i32) {
    %c0_i32 = arith.constant 0 : i32
    %c0_i32_0 = arith.constant 0 : i32
    %c0_i32_1 = arith.constant 0 : i32
    return %arg0, %c0_i32, %c0_i32_0 : i32, i32, i32
  }
}

module attributes {stable_mosaic.version = 11 : i64} {
  func.func @kernel(%arg0: i32, %arg1: i32, %arg2: memref<1x176x64xbf16, #tpu.memory_space<vmem>>, %arg3: memref<176x176xbf16, #tpu.memory_space<vmem>>, %arg4: memref<64x128xbf16, #tpu.memory_space<vmem>>, %arg5: memref<1x1x128xf32, #tpu.memory_space<vmem>>) attributes {dimension_semantics = [#tpu.dimension_semantics<parallel>, #tpu.dimension_semantics<arbitrary>], iteration_bounds = array<i64: 4, 2>, scalar_prefetch = 0 : i64, scratch_operands = 0 : i64, tpu.core_type = #tpu.core_type<tc>, window_params = [{transform_indices = @transform_0, window_bounds = array<i64: 1, 176, 64>}, {pipeline_mode = #tpu.pipeline_mode<synchronous>, transform_indices = @transform_1, window_bounds = array<i64: 176, 176>}, {pipeline_mode = #tpu.pipeline_mode<synchronous>, transform_indices = @transform_2, window_bounds = array<i64: 64, 128>}, {transform_indices = @transform_3, window_bounds = array<i64: 1, 1, 128>}]} {
    %c0 = arith.constant 0 : index
    %c0_0 = arith.constant 0 : index
    %c0_1 = arith.constant 0 : index
    %0 = vector.load %arg2[%c0, %c0_0, %c0_1] : memref<1x176x64xbf16, #tpu.memory_space<vmem>>, vector<1x176x64xbf16>
    %1 = vector.shape_cast %0 : vector<1x176x64xbf16> to vector<176x64xbf16>
    %c0_2 = arith.constant 0 : index
    %c0_3 = arith.constant 0 : index
    %2 = vector.load %arg3[%c0_2, %c0_3] : memref<176x176xbf16, #tpu.memory_space<vmem>>, vector<176x176xbf16>
    %cst = arith.constant dense<0.000000e+00> : vector<176x64xf32>
    %3 = tpu.matmul %2, %1, %cst {dimension_numbers = #tpu.dot_dimension_numbers<[1], [0], [0], [1], [0, 0, 1, 1], [], []>} : vector<176x176xbf16>, vector<176x64xbf16>, vector<176x64xf32> -> vector<176x64xf32>
    %4 = arith.truncf %3 : vector<176x64xf32> to vector<176x64xbf16>
    %c0_4 = arith.constant 0 : index
    %c0_5 = arith.constant 0 : index
    %5 = vector.load %arg4[%c0_4, %c0_5] : memref<64x128xbf16, #tpu.memory_space<vmem>>, vector<64x128xbf16>
    %cst_6 = arith.constant dense<0.000000e+00> : vector<176x128xf32>
    %6 = tpu.matmul %4, %5, %cst_6 {dimension_numbers = #tpu.dot_dimension_numbers<[1], [0], [0], [1], [0, 0, 1, 1], [], []>} : vector<176x64xbf16>, vector<64x128xbf16>, vector<176x128xf32> -> vector<176x128xf32>
    %cst_7 = arith.constant 0.000000e+00 : f32
    %7 = vector.broadcast %cst_7 : f32 to vector<176x128xf32>
    %8 = arith.maximumf %6, %7 : vector<176x128xf32>
    %cst_8 = arith.constant dense<0.000000e+00> : vector<128xf32>
    %9 = vector.multi_reduction <add>, %8, %cst_8 [0] : vector<176x128xf32> to vector<128xf32>
    %10 = vector.shape_cast %9 : vector<128xf32> to vector<1x1x128xf32>
    %c0_i32 = arith.constant 0 : i32
    %11 = arith.cmpi eq, %arg1, %c0_i32 : i32
    %12 = arith.extui %11 : i1 to i32
    %c0_i32_9 = arith.constant 0 : i32
    %13 = arith.cmpi ne, %12, %c0_i32_9 : i32
    scf.if %13 {
      %cst_17 = arith.constant 0.000000e+00 : f32
      %20 = vector.broadcast %cst_17 : f32 to vector<1x1x128xf32>
      %c0_18 = arith.constant 0 : index
      %c0_19 = arith.constant 0 : index
      %c0_20 = arith.constant 0 : index
      %21 = vector.load %arg5[%c0_18, %c0_19, %c0_20] : memref<1x1x128xf32, #tpu.memory_space<vmem>>, vector<1x1x128xf32>
      tpu.vector_store %arg5[%c0_18, %c0_19, %c0_20], %20 {strides = array<i32>} : memref<1x1x128xf32, #tpu.memory_space<vmem>>, vector<1x1x128xf32>,
    } else {
    }
    %c0_10 = arith.constant 0 : index
    %c0_11 = arith.constant 0 : index
    %c0_12 = arith.constant 0 : index
    %14 = vector.load %arg5[%c0_10, %c0_11, %c0_12] : memref<1x1x128xf32, #tpu.memory_space<vmem>>, vector<1x1x128xf32>
    %15 = arith.addf %14, %10 : vector<1x1x128xf32>
    %c0_13 = arith.constant 0 : index
    %c0_14 = arith.constant 0 : index
    %c0_15 = arith.constant 0 : index
    %16 = vector.load %arg5[%c0_13, %c0_14, %c0_15] : memref<1x1x128xf32, #tpu.memory_space<vmem>>, vector<1x1x128xf32>
    tpu.vector_store %arg5[%c0_13, %c0_14, %c0_15], %15 {strides = array<i32>} : memref<1x1x128xf32, #tpu.memory_space<vmem>>, vector<1x1x128xf32>,
    %c1_i32 = arith.constant 1 : i32
    %17 = arith.cmpi eq, %arg1, %c1_i32 : i32
    %18 = arith.extui %17 : i1 to i32
    %c0_i32_16 = arith.constant 0 : i32
    %19 = arith.cmpi ne, %18, %c0_i32_16 : i32
    scf.if %19 {
      %c0_17 = arith.constant 0 : index
      %c0_18 = arith.constant 0 : index
      %c0_19 = arith.constant 0 : index
      %20 = vector.load %arg5[%c0_17, %c0_18, %c0_19] : memref<1x1x128xf32, #tpu.memory_space<vmem>>, vector<1x1x128xf32>
      %cst_20 = arith.constant 0.0037878789 : f32
      %21 = vector.broadcast %cst_20 : f32 to vector<1x1x128xf32>
      %22 = arith.mulf %20, %21 : vector<1x1x128xf32>
      %c0_21 = arith.constant 0 : index
      %c0_22 = arith.constant 0 : index
      %c0_23 = arith.constant 0 : index
      %23 = vector.load %arg5[%c0_21, %c0_22, %c0_23] : memref<1x1x128xf32, #tpu.memory_space<vmem>>, vector<1x1x128xf32>
      tpu.vector_store %arg5[%c0_21, %c0_22, %c0_23], %22 {strides = array<i32>} : memref<1x1x128xf32, #tpu.memory_space<vmem>>, vector<1x1x128xf32>,
    } else {
    }
    return
  }
  func.func @transform_0(%arg0: i32, %arg1: i32) -> (i32, i32, i32) {
    %c0_i32 = arith.constant 0 : i32
    %c0_i32_0 = arith.constant 0 : i32
    return %arg0, %arg1, %c0_i32 : i32, i32, i32
  }
  func.func @transform_1(%arg0: i32, %arg1: i32) -> (i32, i32) {
    %c0_i32 = arith.constant 0 : i32
    %c0_i32_0 = arith.constant 0 : i32
    %c0_i32_1 = arith.constant 0 : i32
    return %c0_i32, %c0_i32_0 : i32, i32
  }
  func.func @transform_2(%arg0: i32, %arg1: i32) -> (i32, i32) {
    %c0_i32 = arith.constant 0 : i32
    %c0_i32_0 = arith.constant 0 : i32
    %c0_i32_1 = arith.constant 0 : i32
    return %c0_i32, %c0_i32_0 : i32, i32
  }
  func.func @transform_3(%arg0: i32, %arg1: i32) -> (i32, i32, i32) {
    %c0_i32 = arith.constant 0 : i32
    %c0_i32_0 = arith.constant 0 : i32
    %c0_i32_1 = arith.constant 0 : i32
    return %arg0, %c0_i32, %c0_i32_0 : i32, i32, i32
  }
}

module attributes {stable_mosaic.version = 11 : i64} {
  func.func @kernel(%arg0: i32, %arg1: i32, %arg2: memref<1x400x64xbf16, #tpu.memory_space<vmem>>, %arg3: memref<400x400xbf16, #tpu.memory_space<vmem>>, %arg4: memref<64x128xbf16, #tpu.memory_space<vmem>>, %arg5: memref<1x1x128xf32, #tpu.memory_space<vmem>>) attributes {dimension_semantics = [#tpu.dimension_semantics<parallel>, #tpu.dimension_semantics<arbitrary>], iteration_bounds = array<i64: 4, 2>, scalar_prefetch = 0 : i64, scratch_operands = 0 : i64, tpu.core_type = #tpu.core_type<tc>, window_params = [{transform_indices = @transform_0, window_bounds = array<i64: 1, 400, 64>}, {pipeline_mode = #tpu.pipeline_mode<synchronous>, transform_indices = @transform_1, window_bounds = array<i64: 400, 400>}, {pipeline_mode = #tpu.pipeline_mode<synchronous>, transform_indices = @transform_2, window_bounds = array<i64: 64, 128>}, {transform_indices = @transform_3, window_bounds = array<i64: 1, 1, 128>}]} {
    %c0 = arith.constant 0 : index
    %c0_0 = arith.constant 0 : index
    %c0_1 = arith.constant 0 : index
    %0 = vector.load %arg2[%c0, %c0_0, %c0_1] : memref<1x400x64xbf16, #tpu.memory_space<vmem>>, vector<1x400x64xbf16>
    %1 = vector.shape_cast %0 : vector<1x400x64xbf16> to vector<400x64xbf16>
    %c0_2 = arith.constant 0 : index
    %c0_3 = arith.constant 0 : index
    %2 = vector.load %arg3[%c0_2, %c0_3] : memref<400x400xbf16, #tpu.memory_space<vmem>>, vector<400x400xbf16>
    %cst = arith.constant dense<0.000000e+00> : vector<400x64xf32>
    %3 = tpu.matmul %2, %1, %cst {dimension_numbers = #tpu.dot_dimension_numbers<[1], [0], [0], [1], [0, 0, 1, 1], [], []>} : vector<400x400xbf16>, vector<400x64xbf16>, vector<400x64xf32> -> vector<400x64xf32>
    %4 = arith.truncf %3 : vector<400x64xf32> to vector<400x64xbf16>
    %c0_4 = arith.constant 0 : index
    %c0_5 = arith.constant 0 : index
    %5 = vector.load %arg4[%c0_4, %c0_5] : memref<64x128xbf16, #tpu.memory_space<vmem>>, vector<64x128xbf16>
    %cst_6 = arith.constant dense<0.000000e+00> : vector<400x128xf32>
    %6 = tpu.matmul %4, %5, %cst_6 {dimension_numbers = #tpu.dot_dimension_numbers<[1], [0], [0], [1], [0, 0, 1, 1], [], []>} : vector<400x64xbf16>, vector<64x128xbf16>, vector<400x128xf32> -> vector<400x128xf32>
    %cst_7 = arith.constant 0.000000e+00 : f32
    %7 = vector.broadcast %cst_7 : f32 to vector<400x128xf32>
    %8 = arith.maximumf %6, %7 : vector<400x128xf32>
    %cst_8 = arith.constant dense<0.000000e+00> : vector<128xf32>
    %9 = vector.multi_reduction <add>, %8, %cst_8 [0] : vector<400x128xf32> to vector<128xf32>
    %10 = vector.shape_cast %9 : vector<128xf32> to vector<1x1x128xf32>
    %c0_i32 = arith.constant 0 : i32
    %11 = arith.cmpi eq, %arg1, %c0_i32 : i32
    %12 = arith.extui %11 : i1 to i32
    %c0_i32_9 = arith.constant 0 : i32
    %13 = arith.cmpi ne, %12, %c0_i32_9 : i32
    scf.if %13 {
      %cst_17 = arith.constant 0.000000e+00 : f32
      %20 = vector.broadcast %cst_17 : f32 to vector<1x1x128xf32>
      %c0_18 = arith.constant 0 : index
      %c0_19 = arith.constant 0 : index
      %c0_20 = arith.constant 0 : index
      %21 = vector.load %arg5[%c0_18, %c0_19, %c0_20] : memref<1x1x128xf32, #tpu.memory_space<vmem>>, vector<1x1x128xf32>
      tpu.vector_store %arg5[%c0_18, %c0_19, %c0_20], %20 {strides = array<i32>} : memref<1x1x128xf32, #tpu.memory_space<vmem>>, vector<1x1x128xf32>,
    } else {
    }
    %c0_10 = arith.constant 0 : index
    %c0_11 = arith.constant 0 : index
    %c0_12 = arith.constant 0 : index
    %14 = vector.load %arg5[%c0_10, %c0_11, %c0_12] : memref<1x1x128xf32, #tpu.memory_space<vmem>>, vector<1x1x128xf32>
    %15 = arith.addf %14, %10 : vector<1x1x128xf32>
    %c0_13 = arith.constant 0 : index
    %c0_14 = arith.constant 0 : index
    %c0_15 = arith.constant 0 : index
    %16 = vector.load %arg5[%c0_13, %c0_14, %c0_15] : memref<1x1x128xf32, #tpu.memory_space<vmem>>, vector<1x1x128xf32>
    tpu.vector_store %arg5[%c0_13, %c0_14, %c0_15], %15 {strides = array<i32>} : memref<1x1x128xf32, #tpu.memory_space<vmem>>, vector<1x1x128xf32>,
    %c1_i32 = arith.constant 1 : i32
    %17 = arith.cmpi eq, %arg1, %c1_i32 : i32
    %18 = arith.extui %17 : i1 to i32
    %c0_i32_16 = arith.constant 0 : i32
    %19 = arith.cmpi ne, %18, %c0_i32_16 : i32
    scf.if %19 {
      %c0_17 = arith.constant 0 : index
      %c0_18 = arith.constant 0 : index
      %c0_19 = arith.constant 0 : index
      %20 = vector.load %arg5[%c0_17, %c0_18, %c0_19] : memref<1x1x128xf32, #tpu.memory_space<vmem>>, vector<1x1x128xf32>
      %cst_20 = arith.constant 0.00166666671 : f32
      %21 = vector.broadcast %cst_20 : f32 to vector<1x1x128xf32>
      %22 = arith.mulf %20, %21 : vector<1x1x128xf32>
      %c0_21 = arith.constant 0 : index
      %c0_22 = arith.constant 0 : index
      %c0_23 = arith.constant 0 : index
      %23 = vector.load %arg5[%c0_21, %c0_22, %c0_23] : memref<1x1x128xf32, #tpu.memory_space<vmem>>, vector<1x1x128xf32>
      tpu.vector_store %arg5[%c0_21, %c0_22, %c0_23], %22 {strides = array<i32>} : memref<1x1x128xf32, #tpu.memory_space<vmem>>, vector<1x1x128xf32>,
    } else {
    }
    return
  }
  func.func @transform_0(%arg0: i32, %arg1: i32) -> (i32, i32, i32) {
    %c0_i32 = arith.constant 0 : i32
    %c0_i32_0 = arith.constant 0 : i32
    return %arg0, %arg1, %c0_i32 : i32, i32, i32
  }
  func.func @transform_1(%arg0: i32, %arg1: i32) -> (i32, i32) {
    %c0_i32 = arith.constant 0 : i32
    %c0_i32_0 = arith.constant 0 : i32
    %c0_i32_1 = arith.constant 0 : i32
    return %c0_i32, %c0_i32_0 : i32, i32
  }
  func.func @transform_2(%arg0: i32, %arg1: i32) -> (i32, i32) {
    %c0_i32 = arith.constant 0 : i32
    %c0_i32_0 = arith.constant 0 : i32
    %c0_i32_1 = arith.constant 0 : i32
    return %c0_i32, %c0_i32_0 : i32, i32
  }
  func.func @transform_3(%arg0: i32, %arg1: i32) -> (i32, i32, i32) {
    %c0_i32 = arith.constant 0 : i32
    %c0_i32_0 = arith.constant 0 : i32
    %c0_i32_1 = arith.constant 0 : i32
    return %arg0, %c0_i32, %c0_i32_0 : i32, i32, i32
  }
}

</mosaic_0001>

<llo_original>
// kernel: forward.7
$region0: #{forward.7}
  #allocation0 [shape = 'u32[]', space=smem, size = 0x4, offset = 0x4, fixed_abs, tag = 'smem constant byte address 0x4 - core index']
  #allocation1 [shape = 'u32[72,128]{1,0:T(1,128)}', space=vmem, size = 0x9000, scoped, tag = 'internal scratch']
  %s0 = inlined_call_operand.vmem [shape: bf16[4,192,64], index: 0, kind: input, shape index: {}]
  %s1 = inlined_call_operand.vmem [shape: bf16[96,96], index: 1, kind: input, shape index: {}]
  %s2 = inlined_call_operand.vmem [shape: bf16[64,128], index: 2, kind: input, shape index: {}]
  %s3 = inlined_call_operand.vmem [shape: f32[4,1,128], index: 3, kind: output, shape index: {}]
  %s4 = sld [smem:[#allocation0]]
  $region53: #{forward.7} parent=0
    _
  %s6 = ssub.s32 1, %s4
  %s7 = scalar_select 0, %s6, %s4
  loop: start=0, step=1, limit=10
  $region2: #{forward.7} parent=0 // loop_pre_header
    _
  $region3: #{forward.7} parent=0 // loop_header
    %s9 = sphi 0, %s13
    %p10 = scmp.ge.s32.totalorder %s9, 10
    %s16 = sphi 0, %s28
    %s17 = sphi 0, %s24
    %s18 = sphi 0, %s16
    %s19 = sphi 0, %s17
    %s20 = sphi 0, %s18
    %s21 = sphi 0, %s19
    %s33 = sphi 0, %s35
    %s36 = sphi 0, %s33
    %s37 = sphi 0, %s36
    %s53 = sphi 0, %s37
    %s57 = sphi 0, %s57
    %s59 = sphi 0, %s57
    %s60 = sphi 0, %s59
    %s74 = sphi 0, %s60
    %s78 = sphi 0, %s78
    %s80 = sphi 0, %s78
    %s81 = sphi 0, %s80
    %s95 = sphi 0, %s81
    %s101 = sphi 0, %s103
    %s104 = sphi 0, %s101
    %s105 = sphi 0, %s104
    %s121 = sphi 0, %s105
  $region4: #{forward.7} parent=0 // loop_header_branch
    %12 = sbr.rel (%p10) target = $region8
  $region5: #{forward.7} parent=0 // loop_body
    %s14 = ssub.s32 %s9, 1
    %s15 = ssub.s32 %s9, 2
    %s22 = sadd.s32 1, %s17
    %p23 = scmp.ge.s32.totalorder %s22, 2
    %s24 = scalar_select %p23, 0, %s22
    %s25 = sadd.s32 1, %s16
    %s26 = scalar_select %p23, %s25, %s16
    %p27 = scmp.ge.s32.totalorder %s26, 4
    %s28 = scalar_select %p27, 0, %s26
    %s29 = ssub.s32 %s16, %s28
    %s30 = ssub.s32 %s17, %s24
    %s31 = sor.u32 %s29, %s30
    %p32 = scmp.eq.s32.totalorder %s31, 0
    %s34 = sadd.s32 %s33, 1
    %s35 = scalar_select %p32, %s33, %s34
    %p38 = pneg %p32
    %p39 = scmp.eq.s32.totalorder %s9, 7
    %p40 = por %p38, %p39
    %p41 = scmp.ne.s32.totalorder %s33, %s36
    %p42 = scmp.eq.s32.totalorder %s9, 0
    %p43 = por %p41, %p42
    %p44 = scmp.ne.s32.totalorder %s33, %s36
    %p45 = scmp.eq.s32.totalorder %s14, 7
    %p46 = por %p44, %p45
    %p47 = scmp.ne.s32.totalorder %s36, %s37
    %p48 = scmp.eq.s32.totalorder %s14, 0
    %p49 = por %p47, %p48
    %p50 = scmp.ne.s32.totalorder %s36, %s37
    %p51 = scmp.eq.s32.totalorder %s15, 7
    %p52 = por %p50, %p51
    %p54 = scmp.ne.s32.totalorder %s37, %s53
    %p55 = scmp.eq.s32.totalorder %s15, 0
    %p56 = por %p54, %p55
    %s58 = sadd.s32 %s57, 1
    %p61 = scmp.eq.s32.totalorder %s9, 7
    %p62 = scmp.ne.s32.totalorder %s57, %s59
    %p63 = scmp.eq.s32.totalorder %s9, 0
    %p64 = por %p62, %p63
    %p65 = scmp.ne.s32.totalorder %s57, %s59
    %p66 = scmp.eq.s32.totalorder %s14, 7
    %p67 = por %p65, %p66
    %p68 = scmp.ne.s32.totalorder %s59, %s60
    %p69 = scmp.eq.s32.totalorder %s14, 0
    %p70 = por %p68, %p69
    %p71 = scmp.ne.s32.totalorder %s59, %s60
    %p72 = scmp.eq.s32.totalorder %s15, 7
    %p73 = por %p71, %p72
    %p75 = scmp.ne.s32.totalorder %s60, %s74
    %p76 = scmp.eq.s32.totalorder %s15, 0
    %p77 = por %p75, %p76
    %s79 = sadd.s32 %s78, 1
    %p82 = scmp.eq.s32.totalorder %s9, 7
    %p83 = scmp.ne.s32.totalorder %s78, %s80
    %p84 = scmp.eq.s32.totalorder %s9, 0
    %p85 = por %p83, %p84
    %p86 = scmp.ne.s32.totalorder %s78, %s80
    %p87 = scmp.eq.s32.totalorder %s14, 7
    %p88 = por %p86, %p87
    %p89 = scmp.ne.s32.totalorder %s80, %s81
    %p90 = scmp.eq.s32.totalorder %s14, 0
    %p91 = por %p89, %p90
    %p92 = scmp.ne.s32.totalorder %s80, %s81
    %p93 = scmp.eq.s32.totalorder %s15, 7
    %p94 = por %p92, %p93
    %p96 = scmp.ne.s32.totalorder %s81, %s95
    %p97 = scmp.eq.s32.totalorder %s15, 0
    %p98 = por %p96, %p97
    %s99 = ssub.s32 %s16, %s28
    %p100 = scmp.eq.s32.totalorder %s99, 0
    %s102 = sadd.s32 %s101, 1
    %s103 = scalar_select %p100, %s101, %s102
    %p106 = pneg %p100
    %p107 = scmp.eq.s32.totalorder %s9, 7
    %p108 = por %p106, %p107
    %p109 = scmp.ne.s32.totalorder %s101, %s104
    %p110 = scmp.eq.s32.totalorder %s9, 0
    %p111 = por %p109, %p110
    %p112 = scmp.ne.s32.totalorder %s101, %s104
    %p113 = scmp.eq.s32.totalorder %s14, 7
    %p114 = por %p112, %p113
    %p115 = scmp.ne.s32.totalorder %s104, %s105
    %p116 = scmp.eq.s32.totalorder %s14, 0
    %p117 = por %p115, %p116
    %p118 = scmp.ne.s32.totalorder %s104, %s105
    %p119 = scmp.eq.s32.totalorder %s15, 7
    %p120 = por %p118, %p119
    %p122 = scmp.ne.s32.totalorder %s105, %s121
    %p123 = scmp.eq.s32.totalorder %s15, 0
    %p124 = por %p122, %p123
    %p125 = scmp.le.s32.totalorder 1, %s9
    %p126 = scmp.lt.s32.totalorder %s9, 9
    %p127 = pnand %p125, %p126
    %p128 = pneg %p127
    // Predicated region
    $region9: #{forward.7} parent=5 // pred_check
      _
    $region10: #{forward.7} parent=5 // pred_check_branch
      %130 = sbr.rel (%p127) target = $region12
    $region11: #{forward.7} parent=5 // pred_region
      %s131 = ssub.s32 %s9, 1
      // Predicated region
      $region13: #{forward.7} parent=11 // pred_check
        %p132 = pneg %p70
      $region14: #{forward.7} parent=11 // pred_check_branch
        %134 = sbr.rel (%p132) target = $region16
      $region15: #{forward.7} parent=11 // pred_region
        _
      $region16: #{forward.7} parent=11 // pred_fallthru
        _
      // Predicated region
      $region17: #{forward.7} parent=11 // pred_check
        %p135 = pneg %p91
      $region18: #{forward.7} parent=11 // pred_check_branch
        %137 = sbr.rel (%p135) target = $region20
      $region19: #{forward.7} parent=11 // pred_region
        _
      $region20: #{forward.7} parent=11 // pred_fallthru
        _
    $region12: #{forward.7} parent=5 // pred_fallthru
      _
    %p138 = scmp.lt.s32.totalorder %s9, 8
    // Predicated region
    $region21: #{forward.7} parent=5 // pred_check
      %p139 = pneg %p138
    $region22: #{forward.7} parent=5 // pred_check_branch
      %141 = sbr.rel (%p139) target = $region24
    $region23: #{forward.7} parent=5 // pred_region
      // Predicated region
      $region25: #{forward.7} parent=23 // pred_check
        %p142 = pneg %p43
      $region26: #{forward.7} parent=23 // pred_check_branch
        %144 = sbr.rel (%p142) target = $region28
      $region27: #{forward.7} parent=23 // pred_region
        %s145 = smul.u32 12, %s17
        %p146 = scmp.lt.s32.totalorder %s16, 3
        %s147 = scalar_select %p146, %s16, 3
        %p148 = scmp.lt.s32.totalorder %s145, 23
        %s149 = scalar_select %p148, %s145, 23
        %s150 = smul.addr %s147, 24
        %s151 = sadd.s32 %s149, %s150
        %s152 = smul.addr %s151, 4
        %s153 = scalar_lea.vmem %s0, %s152
        %s154 = smul.u32 12, %s17
      $region28: #{forward.7} parent=23 // pred_fallthru
        _
    $region24: #{forward.7} parent=5 // pred_fallthru
      _
    %p155 = scmp.le.s32.totalorder 1, %s9
    %p156 = scmp.lt.s32.totalorder %s9, 9
    %p157 = pnand %p155, %p156
    %p158 = pneg %p157
    // Predicated region
    $region29: #{forward.7} parent=5 // pred_check
      _
    $region30: #{forward.7} parent=5 // pred_check_branch
      %160 = sbr.rel (%p157) target = $region32
    $region31: #{forward.7} parent=5 // pred_region
      %s161 = ssub.s32 %s9, 1
      %s162 = smul.u32 12, %s19
      %p163 = scmp.lt.s32.totalorder %s18, 3
      %s164 = scalar_select %p163, %s18, 3
      %p165 = scmp.lt.s32.totalorder %s162, 23
      %s166 = scalar_select %p165, %s162, 23
      %s167 = smul.addr %s164, 24
      %s168 = sadd.s32 %s166, %s167
      %s169 = smul.addr %s168, 4
      %s170 = scalar_lea.vmem %s0, %s169
      %p171 = pneg %p49
      %p172 = pneg %p46
      %p173 = pneg %p70
      %p174 = pneg %p67
      %p175 = pneg %p91
      %p176 = pneg %p88
      %p177 = pneg %p117
      %p178 = pneg %p114
      %p179 = scmp.lt.s32.totalorder %s18, 3
      %s180 = scalar_select %p179, %s18, 3
      %s181 = scalar_lea.vmem %s3, %s180
      %s182 = smul.u32 12, %s19
      %p183 = scmp.lt.s32.totalorder %s18, 3
      %s184 = scalar_select %p183, %s18, 3
      %p185 = scmp.lt.s32.totalorder %s182, 23
      %s186 = scalar_select %p185, %s182, 23
      %s187 = smul.addr %s184, 24
      %s188 = sadd.s32 %s186, %s187
      %s189 = smul.addr %s188, 4
      %s190 = scalar_lea.vmem %s0, %s189
      %s191 = smul.u32 12, %s19
      %p192 = scmp.lt.s32.totalorder %s18, 3
      %s193 = scalar_select %p192, %s18, 3
      %s194 = scalar_lea.vmem %s3, %s193
      %v196 = vld [vmem:[%s190] sm:$0xf]
      %v197 = vld [vmem:[%s190 + $0x4] sm:$0xf]
      %v198 = vld [vmem:[%s190 + $0x8] sm:$0xf]
      %v199 = vld [vmem:[%s190 + $0xc] sm:$0xf]
      %v200 = vld [vmem:[%s190 + $0x10] sm:$0xf]
      %v201 = vld [vmem:[%s190 + $0x14] sm:$0xf]
      %v202 = vld [vmem:[%s190 + $0x18] sm:$0xf]
      %v203 = vld [vmem:[%s190 + $0x1c] sm:$0xf]
      %v204 = vld [vmem:[%s190 + $0x20] sm:$0xf]
      %v205 = vld [vmem:[%s190 + $0x24] sm:$0xf]
      %v206 = vld [vmem:[%s190 + $0x28] sm:$0xf]
      %v207 = vld [vmem:[%s190 + $0x2c] sm:$0xf]
      %v208 = vld [vmem:[%s1] sm:$0xf]
      %v209 = vld [vmem:[%s1 + $0x4] sm:$0xf]
      %v210 = vld [vmem:[%s1 + $0x8] sm:$0xf]
      %v211 = vld [vmem:[%s1 + $0xc] sm:$0xf]
      %v212 = vld [vmem:[%s1 + $0x10] sm:$0xf]
      %v213 = vld [vmem:[%s1 + $0x14] sm:$0xf]
      %v214 = vld [vmem:[%s1 + $0x18] sm:$0xf]
      %v215 = vld [vmem:[%s1 + $0x1c] sm:$0xf]
      %v216 = vld [vmem:[%s1 + $0x20] sm:$0xf]
      %v217 = vld [vmem:[%s1 + $0x24] sm:$0xf]
      %v218 = vld [vmem:[%s1 + $0x28] sm:$0xf]
      %v219 = vld [vmem:[%s1 + $0x2c] sm:$0xf]
      %v232 = vunpack.c.l.b16 %v208
      %v233 = vunpack.c.l.b16 %v209
      %v234 = vunpack.c.l.b16 %v210
      %v235 = vunpack.c.l.b16 %v211
      %v236 = vunpack.c.l.b16 %v212
      %v237 = vunpack.c.l.b16 %v213
      %v238 = vunpack.c.l.b16 %v214
      %v239 = vunpack.c.l.b16 %v215
      %v240 = vunpack.c.l.b16 %v216
      %v241 = vunpack.c.l.b16 %v217
      %v242 = vunpack.c.l.b16 %v218
      %v243 = vunpack.c.l.b16 %v219
      %v244 = vpack.c.b16 %v233, %v232
      %v245 = vpack.c.b16 %v235, %v234
      %v246 = vpack.c.b16 %v237, %v236
      %v247 = vpack.c.b16 %v239, %v238
      %v248 = vpack.c.b16 %v241, %v240
      %v249 = vpack.c.b16 %v243, %v242
      %v262 = vunpack.c.l.b16 %v196
      %v263 = vunpack.c.l.b16 %v197
      %v264 = vunpack.c.l.b16 %v198
      %v265 = vunpack.c.l.b16 %v199
      %v266 = vunpack.c.l.b16 %v200
      %v267 = vunpack.c.l.b16 %v201
      %v268 = vunpack.c.l.b16 %v202
      %v269 = vunpack.c.l.b16 %v203
      %v270 = vunpack.c.l.b16 %v204
      %v271 = vunpack.c.l.b16 %v205
      %v272 = vunpack.c.l.b16 %v206
      %v273 = vunpack.c.l.b16 %v207
      %v274 = vpack.c.b16 %v263, %v262
      %v275 = vpack.c.b16 %v265, %v264
      %v276 = vpack.c.b16 %v267, %v266
      %v277 = vpack.c.b16 %v269, %v268
      %v278 = vpack.c.b16 %v271, %v270
      %v279 = vpack.c.b16 %v273, %v272
      %vm286 = vcmask 785408
      %v288 = vsel %vm286, %v244, 0
      %v291 = vsel %vm286, %v245, 0
      %v294 = vsel %vm286, %v246, 0
      %v297 = vsel %vm286, %v247, 0
      %v300 = vsel %vm286, %v248, 0
      %v303 = vsel %vm286, %v249, 0
      %305 = vmatpush.bf16.msra.mxu0 0
      %306 = vmatpush.bf16.msra.mxu0 0
      %307 = vmatpush.bf16.msra.mxu0 %v279
      %308 = vmatpush.bf16.msra.mxu0 %v278
      %309 = vmatpush.bf16.msra.mxu0 %v277
      %310 = vmatpush.bf16.msra.mxu0 %v276
      %311 = vmatpush.bf16.msra.mxu0 %v275
      %312 = vmatpush.bf16.msra.mxu0 %v274
      %313 = vmatmul.bf16.gmra.mxu0 %v288
      %v314 = vpop.f32.mrf.mxu0
      %v315 = vadd.f32 0.0, %v314
      %v316 = vpop.f32.mrf.mxu0
      %v317 = vadd.f32 0.0, %v316
      %318 = vmatmul.bf16.gmra.mxu0 %v291
      %v319 = vpop.f32.mrf.mxu0
      %v320 = vadd.f32 0.0, %v319
      %v321 = vpop.f32.mrf.mxu0
      %v322 = vadd.f32 0.0, %v321
      %323 = vmatmul.bf16.gmra.mxu0 %v294
      %v324 = vpop.f32.mrf.mxu0
      %v325 = vadd.f32 0.0, %v324
      %v326 = vpop.f32.mrf.mxu0
      %v327 = vadd.f32 0.0, %v326
      %328 = vmatmul.bf16.gmra.mxu0 %v297
      %v329 = vpop.f32.mrf.mxu0
      %v330 = vadd.f32 0.0, %v329
      %v331 = vpop.f32.mrf.mxu0
      %v332 = vadd.f32 0.0, %v331
      %333 = vmatmul.bf16.gmra.mxu0 %v300
      %v334 = vpop.f32.mrf.mxu0
      %v335 = vadd.f32 0.0, %v334
      %v336 = vpop.f32.mrf.mxu0
      %v337 = vadd.f32 0.0, %v336
      %338 = vmatmul.bf16.gmra.mxu0 %v303
      %v339 = vpop.f32.mrf.mxu0
      %v340 = vadd.f32 0.0, %v339
      %v341 = vpop.f32.mrf.mxu0
      %v342 = vadd.f32 0.0, %v341
      %343 = vdwg.mxu0
      %v344 = vpack.c.bf16 %v317, %v315
      %v345 = vpack.c.bf16 %v322, %v320
      %v346 = vpack.c.bf16 %v327, %v325
      %v347 = vpack.c.bf16 %v332, %v330
      %v348 = vpack.c.bf16 %v337, %v335
      %v349 = vpack.c.bf16 %v342, %v340
      %v350 = vld [vmem:[%s2] sm:$0xf]
      %v351 = vld [vmem:[%s2 + $0x4] sm:$0xf]
      %v352 = vld [vmem:[%s2 + $0x8] sm:$0xf]
      %v353 = vld [vmem:[%s2 + $0xc] sm:$0xf]
      %v354 = vld [vmem:[%s2 + $0x10] sm:$0xf]
      %v355 = vld [vmem:[%s2 + $0x14] sm:$0xf]
      %v356 = vld [vmem:[%s2 + $0x18] sm:$0xf]
      %v357 = vld [vmem:[%s2 + $0x1c] sm:$0xf]
      %v366 = vunpack.c.l.b16 %v350
      %v367 = vunpack.c.l.b16 %v351
      %v368 = vunpack.c.l.b16 %v352
      %v369 = vunpack.c.l.b16 %v353
      %v370 = vunpack.c.l.b16 %v354
      %v371 = vunpack.c.l.b16 %v355
      %v372 = vunpack.c.l.b16 %v356
      %v373 = vunpack.c.l.b16 %v357
      %v374 = vpack.c.b16 %v367, %v366
      %v375 = vpack.c.b16 %v369, %v368
      %v376 = vpack.c.b16 %v371, %v370
      %v377 = vpack.c.b16 %v373, %v372
      %vm382 = vcmask 523264
      %v384 = vsel %vm382, %v344, 0
      %v387 = vsel %vm382, %v345, 0
      %v390 = vsel %vm382, %v346, 0
      %v393 = vsel %vm382, %v347, 0
      %v396 = vsel %vm382, %v348, 0
      %v399 = vsel %vm382, %v349, 0
      %401 = vmatpush.bf16.msra.mxu0 0
      %402 = vmatpush.bf16.msra.mxu0 0
      %403 = vmatpush.bf16.msra.mxu0 0
      %404 = vmatpush.bf16.msra.mxu0 0
      %405 = vmatpush.bf16.msra.mxu0 %v377
      %406 = vmatpush.bf16.msra.mxu0 %v376
      %407 = vmatpush.bf16.msra.mxu0 %v375
      %408 = vmatpush.bf16.msra.mxu0 %v374
      %409 = vmatmul.bf16.gmra.mxu0 %v384
      %v410 = vpop.f32.mrf.mxu0
      %v411 = vadd.f32 0.0, %v410
      %v412 = vpop.f32.mrf.mxu0
      %v413 = vadd.f32 0.0, %v412
      %414 = vmatmul.bf16.gmra.mxu0 %v387
      %v415 = vpop.f32.mrf.mxu0
      %v416 = vadd.f32 0.0, %v415
      %v417 = vpop.f32.mrf.mxu0
      %v418 = vadd.f32 0.0, %v417
      %419 = vmatmul.bf16.gmra.mxu0 %v390
      %v420 = vpop.f32.mrf.mxu0
      %v421 = vadd.f32 0.0, %v420
      %v422 = vpop.f32.mrf.mxu0
      %v423 = vadd.f32 0.0, %v422
      %424 = vmatmul.bf16.gmra.mxu0 %v393
      %v425 = vpop.f32.mrf.mxu0
      %v426 = vadd.f32 0.0, %v425
      %v427 = vpop.f32.mrf.mxu0
      %v428 = vadd.f32 0.0, %v427
      %429 = vmatmul.bf16.gmra.mxu0 %v396
      %v430 = vpop.f32.mrf.mxu0
      %v431 = vadd.f32 0.0, %v430
      %v432 = vpop.f32.mrf.mxu0
      %v433 = vadd.f32 0.0, %v432
      %434 = vmatmul.bf16.gmra.mxu0 %v399
      %v435 = vpop.f32.mrf.mxu0
      %v436 = vadd.f32 0.0, %v435
      %v437 = vpop.f32.mrf.mxu0
      %v438 = vadd.f32 0.0, %v437
      %439 = vdwg.mxu0
      %v440 = vmax.f32 %v411, 0.0
      %v441 = vmax.f32 %v413, 0.0
      %v442 = vmax.f32 %v416, 0.0
      %v443 = vmax.f32 %v418, 0.0
      %v444 = vmax.f32 %v421, 0.0
      %v445 = vmax.f32 %v423, 0.0
      %v446 = vmax.f32 %v426, 0.0
      %v447 = vmax.f32 %v428, 0.0
      %v448 = vmax.f32 %v431, 0.0
      %v449 = vmax.f32 %v433, 0.0
      %v450 = vmax.f32 %v436, 0.0
      %v451 = vmax.f32 %v438, 0.0
      %v452 = vadd.f32 %v440, %v441
      %v453 = vadd.f32 %v452, %v442
      %v454 = vadd.f32 %v453, %v443
      %v455 = vadd.f32 %v454, %v444
      %v456 = vadd.f32 %v455, %v445
      %v457 = vadd.f32 %v456, %v446
      %v458 = vadd.f32 %v457, %v447
      %v459 = vadd.f32 %v458, %v448
      %v460 = vadd.f32 %v459, %v449
      %v461 = vadd.f32 %v460, %v450
      %v462 = vadd.f32 %v461, %v451
      %v463 = vrot.slane %v462, 4
      %v464 = vadd.f32 %v462, %v463
      %v465 = vrot.slane %v464, 2
      %v466 = vadd.f32 %v464, %v465
      %v467 = vrot.slane %v466, 1
      %v468 = vadd.f32 %v466, %v467
      %p469 = scmp.eq.s32.totalorder %s19, 0
      // Predicated region
      $region33: #{forward.7} parent=31 // pred_check
        %p470 = pneg %p469
      $region34: #{forward.7} parent=31 // pred_check_branch
        %472 = sbr.rel (%p470) target = $region36
      $region35: #{forward.7} parent=31 // pred_region
        %473 = vst [vmem:[%s194] sm:$0x1] 0.0
      $region36: #{forward.7} parent=31 // pred_fallthru
        _
      %v474 = vld [vmem:[%s194] sm:$0x1]
      %v475 = vadd.f32 %v474, %v468
      %476 = vst [vmem:[%s194] sm:$0x1] %v475
      %p477 = scmp.eq.s32.totalorder %s19, 1
      // Predicated region
      $region37: #{forward.7} parent=31 // pred_check
        %p478 = pneg %p477
      $region38: #{forward.7} parent=31 // pred_check_branch
        %480 = sbr.rel (%p478) target = $region40
      $region39: #{forward.7} parent=31 // pred_region
        %v481 = vld [vmem:[%s194] sm:$0x1]
        %v482 = vmul.f32 %v481, 0.0069444445
        %483 = vst [vmem:[%s194] sm:$0x1] %v482
      $region40: #{forward.7} parent=31 // pred_fallthru
        _
      %p484 = scmp.lt.s32.totalorder %s18, 3
      %s485 = scalar_select %p484, %s18, 3
      %s486 = scalar_lea.vmem %s3, %s485
      // Predicated region
      $region41: #{forward.7} parent=31 // pred_check
        %p487 = pneg %p114
      $region42: #{forward.7} parent=31 // pred_check_branch
        %489 = sbr.rel (%p487) target = $region44
      $region43: #{forward.7} parent=31 // pred_region
        _
      $region44: #{forward.7} parent=31 // pred_fallthru
        _
    $region32: #{forward.7} parent=5 // pred_fallthru
      _
    %p490 = scmp.le.s32.totalorder 2, %s9
    // Predicated region
    $region45: #{forward.7} parent=5 // pred_check
      %p491 = pneg %p490
    $region46: #{forward.7} parent=5 // pred_check_branch
      %493 = sbr.rel (%p491) target = $region48
    $region47: #{forward.7} parent=5 // pred_region
      %s494 = ssub.s32 %s9, 2
      // Predicated region
      $region49: #{forward.7} parent=47 // pred_check
        %p495 = pneg %p120
      $region50: #{forward.7} parent=47 // pred_check_branch
        %497 = sbr.rel (%p495) target = $region52
      $region51: #{forward.7} parent=47 // pred_region
        %p498 = scmp.lt.s32.totalorder %s20, 3
        %s499 = scalar_select %p498, %s20, 3
        %s500 = scalar_lea.vmem %s3, %s499
      $region52: #{forward.7} parent=47 // pred_fallthru
        _
    $region48: #{forward.7} parent=5 // pred_fallthru
      _
  $region6: #{forward.7} parent=0 // loop_footer
    %s13 = sadd.s32 1, %s9
  $region7: #{forward.7} parent=0 // loop_footer_branch
    %8 = sbr.rel target = $region3
  $region8: #{forward.7} parent=0 // loop_exit
    _

// kernel: forward.4
$region0: #{forward.4}
  #allocation0 [shape = 'u32[]', space=smem, size = 0x4, offset = 0x4, fixed_abs, tag = 'smem constant byte address 0x4 - core index']
  #allocation1 [shape = 'u32[72,128]{1,0:T(1,128)}', space=vmem, size = 0x9000, scoped, tag = 'internal scratch']
  %s0 = inlined_call_operand.vmem [shape: bf16[4,800,8], index: 0, kind: input, shape index: {}]
  %s1 = inlined_call_operand.vmem [shape: bf16[8,64], index: 1, kind: input, shape index: {}]
  %s2 = inlined_call_operand.vmem [shape: bf16[400,400], index: 2, kind: input, shape index: {}]
  %s3 = inlined_call_operand.vmem [shape: bf16[176,400], index: 3, kind: input, shape index: {}]
  %s4 = inlined_call_operand.vmem [shape: bf16[96,176], index: 4, kind: input, shape index: {}]
  %s5 = inlined_call_operand.vmem [shape: bf16[4,800,64], index: 5, kind: output, shape index: {0}]
  %s6 = inlined_call_operand.vmem [shape: bf16[4,352,64], index: 6, kind: output, shape index: {1}]
  %s7 = inlined_call_operand.vmem [shape: bf16[4,192,64], index: 7, kind: output, shape index: {2}]
  %8 = xla_tuple %s5, %s6, %s7
  %s9 = sld [smem:[#allocation0]]
  $region69: #{forward.4} parent=0
    _
  %s11 = ssub.s32 1, %s9
  %s12 = scalar_select 0, %s11, %s9
  loop: start=0, step=1, limit=10
  $region2: #{forward.4} parent=0 // loop_pre_header
    _
  $region3: #{forward.4} parent=0 // loop_header
    %s14 = sphi 0, %s18
    %p15 = scmp.ge.s32.totalorder %s14, 10
    %s21 = sphi 0, %s33
    %s22 = sphi 0, %s29
    %s23 = sphi 0, %s21
    %s24 = sphi 0, %s22
    %s25 = sphi 0, %s23
    %s26 = sphi 0, %s24
    %s38 = sphi 0, %s40
    %s41 = sphi 0, %s38
    %s42 = sphi 0, %s41
    %s58 = sphi 0, %s42
    %s62 = sphi 0, %s62
    %s64 = sphi 0, %s62
    %s65 = sphi 0, %s64
    %s79 = sphi 0, %s65
    %s83 = sphi 0, %s83
    %s85 = sphi 0, %s83
    %s86 = sphi 0, %s85
    %s100 = sphi 0, %s86
    %s104 = sphi 0, %s104
    %s106 = sphi 0, %s104
    %s107 = sphi 0, %s106
    %s121 = sphi 0, %s107
    %s125 = sphi 0, %s125
    %s127 = sphi 0, %s125
    %s128 = sphi 0, %s127
    %s142 = sphi 0, %s128
    %s150 = sphi 0, %s152
    %s153 = sphi 0, %s150
    %s154 = sphi 0, %s153
    %s170 = sphi 0, %s154
    %s178 = sphi 0, %s180
    %s181 = sphi 0, %s178
    %s182 = sphi 0, %s181
    %s198 = sphi 0, %s182
    %s206 = sphi 0, %s208
    %s209 = sphi 0, %s206
    %s210 = sphi 0, %s209
    %s226 = sphi 0, %s210
  $region4: #{forward.4} parent=0 // loop_header_branch
    %17 = sbr.rel (%p15) target = $region8
  $region5: #{forward.4} parent=0 // loop_body
    %s19 = ssub.s32 %s14, 1
    %s20 = ssub.s32 %s14, 2
    %s27 = sadd.s32 1, %s22
    %p28 = scmp.ge.s32.totalorder %s27, 2
    %s29 = scalar_select %p28, 0, %s27
    %s30 = sadd.s32 1, %s21
    %s31 = scalar_select %p28, %s30, %s21
    %p32 = scmp.ge.s32.totalorder %s31, 4
    %s33 = scalar_select %p32, 0, %s31
    %s34 = ssub.s32 %s21, %s33
    %s35 = ssub.s32 %s22, %s29
    %s36 = sor.u32 %s34, %s35
    %p37 = scmp.eq.s32.totalorder %s36, 0
    %s39 = sadd.s32 %s38, 1
    %s40 = scalar_select %p37, %s38, %s39
    %p43 = pneg %p37
    %p44 = scmp.eq.s32.totalorder %s14, 7
    %p45 = por %p43, %p44
    %p46 = scmp.ne.s32.totalorder %s38, %s41
    %p47 = scmp.eq.s32.totalorder %s14, 0
    %p48 = por %p46, %p47
    %p49 = scmp.ne.s32.totalorder %s38, %s41
    %p50 = scmp.eq.s32.totalorder %s19, 7
    %p51 = por %p49, %p50
    %p52 = scmp.ne.s32.totalorder %s41, %s42
    %p53 = scmp.eq.s32.totalorder %s19, 0
    %p54 = por %p52, %p53
    %p55 = scmp.ne.s32.totalorder %s41, %s42
    %p56 = scmp.eq.s32.totalorder %s20, 7
    %p57 = por %p55, %p56
    %p59 = scmp.ne.s32.totalorder %s42, %s58
    %p60 = scmp.eq.s32.totalorder %s20, 0
    %p61 = por %p59, %p60
    %s63 = sadd.s32 %s62, 1
    %p66 = scmp.eq.s32.totalorder %s14, 7
    %p67 = scmp.ne.s32.totalorder %s62, %s64
    %p68 = scmp.eq.s32.totalorder %s14, 0
    %p69 = por %p67, %p68
    %p70 = scmp.ne.s32.totalorder %s62, %s64
    %p71 = scmp.eq.s32.totalorder %s19, 7
    %p72 = por %p70, %p71
    %p73 = scmp.ne.s32.totalorder %s64, %s65
    %p74 = scmp.eq.s32.totalorder %s19, 0
    %p75 = por %p73, %p74
    %p76 = scmp.ne.s32.totalorder %s64, %s65
    %p77 = scmp.eq.s32.totalorder %s20, 7
    %p78 = por %p76, %p77
    %p80 = scmp.ne.s32.totalorder %s65, %s79
    %p81 = scmp.eq.s32.totalorder %s20, 0
    %p82 = por %p80, %p81
    %s84 = sadd.s32 %s83, 1
    %p87 = scmp.eq.s32.totalorder %s14, 7
    %p88 = scmp.ne.s32.totalorder %s83, %s85
    %p89 = scmp.eq.s32.totalorder %s14, 0
    %p90 = por %p88, %p89
    %p91 = scmp.ne.s32.totalorder %s83, %s85
    %p92 = scmp.eq.s32.totalorder %s19, 7
    %p93 = por %p91, %p92
    %p94 = scmp.ne.s32.totalorder %s85, %s86
    %p95 = scmp.eq.s32.totalorder %s19, 0
    %p96 = por %p94, %p95
    %p97 = scmp.ne.s32.totalorder %s85, %s86
    %p98 = scmp.eq.s32.totalorder %s20, 7
    %p99 = por %p97, %p98
    %p101 = scmp.ne.s32.totalorder %s86, %s100
    %p102 = scmp.eq.s32.totalorder %s20, 0
    %p103 = por %p101, %p102
    %s105 = sadd.s32 %s104, 1
    %p108 = scmp.eq.s32.totalorder %s14, 7
    %p109 = scmp.ne.s32.totalorder %s104, %s106
    %p110 = scmp.eq.s32.totalorder %s14, 0
    %p111 = por %p109, %p110
    %p112 = scmp.ne.s32.totalorder %s104, %s106
    %p113 = scmp.eq.s32.totalorder %s19, 7
    %p114 = por %p112, %p113
    %p115 = scmp.ne.s32.totalorder %s106, %s107
    %p116 = scmp.eq.s32.totalorder %s19, 0
    %p117 = por %p115, %p116
    %p118 = scmp.ne.s32.totalorder %s106, %s107
    %p119 = scmp.eq.s32.totalorder %s20, 7
    %p120 = por %p118, %p119
    %p122 = scmp.ne.s32.totalorder %s107, %s121
    %p123 = scmp.eq.s32.totalorder %s20, 0
    %p124 = por %p122, %p123
    %s126 = sadd.s32 %s125, 1
    %p129 = scmp.eq.s32.totalorder %s14, 7
    %p130 = scmp.ne.s32.totalorder %s125, %s127
    %p131 = scmp.eq.s32.totalorder %s14, 0
    %p132 = por %p130, %p131
    %p133 = scmp.ne.s32.totalorder %s125, %s127
    %p134 = scmp.eq.s32.totalorder %s19, 7
    %p135 = por %p133, %p134
    %p136 = scmp.ne.s32.totalorder %s127, %s128
    %p137 = scmp.eq.s32.totalorder %s19, 0
    %p138 = por %p136, %p137
    %p139 = scmp.ne.s32.totalorder %s127, %s128
    %p140 = scmp.eq.s32.totalorder %s20, 7
    %p141 = por %p139, %p140
    %p143 = scmp.ne.s32.totalorder %s128, %s142
    %p144 = scmp.eq.s32.totalorder %s20, 0
    %p145 = por %p143, %p144
    %s146 = ssub.s32 %s21, %s33
    %s147 = ssub.s32 %s22, %s29
    %s148 = sor.u32 %s146, %s147
    %p149 = scmp.eq.s32.totalorder %s148, 0
    %s151 = sadd.s32 %s150, 1
    %s152 = scalar_select %p149, %s150, %s151
    %p155 = pneg %p149
    %p156 = scmp.eq.s32.totalorder %s14, 7
    %p157 = por %p155, %p156
    %p158 = scmp.ne.s32.totalorder %s150, %s153
    %p159 = scmp.eq.s32.totalorder %s14, 0
    %p160 = por %p158, %p159
    %p161 = scmp.ne.s32.totalorder %s150, %s153
    %p162 = scmp.eq.s32.totalorder %s19, 7
    %p163 = por %p161, %p162
    %p164 = scmp.ne.s32.totalorder %s153, %s154
    %p165 = scmp.eq.s32.totalorder %s19, 0
    %p166 = por %p164, %p165
    %p167 = scmp.ne.s32.totalorder %s153, %s154
    %p168 = scmp.eq.s32.totalorder %s20, 7
    %p169 = por %p167, %p168
    %p171 = scmp.ne.s32.totalorder %s154, %s170
    %p172 = scmp.eq.s32.totalorder %s20, 0
    %p173 = por %p171, %p172
    %s174 = ssub.s32 %s21, %s33
    %s175 = ssub.s32 %s22, %s29
    %s176 = sor.u32 %s174, %s175
    %p177 = scmp.eq.s32.totalorder %s176, 0
    %s179 = sadd.s32 %s178, 1
    %s180 = scalar_select %p177, %s178, %s179
    %p183 = pneg %p177
    %p184 = scmp.eq.s32.totalorder %s14, 7
    %p185 = por %p183, %p184
    %p186 = scmp.ne.s32.totalorder %s178, %s181
    %p187 = scmp.eq.s32.totalorder %s14, 0
    %p188 = por %p186, %p187
    %p189 = scmp.ne.s32.totalorder %s178, %s181
    %p190 = scmp.eq.s32.totalorder %s19, 7
    %p191 = por %p189, %p190
    %p192 = scmp.ne.s32.totalorder %s181, %s182
    %p193 = scmp.eq.s32.totalorder %s19, 0
    %p194 = por %p192, %p193
    %p195 = scmp.ne.s32.totalorder %s181, %s182
    %p196 = scmp.eq.s32.totalorder %s20, 7
    %p197 = por %p195, %p196
    %p199 = scmp.ne.s32.totalorder %s182, %s198
    %p200 = scmp.eq.s32.totalorder %s20, 0
    %p201 = por %p199, %p200
    %s202 = ssub.s32 %s21, %s33
    %s203 = ssub.s32 %s22, %s29
    %s204 = sor.u32 %s202, %s203
    %p205 = scmp.eq.s32.totalorder %s204, 0
    %s207 = sadd.s32 %s206, 1
    %s208 = scalar_select %p205, %s206, %s207
    %p211 = pneg %p205
    %p212 = scmp.eq.s32.totalorder %s14, 7
    %p213 = por %p211, %p212
    %p214 = scmp.ne.s32.totalorder %s206, %s209
    %p215 = scmp.eq.s32.totalorder %s14, 0
    %p216 = por %p214, %p215
    %p217 = scmp.ne.s32.totalorder %s206, %s209
    %p218 = scmp.eq.s32.totalorder %s19, 7
    %p219 = por %p217, %p218
    %p220 = scmp.ne.s32.totalorder %s209, %s210
    %p221 = scmp.eq.s32.totalorder %s19, 0
    %p222 = por %p220, %p221
    %p223 = scmp.ne.s32.totalorder %s209, %s210
    %p224 = scmp.eq.s32.totalorder %s20, 7
    %p225 = por %p223, %p224
    %p227 = scmp.ne.s32.totalorder %s210, %s226
    %p228 = scmp.eq.s32.totalorder %s20, 0
    %p229 = por %p227, %p228
    %p230 = scmp.le.s32.totalorder 1, %s14
    %p231 = scmp.lt.s32.totalorder %s14, 9
    %p232 = pnand %p230, %p231
    %p233 = pneg %p232
    // Predicated region
    $region9: #{forward.4} parent=5 // pred_check
      _
    $region10: #{forward.4} parent=5 // pred_check_branch
      %235 = sbr.rel (%p232) target = $region12
    $region11: #{forward.4} parent=5 // pred_region
      %s236 = ssub.s32 %s14, 1
      // Predicated region
      $region13: #{forward.4} parent=11 // pred_check
        %p237 = pneg %p75
      $region14: #{forward.4} parent=11 // pred_check_branch
        %239 = sbr.rel (%p237) target = $region16
      $region15: #{forward.4} parent=11 // pred_region
        _
      $region16: #{forward.4} parent=11 // pred_fallthru
        _
      // Predicated region
      $region17: #{forward.4} parent=11 // pred_check
        %p240 = pneg %p96
      $region18: #{forward.4} parent=11 // pred_check_branch
        %242 = sbr.rel (%p240) target = $region20
      $region19: #{forward.4} parent=11 // pred_region
        _
      $region20: #{forward.4} parent=11 // pred_fallthru
        _
      // Predicated region
      $region21: #{forward.4} parent=11 // pred_check
        %p243 = pneg %p117
      $region22: #{forward.4} parent=11 // pred_check_branch
        %245 = sbr.rel (%p243) target = $region24
      $region23: #{forward.4} parent=11 // pred_region
        _
      $region24: #{forward.4} parent=11 // pred_fallthru
        _
      // Predicated region
      $region25: #{forward.4} parent=11 // pred_check
        %p246 = pneg %p138
      $region26: #{forward.4} parent=11 // pred_check_branch
        %248 = sbr.rel (%p246) target = $region28
      $region27: #{forward.4} parent=11 // pred_region
        _
      $region28: #{forward.4} parent=11 // pred_fallthru
        _
    $region12: #{forward.4} parent=5 // pred_fallthru
      _
    %p249 = scmp.lt.s32.totalorder %s14, 8
    // Predicated region
    $region29: #{forward.4} parent=5 // pred_check
      %p250 = pneg %p249
    $region30: #{forward.4} parent=5 // pred_check_branch
      %252 = sbr.rel (%p250) target = $region32
    $region31: #{forward.4} parent=5 // pred_region
      // Predicated region
      $region33: #{forward.4} parent=31 // pred_check
        %p253 = pneg %p48
      $region34: #{forward.4} parent=31 // pred_check_branch
        %255 = sbr.rel (%p253) target = $region36
      $region35: #{forward.4} parent=31 // pred_region
        %s256 = smul.u32 50, %s22
        %p257 = scmp.lt.s32.totalorder %s21, 3
        %s258 = scalar_select %p257, %s21, 3
        %p259 = scmp.lt.s32.totalorder %s256, 99
        %s260 = scalar_select %p259, %s256, 99
        %s261 = smul.addr %s258, 100
        %s262 = sadd.s32 %s260, %s261
        %s263 = smul.addr %s262, 4
        %s264 = scalar_lea.vmem %s0, %s263
        %s265 = smul.u32 50, %s22
      $region36: #{forward.4} parent=31 // pred_fallthru
        _
    $region32: #{forward.4} parent=5 // pred_fallthru
      _
    %p266 = scmp.le.s32.totalorder 1, %s14
    %p267 = scmp.lt.s32.totalorder %s14, 9
    %p268 = pnand %p266, %p267
    %p269 = pneg %p268
    // Predicated region
    $region37: #{forward.4} parent=5 // pred_check
      _
    $region38: #{forward.4} parent=5 // pred_check_branch
      %271 = sbr.rel (%p268) target = $region40
    $region39: #{forward.4} parent=5 // pred_region
      %s272 = ssub.s32 %s14, 1
      %s273 = smul.u32 50, %s24
      %p274 = scmp.lt.s32.totalorder %s23, 3
      %s275 = scalar_select %p274, %s23, 3
      %p276 = scmp.lt.s32.totalorder %s273, 99
      %s277 = scalar_select %p276, %s273, 99
      %s278 = smul.addr %s275, 100
      %s279 = sadd.s32 %s277, %s278
      %s280 = smul.addr %s279, 4
      %s281 = scalar_lea.vmem %s0, %s280
      %p282 = pneg %p54
      %p283 = pneg %p51
      %p284 = pneg %p75
      %p285 = pneg %p72
      %p286 = pneg %p96
      %p287 = pneg %p93
      %p288 = pneg %p117
      %p289 = pneg %p114
      %p290 = pneg %p138
      %p291 = pneg %p135
      %p292 = pneg %p166
      %p293 = pneg %p163
      %s294 = smul.u32 50, %s24
      %p295 = scmp.lt.s32.totalorder %s23, 3
      %s296 = scalar_select %p295, %s23, 3
      %p297 = scmp.lt.s32.totalorder %s294, 99
      %s298 = scalar_select %p297, %s294, 99
      %s299 = smul.addr %s296, 100
      %s300 = sadd.s32 %s298, %s299
      %s301 = smul.addr %s300, 4
      %s302 = scalar_lea.vmem %s5, %s301
      %p303 = pneg %p194
      %p304 = pneg %p191
      %s305 = smul.u32 22, %s24
      %p306 = scmp.lt.s32.totalorder %s23, 3
      %s307 = scalar_select %p306, %s23, 3
      %p308 = scmp.lt.s32.totalorder %s305, 43
      %s309 = scalar_select %p308, %s305, 43
      %s310 = smul.addr %s307, 44
      %s311 = sadd.s32 %s309, %s310
      %s312 = smul.addr %s311, 4
      %s313 = scalar_lea.vmem %s6, %s312
      %p314 = pneg %p222
      %p315 = pneg %p219
      %s316 = smul.u32 12, %s24
      %p317 = scmp.lt.s32.totalorder %s23, 3
      %s318 = scalar_select %p317, %s23, 3
      %p319 = scmp.lt.s32.totalorder %s316, 23
      %s320 = scalar_select %p319, %s316, 23
      %s321 = smul.addr %s318, 24
      %s322 = sadd.s32 %s320, %s321
      %s323 = smul.addr %s322, 4
      %s324 = scalar_lea.vmem %s7, %s323
      %s325 = smul.u32 50, %s24
      %p326 = scmp.lt.s32.totalorder %s23, 3
      %s327 = scalar_select %p326, %s23, 3
      %p328 = scmp.lt.s32.totalorder %s325, 99
      %s329 = scalar_select %p328, %s325, 99
      %s330 = smul.addr %s327, 100
      %s331 = sadd.s32 %s329, %s330
      %s332 = smul.addr %s331, 4
      %s333 = scalar_lea.vmem %s0, %s332
      %s334 = smul.u32 50, %s24
      %s335 = smul.u32 50, %s24
      %p336 = scmp.lt.s32.totalorder %s23, 3
      %s337 = scalar_select %p336, %s23, 3
      %p338 = scmp.lt.s32.totalorder %s335, 99
      %s339 = scalar_select %p338, %s335, 99
      %s340 = smul.addr %s337, 100
      %s341 = sadd.s32 %s339, %s340
      %s342 = smul.addr %s341, 4
      %s343 = scalar_lea.vmem %s5, %s342
      %s344 = smul.u32 50, %s24
      %s345 = smul.u32 22, %s24
      %p346 = scmp.lt.s32.totalorder %s23, 3
      %s347 = scalar_select %p346, %s23, 3
      %p348 = scmp.lt.s32.totalorder %s345, 43
      %s349 = scalar_select %p348, %s345, 43
      %s350 = smul.addr %s347, 44
      %s351 = sadd.s32 %s349, %s350
      %s352 = smul.addr %s351, 4
      %s353 = scalar_lea.vmem %s6, %s352
      %s354 = smul.u32 22, %s24
      %s355 = smul.u32 12, %s24
      %p356 = scmp.lt.s32.totalorder %s23, 3
      %s357 = scalar_select %p356, %s23, 3
      %p358 = scmp.lt.s32.totalorder %s355, 23
      %s359 = scalar_select %p358, %s355, 23
      %s360 = smul.addr %s357, 24
      %s361 = sadd.s32 %s359, %s360
      %s362 = smul.addr %s361, 4
      %s363 = scalar_lea.vmem %s7, %s362
      %s364 = smul.u32 12, %s24
      %v366 = vld [vmem:[%s333] sm:$0xf]
      %v367 = vld [vmem:[%s333 + $0x4] sm:$0xf]
      %v368 = vld [vmem:[%s333 + $0x8] sm:$0xf]
      %v369 = vld [vmem:[%s333 + $0xc] sm:$0xf]
      %v370 = vld [vmem:[%s333 + $0x10] sm:$0xf]
      %v371 = vld [vmem:[%s333 + $0x14] sm:$0xf]
      %v372 = vld [vmem:[%s333 + $0x18] sm:$0xf]
      %v373 = vld [vmem:[%s333 + $0x1c] sm:$0xf]
      %v374 = vld [vmem:[%s333 + $0x20] sm:$0xf]
      %v375 = vld [vmem:[%s333 + $0x24] sm:$0xf]
      %v376 = vld [vmem:[%s333 + $0x28] sm:$0xf]
      %v377 = vld [vmem:[%s333 + $0x2c] sm:$0xf]
      %v378 = vld [vmem:[%s333 + $0x30] sm:$0xf]
      %v379 = vld [vmem:[%s333 + $0x34] sm:$0xf]
      %v380 = vld [vmem:[%s333 + $0x38] sm:$0xf]
      %v381 = vld [vmem:[%s333 + $0x3c] sm:$0xf]
      %v382 = vld [vmem:[%s333 + $0x40] sm:$0xf]
      %v383 = vld [vmem:[%s333 + $0x44] sm:$0xf]
      %v384 = vld [vmem:[%s333 + $0x48] sm:$0xf]
      %v385 = vld [vmem:[%s333 + $0x4c] sm:$0xf]
      %v386 = vld [vmem:[%s333 + $0x50] sm:$0xf]
      %v387 = vld [vmem:[%s333 + $0x54] sm:$0xf]
      %v388 = vld [vmem:[%s333 + $0x58] sm:$0xf]
      %v389 = vld [vmem:[%s333 + $0x5c] sm:$0xf]
      %v390 = vld [vmem:[%s333 + $0x60] sm:$0xf]
      %v391 = vld [vmem:[%s333 + $0x64] sm:$0xf]
      %v392 = vld [vmem:[%s333 + $0x68] sm:$0xf]
      %v393 = vld [vmem:[%s333 + $0x6c] sm:$0xf]
      %v394 = vld [vmem:[%s333 + $0x70] sm:$0xf]
      %v395 = vld [vmem:[%s333 + $0x74] sm:$0xf]
      %v396 = vld [vmem:[%s333 + $0x78] sm:$0xf]
      %v397 = vld [vmem:[%s333 + $0x7c] sm:$0xf]
      %v398 = vld [vmem:[%s333 + $0x80] sm:$0xf]
      %v399 = vld [vmem:[%s333 + $0x84] sm:$0xf]
      %v400 = vld [vmem:[%s333 + $0x88] sm:$0xf]
      %v401 = vld [vmem:[%s333 + $0x8c] sm:$0xf]
      %v402 = vld [vmem:[%s333 + $0x90] sm:$0xf]
      %v403 = vld [vmem:[%s333 + $0x94] sm:$0xf]
      %v404 = vld [vmem:[%s333 + $0x98] sm:$0xf]
      %v405 = vld [vmem:[%s333 + $0x9c] sm:$0xf]
      %v406 = vld [vmem:[%s333 + $0xa0] sm:$0xf]
      %v407 = vld [vmem:[%s333 + $0xa4] sm:$0xf]
      %v408 = vld [vmem:[%s333 + $0xa8] sm:$0xf]
      %v409 = vld [vmem:[%s333 + $0xac] sm:$0xf]
      %v410 = vld [vmem:[%s333 + $0xb0] sm:$0xf]
      %v411 = vld [vmem:[%s333 + $0xb4] sm:$0xf]
      %v412 = vld [vmem:[%s333 + $0xb8] sm:$0xf]
      %v413 = vld [vmem:[%s333 + $0xbc] sm:$0xf]
      %v414 = vld [vmem:[%s333 + $0xc0] sm:$0xf]
      %v415 = vld [vmem:[%s333 + $0xc4] sm:$0xf]
      %v416 = vld [vmem:[%s1] sm:$0xf]
      %v467 = vunpack.c.l.b16 %v366
      %v468 = vunpack.c.l.b16 %v367
      %v469 = vunpack.c.l.b16 %v368
      %v470 = vunpack.c.l.b16 %v369
      %v471 = vunpack.c.l.b16 %v370
      %v472 = vunpack.c.l.b16 %v371
      %v473 = vunpack.c.l.b16 %v372
      %v474 = vunpack.c.l.b16 %v373
      %v475 = vunpack.c.l.b16 %v374
      %v476 = vunpack.c.l.b16 %v375
      %v477 = vunpack.c.l.b16 %v376
      %v478 = vunpack.c.l.b16 %v377
      %v479 = vunpack.c.l.b16 %v378
      %v480 = vunpack.c.l.b16 %v379
      %v481 = vunpack.c.l.b16 %v380
      %v482 = vunpack.c.l.b16 %v381
      %v483 = vunpack.c.l.b16 %v382
      %v484 = vunpack.c.l.b16 %v383
      %v485 = vunpack.c.l.b16 %v384
      %v486 = vunpack.c.l.b16 %v385
      %v487 = vunpack.c.l.b16 %v386
      %v488 = vunpack.c.l.b16 %v387
      %v489 = vunpack.c.l.b16 %v388
      %v490 = vunpack.c.l.b16 %v389
      %v491 = vunpack.c.l.b16 %v390
      %v492 = vunpack.c.l.b16 %v391
      %v493 = vunpack.c.l.b16 %v392
      %v494 = vunpack.c.l.b16 %v393
      %v495 = vunpack.c.l.b16 %v394
      %v496 = vunpack.c.l.b16 %v395
      %v497 = vunpack.c.l.b16 %v396
      %v498 = vunpack.c.l.b16 %v397
      %v499 = vunpack.c.l.b16 %v398
      %v500 = vunpack.c.l.b16 %v399
      %v501 = vunpack.c.l.b16 %v400
      %v502 = vunpack.c.l.b16 %v401
      %v503 = vunpack.c.l.b16 %v402
      %v504 = vunpack.c.l.b16 %v403
      %v505 = vunpack.c.l.b16 %v404
      %v506 = vunpack.c.l.b16 %v405
      %v507 = vunpack.c.l.b16 %v406
      %v508 = vunpack.c.l.b16 %v407
      %v509 = vunpack.c.l.b16 %v408
      %v510 = vunpack.c.l.b16 %v409
      %v511 = vunpack.c.l.b16 %v410
      %v512 = vunpack.c.l.b16 %v411
      %v513 = vunpack.c.l.b16 %v412
      %v514 = vunpack.c.l.b16 %v413
      %v515 = vunpack.c.l.b16 %v414
      %v516 = vunpack.c.l.b16 %v415
      %v517 = vpack.c.b16 %v468, %v467
      %v518 = vpack.c.b16 %v470, %v469
      %v519 = vpack.c.b16 %v472, %v471
      %v520 = vpack.c.b16 %v474, %v473
      %v521 = vpack.c.b16 %v476, %v475
      %v522 = vpack.c.b16 %v478, %v477
      %v523 = vpack.c.b16 %v480, %v479
      %v524 = vpack.c.b16 %v482, %v481
      %v525 = vpack.c.b16 %v484, %v483
      %v526 = vpack.c.b16 %v486, %v485
      %v527 = vpack.c.b16 %v488, %v487
      %v528 = vpack.c.b16 %v490, %v489
      %v529 = vpack.c.b16 %v492, %v491
      %v530 = vpack.c.b16 %v494, %v493
      %v531 = vpack.c.b16 %v496, %v495
      %v532 = vpack.c.b16 %v498, %v497
      %v533 = vpack.c.b16 %v500, %v499
      %v534 = vpack.c.b16 %v502, %v501
      %v535 = vpack.c.b16 %v504, %v503
      %v536 = vpack.c.b16 %v506, %v505
      %v537 = vpack.c.b16 %v508, %v507
      %v538 = vpack.c.b16 %v510, %v509
      %v539 = vpack.c.b16 %v512, %v511
      %v540 = vpack.c.b16 %v514, %v513
      %v541 = vpack.c.b16 %v516, %v515
      %vm542 = vcmask 64512
      %v544 = vsel %vm542, %v517, 0
      %v547 = vsel %vm542, %v518, 0
      %v550 = vsel %vm542, %v519, 0
      %v553 = vsel %vm542, %v520, 0
      %v556 = vsel %vm542, %v521, 0
      %v559 = vsel %vm542, %v522, 0
      %v562 = vsel %vm542, %v523, 0
      %v565 = vsel %vm542, %v524, 0
      %v568 = vsel %vm542, %v525, 0
      %v571 = vsel %vm542, %v526, 0
      %v574 = vsel %vm542, %v527, 0
      %v577 = vsel %vm542, %v528, 0
      %v580 = vsel %vm542, %v529, 0
      %v583 = vsel %vm542, %v530, 0
      %v586 = vsel %vm542, %v531, 0
      %v589 = vsel %vm542, %v532, 0
      %v592 = vsel %vm542, %v533, 0
      %v595 = vsel %vm542, %v534, 0
      %v598 = vsel %vm542, %v535, 0
      %v601 = vsel %vm542, %v536, 0
      %v604 = vsel %vm542, %v537, 0
      %v607 = vsel %vm542, %v538, 0
      %v610 = vsel %vm542, %v539, 0
      %v613 = vsel %vm542, %v540, 0
      %v616 = vsel %vm542, %v541, 0
      %vm618 = vcmask 1043456
      %v620 = vsel %vm618, %v416, 0
      %622 = vmatpush.bf16.msra.mxu0 0
      %623 = vmatpush.bf16.msra.mxu0 0
      %624 = vmatpush.bf16.msra.mxu0 0
      %625 = vmatpush.bf16.msra.mxu0 0
      %626 = vmatpush.bf16.msra.mxu0 0
      %627 = vmatpush.bf16.msra.mxu0 0
      %628 = vmatpush.bf16.msra.mxu0 0
      %629 = vmatpush.bf16.msra.mxu0 %v620
      %630 = vmatmul.bf16.gmra.mxu0 %v544
      %v631 = vpop.f32.mrf.mxu0
      %v632 = vadd.f32 0.0, %v631
      %v633 = vpop.f32.mrf.mxu0
      %v634 = vadd.f32 0.0, %v633
      %635 = vmatmul.bf16.gmra.mxu0 %v547
      %v636 = vpop.f32.mrf.mxu0
      %v637 = vadd.f32 0.0, %v636
      %v638 = vpop.f32.mrf.mxu0
      %v639 = vadd.f32 0.0, %v638
      %640 = vmatmul.bf16.gmra.mxu0 %v550
      %v641 = vpop.f32.mrf.mxu0
      %v642 = vadd.f32 0.0, %v641
      %v643 = vpop.f32.mrf.mxu0
      %v644 = vadd.f32 0.0, %v643
      %645 = vmatmul.bf16.gmra.mxu0 %v553
      %v646 = vpop.f32.mrf.mxu0
      %v647 = vadd.f32 0.0, %v646
      %v648 = vpop.f32.mrf.mxu0
      %v649 = vadd.f32 0.0, %v648
      %650 = vmatmul.bf16.gmra.mxu0 %v556
      %v651 = vpop.f32.mrf.mxu0
      %v652 = vadd.f32 0.0, %v651
      %v653 = vpop.f32.mrf.mxu0
      %v654 = vadd.f32 0.0, %v653
      %655 = vmatmul.bf16.gmra.mxu0 %v559
      %v656 = vpop.f32.mrf.mxu0
      %v657 = vadd.f32 0.0, %v656
      %v658 = vpop.f32.mrf.mxu0
      %v659 = vadd.f32 0.0, %v658
      %660 = vmatmul.bf16.gmra.mxu0 %v562
      %v661 = vpop.f32.mrf.mxu0
      %v662 = vadd.f32 0.0, %v661
      %v663 = vpop.f32.mrf.mxu0
      %v664 = vadd.f32 0.0, %v663
      %665 = vmatmul.bf16.gmra.mxu0 %v565
      %v666 = vpop.f32.mrf.mxu0
      %v667 = vadd.f32 0.0, %v666
      %v668 = vpop.f32.mrf.mxu0
      %v669 = vadd.f32 0.0, %v668
      %670 = vmatmul.bf16.gmra.mxu0 %v568
      %v671 = vpop.f32.mrf.mxu0
      %v672 = vadd.f32 0.0, %v671
      %v673 = vpop.f32.mrf.mxu0
      %v674 = vadd.f32 0.0, %v673
      %675 = vmatmul.bf16.gmra.mxu0 %v571
      %v676 = vpop.f32.mrf.mxu0
      %v677 = vadd.f32 0.0, %v676
      %v678 = vpop.f32.mrf.mxu0
      %v679 = vadd.f32 0.0, %v678
      %680 = vmatmul.bf16.gmra.mxu0 %v574
      %v681 = vpop.f32.mrf.mxu0
      %v682 = vadd.f32 0.0, %v681
      %v683 = vpop.f32.mrf.mxu0
      %v684 = vadd.f32 0.0, %v683
      %685 = vmatmul.bf16.gmra.mxu0 %v577
      %v686 = vpop.f32.mrf.mxu0
      %v687 = vadd.f32 0.0, %v686
      %v688 = vpop.f32.mrf.mxu0
      %v689 = vadd.f32 0.0, %v688
      %690 = vmatmul.bf16.gmra.mxu0 %v580
      %v691 = vpop.f32.mrf.mxu0
      %v692 = vadd.f32 0.0, %v691
      %v693 = vpop.f32.mrf.mxu0
      %v694 = vadd.f32 0.0, %v693
      %695 = vmatmul.bf16.gmra.mxu0 %v583
      %v696 = vpop.f32.mrf.mxu0
      %v697 = vadd.f32 0.0, %v696
      %v698 = vpop.f32.mrf.mxu0
      %v699 = vadd.f32 0.0, %v698
      %700 = vmatmul.bf16.gmra.mxu0 %v586
      %v701 = vpop.f32.mrf.mxu0
      %v702 = vadd.f32 0.0, %v701
      %v703 = vpop.f32.mrf.mxu0
      %v704 = vadd.f32 0.0, %v703
      %705 = vmatmul.bf16.gmra.mxu0 %v589
      %v706 = vpop.f32.mrf.mxu0
      %v707 = vadd.f32 0.0, %v706
      %v708 = vpop.f32.mrf.mxu0
      %v709 = vadd.f32 0.0, %v708
      %710 = vmatmul.bf16.gmra.mxu0 %v592
      %v711 = vpop.f32.mrf.mxu0
      %v712 = vadd.f32 0.0, %v711
      %v713 = vpop.f32.mrf.mxu0
      %v714 = vadd.f32 0.0, %v713
      %715 = vmatmul.bf16.gmra.mxu0 %v595
      %v716 = vpop.f32.mrf.mxu0
      %v717 = vadd.f32 0.0, %v716
      %v718 = vpop.f32.mrf.mxu0
      %v719 = vadd.f32 0.0, %v718
      %720 = vmatmul.bf16.gmra.mxu0 %v598
      %v721 = vpop.f32.mrf.mxu0
      %v722 = vadd.f32 0.0, %v721
      %v723 = vpop.f32.mrf.mxu0
      %v724 = vadd.f32 0.0, %v723
      %725 = vmatmul.bf16.gmra.mxu0 %v601
      %v726 = vpop.f32.mrf.mxu0
      %v727 = vadd.f32 0.0, %v726
      %v728 = vpop.f32.mrf.mxu0
      %v729 = vadd.f32 0.0, %v728
      %730 = vmatmul.bf16.gmra.mxu0 %v604
      %v731 = vpop.f32.mrf.mxu0
      %v732 = vadd.f32 0.0, %v731
      %v733 = vpop.f32.mrf.mxu0
      %v734 = vadd.f32 0.0, %v733
      %735 = vmatmul.bf16.gmra.mxu0 %v607
      %v736 = vpop.f32.mrf.mxu0
      %v737 = vadd.f32 0.0, %v736
      %v738 = vpop.f32.mrf.mxu0
      %v739 = vadd.f32 0.0, %v738
      %740 = vmatmul.bf16.gmra.mxu0 %v610
      %v741 = vpop.f32.mrf.mxu0
      %v742 = vadd.f32 0.0, %v741
      %v743 = vpop.f32.mrf.mxu0
      %v744 = vadd.f32 0.0, %v743
      %745 = vmatmul.bf16.gmra.mxu0 %v613
      %v746 = vpop.f32.mrf.mxu0
      %v747 = vadd.f32 0.0, %v746
      %v748 = vpop.f32.mrf.mxu0
      %v749 = vadd.f32 0.0, %v748
      %750 = vmatmul.bf16.gmra.mxu0 %v616
      %v751 = vpop.f32.mrf.mxu0
      %v752 = vadd.f32 0.0, %v751
      %v753 = vpop.f32.mrf.mxu0
      %v754 = vadd.f32 0.0, %v753
      %755 = vdwg.mxu0
      %v756 = vld [vmem:[%s2] sm:$0xff]
      %v757 = vld [vmem:[%s2 + $0x8] sm:$0xff]
      %v758 = vld [vmem:[%s2 + $0x10] sm:$0xff]
      %v759 = vld [vmem:[%s2 + $0x18] sm:$0xff]
      %v760 = vld [vmem:[%s2 + $0x20] sm:$0xff]
      %v761 = vld [vmem:[%s2 + $0x28] sm:$0xff]
      %v762 = vld [vmem:[%s2 + $0x30] sm:$0xff]
      %v763 = vld [vmem:[%s2 + $0x38] sm:$0xff]
      %v764 = vld [vmem:[%s2 + $0x40] sm:$0xff]
      %v765 = vld [vmem:[%s2 + $0x48] sm:$0xff]
      %v766 = vld [vmem:[%s2 + $0x50] sm:$0xff]
      %v767 = vld [vmem:[%s2 + $0x58] sm:$0xff]
      %v768 = vld [vmem:[%s2 + $0x60] sm:$0xff]
      %v769 = vld [vmem:[%s2 + $0x68] sm:$0xff]
      %v770 = vld [vmem:[%s2 + $0x70] sm:$0xff]
      %v771 = vld [vmem:[%s2 + $0x78] sm:$0xff]
      %v772 = vld [vmem:[%s2 + $0x80] sm:$0xff]
      %v773 = vld [vmem:[%s2 + $0x88] sm:$0xff]
      %v774 = vld [vmem:[%s2 + $0x90] sm:$0xff]
      %v775 = vld [vmem:[%s2 + $0x98] sm:$0xff]
      %v776 = vld [vmem:[%s2 + $0xa0] sm:$0xff]
      %v777 = vld [vmem:[%s2 + $0xa8] sm:$0xff]
      %v778 = vld [vmem:[%s2 + $0xb0] sm:$0xff]
      %v779 = vld [vmem:[%s2 + $0xb8] sm:$0xff]
      %v780 = vld [vmem:[%s2 + $0xc0] sm:$0xff]
      %v781 = vld [vmem:[%s2 + $0xc8] sm:$0xff]
      %v782 = vld [vmem:[%s2 + $0xd0] sm:$0xff]
      %v783 = vld [vmem:[%s2 + $0xd8] sm:$0xff]
      %v784 = vld [vmem:[%s2 + $0xe0] sm:$0xff]
      %v785 = vld [vmem:[%s2 + $0xe8] sm:$0xff]
      %v786 = vld [vmem:[%s2 + $0xf0] sm:$0xff]
      %v787 = vld [vmem:[%s2 + $0xf8] sm:$0xff]
      %v788 = vld [vmem:[%s2 + $0x100] sm:$0xff]
      %v789 = vld [vmem:[%s2 + $0x108] sm:$0xff]
      %v790 = vld [vmem:[%s2 + $0x110] sm:$0xff]
      %v791 = vld [vmem:[%s2 + $0x118] sm:$0xff]
      %v792 = vld [vmem:[%s2 + $0x120] sm:$0xff]
      %v793 = vld [vmem:[%s2 + $0x128] sm:$0xff]
      %v794 = vld [vmem:[%s2 + $0x130] sm:$0xff]
      %v795 = vld [vmem:[%s2 + $0x138] sm:$0xff]
      %v796 = vld [vmem:[%s2 + $0x140] sm:$0xff]
      %v797 = vld [vmem:[%s2 + $0x148] sm:$0xff]
      %v798 = vld [vmem:[%s2 + $0x150] sm:$0xff]
      %v799 = vld [vmem:[%s2 + $0x158] sm:$0xff]
      %v800 = vld [vmem:[%s2 + $0x160] sm:$0xff]
      %v801 = vld [vmem:[%s2 + $0x168] sm:$0xff]
      %v802 = vld [vmem:[%s2 + $0x170] sm:$0xff]
      %v803 = vld [vmem:[%s2 + $0x178] sm:$0xff]
      %v804 = vld [vmem:[%s2 + $0x180] sm:$0xff]
      %v805 = vld [vmem:[%s2 + $0x188] sm:$0xff]
      %v806 = vld [vmem:[%s2 + $0x190] sm:$0xff]
      %v807 = vld [vmem:[%s2 + $0x198] sm:$0xff]
      %v808 = vld [vmem:[%s2 + $0x1a0] sm:$0xff]
      %v809 = vld [vmem:[%s2 + $0x1a8] sm:$0xff]
      %v810 = vld [vmem:[%s2 + $0x1b0] sm:$0xff]
      %v811 = vld [vmem:[%s2 + $0x1b8] sm:$0xff]
      %v812 = vld [vmem:[%s2 + $0x1c0] sm:$0xff]
      %v813 = vld [vmem:[%s2 + $0x1c8] sm:$0xff]
      %v814 = vld [vmem:[%s2 + $0x1d0] sm:$0xff]
      %v815 = vld [vmem:[%s2 + $0x1d8] sm:$0xff]
      %v816 = vld [vmem:[%s2 + $0x1e0] sm:$0xff]
      %v817 = vld [vmem:[%s2 + $0x1e8] sm:$0xff]
      %v818 = vld [vmem:[%s2 + $0x1f0] sm:$0xff]
      %v819 = vld [vmem:[%s2 + $0x1f8] sm:$0xff]
      %v820 = vld [vmem:[%s2 + $0x200] sm:$0xff]
      %v821 = vld [vmem:[%s2 + $0x208] sm:$0xff]
      %v822 = vld [vmem:[%s2 + $0x210] sm:$0xff]
      %v823 = vld [vmem:[%s2 + $0x218] sm:$0xff]
      %v824 = vld [vmem:[%s2 + $0x220] sm:$0xff]
      %v825 = vld [vmem:[%s2 + $0x228] sm:$0xff]
      %v826 = vld [vmem:[%s2 + $0x230] sm:$0xff]
      %v827 = vld [vmem:[%s2 + $0x238] sm:$0xff]
      %v828 = vld [vmem:[%s2 + $0x240] sm:$0xff]
      %v829 = vld [vmem:[%s2 + $0x248] sm:$0xff]
      %v830 = vld [vmem:[%s2 + $0x250] sm:$0xff]
      %v831 = vld [vmem:[%s2 + $0x258] sm:$0xff]
      %v832 = vld [vmem:[%s2 + $0x260] sm:$0xff]
      %v833 = vld [vmem:[%s2 + $0x268] sm:$0xff]
      %v834 = vld [vmem:[%s2 + $0x270] sm:$0xff]
      %v835 = vld [vmem:[%s2 + $0x278] sm:$0xff]
      %v836 = vld [vmem:[%s2 + $0x280] sm:$0xff]
      %v837 = vld [vmem:[%s2 + $0x288] sm:$0xff]
      %v838 = vld [vmem:[%s2 + $0x290] sm:$0xff]
      %v839 = vld [vmem:[%s2 + $0x298] sm:$0xff]
      %v840 = vld [vmem:[%s2 + $0x2a0] sm:$0xff]
      %v841 = vld [vmem:[%s2 + $0x2a8] sm:$0xff]
      %v842 = vld [vmem:[%s2 + $0x2b0] sm:$0xff]
      %v843 = vld [vmem:[%s2 + $0x2b8] sm:$0xff]
      %v844 = vld [vmem:[%s2 + $0x2c0] sm:$0xff]
      %v845 = vld [vmem:[%s2 + $0x2c8] sm:$0xff]
      %v846 = vld [vmem:[%s2 + $0x2d0] sm:$0xff]
      %v847 = vld [vmem:[%s2 + $0x2d8] sm:$0xff]
      %v848 = vld [vmem:[%s2 + $0x2e0] sm:$0xff]
      %v849 = vld [vmem:[%s2 + $0x2e8] sm:$0xff]
      %v850 = vld [vmem:[%s2 + $0x2f0] sm:$0xff]
      %v851 = vld [vmem:[%s2 + $0x2f8] sm:$0xff]
      %v852 = vld [vmem:[%s2 + $0x300] sm:$0xff]
      %v853 = vld [vmem:[%s2 + $0x308] sm:$0xff]
      %v854 = vld [vmem:[%s2 + $0x310] sm:$0xff]
      %v855 = vld [vmem:[%s2 + $0x318] sm:$0xff]
      %v856 = vpack.c.bf16 %v634, %v632
      %v857 = vpack.c.bf16 %v639, %v637
      %v858 = vpack.c.bf16 %v644, %v642
      %v859 = vpack.c.bf16 %v649, %v647
      %v860 = vpack.c.bf16 %v654, %v652
      %v861 = vpack.c.bf16 %v659, %v657
      %v862 = vpack.c.bf16 %v664, %v662
      %v863 = vpack.c.bf16 %v669, %v667
      %v864 = vpack.c.bf16 %v674, %v672
      %v865 = vpack.c.bf16 %v679, %v677
      %v866 = vpack.c.bf16 %v684, %v682
      %v867 = vpack.c.bf16 %v689, %v687
      %v868 = vpack.c.bf16 %v694, %v692
      %v869 = vpack.c.bf16 %v699, %v697
      %v870 = vpack.c.bf16 %v704, %v702
      %v871 = vpack.c.bf16 %v709, %v707
      %v872 = vpack.c.bf16 %v714, %v712
      %v873 = vpack.c.bf16 %v719, %v717
      %v874 = vpack.c.bf16 %v724, %v722
      %v875 = vpack.c.bf16 %v729, %v727
      %v876 = vpack.c.bf16 %v734, %v732
      %v877 = vpack.c.bf16 %v739, %v737
      %v878 = vpack.c.bf16 %v744, %v742
      %v879 = vpack.c.bf16 %v749, %v747
      %v880 = vpack.c.bf16 %v754, %v752
      %v981 = vunpack.c.l.b16 %v756
      %v982 = vunpack.c.h.b16 %v756
      %v983 = vunpack.c.l.b16 %v757
      %v984 = vunpack.c.h.b16 %v757
      %v985 = vunpack.c.l.b16 %v758
      %v986 = vunpack.c.h.b16 %v758
      %v987 = vunpack.c.l.b16 %v759
      %v988 = vunpack.c.h.b16 %v759
      %v989 = vunpack.c.l.b16 %v760
      %v990 = vunpack.c.h.b16 %v760
      %v991 = vunpack.c.l.b16 %v761
      %v992 = vunpack.c.h.b16 %v761
      %v993 = vunpack.c.l.b16 %v762
      %v994 = vunpack.c.h.b16 %v762
      %v995 = vunpack.c.l.b16 %v763
      %v996 = vunpack.c.h.b16 %v763
      %v997 = vunpack.c.l.b16 %v764
      %v998 = vunpack.c.h.b16 %v764
      %v999 = vunpack.c.l.b16 %v765
      %v1000 = vunpack.c.h.b16 %v765
      %v1001 = vunpack.c.l.b16 %v766
      %v1002 = vunpack.c.h.b16 %v766
      %v1003 = vunpack.c.l.b16 %v767
      %v1004 = vunpack.c.h.b16 %v767
      %v1005 = vunpack.c.l.b16 %v768
      %v1006 = vunpack.c.h.b16 %v768
      %v1007 = vunpack.c.l.b16 %v769
      %v1008 = vunpack.c.h.b16 %v769
      %v1009 = vunpack.c.l.b16 %v770
      %v1010 = vunpack.c.h.b16 %v770
      %v1011 = vunpack.c.l.b16 %v771
      %v1012 = vunpack.c.h.b16 %v771
      %v1013 = vunpack.c.l.b16 %v772
      %v1014 = vunpack.c.h.b16 %v772
      %v1015 = vunpack.c.l.b16 %v773
      %v1016 = vunpack.c.h.b16 %v773
      %v1017 = vunpack.c.l.b16 %v774
      %v1018 = vunpack.c.h.b16 %v774
      %v1019 = vunpack.c.l.b16 %v775
      %v1020 = vunpack.c.h.b16 %v775
      %v1021 = vunpack.c.l.b16 %v776
      %v1022 = vunpack.c.h.b16 %v776
      %v1023 = vunpack.c.l.b16 %v777
      %v1024 = vunpack.c.h.b16 %v777
      %v1025 = vunpack.c.l.b16 %v778
      %v1026 = vunpack.c.h.b16 %v778
      %v1027 = vunpack.c.l.b16 %v779
      %v1028 = vunpack.c.h.b16 %v779
      %v1029 = vunpack.c.l.b16 %v780
      %v1030 = vunpack.c.h.b16 %v780
      %v1031 = vunpack.c.l.b16 %v781
      %v1032 = vunpack.c.h.b16 %v781
      %v1033 = vunpack.c.l.b16 %v782
      %v1034 = vunpack.c.h.b16 %v782
      %v1035 = vunpack.c.l.b16 %v783
      %v1036 = vunpack.c.h.b16 %v783
      %v1037 = vunpack.c.l.b16 %v784
      %v1038 = vunpack.c.h.b16 %v784
      %v1039 = vunpack.c.l.b16 %v785
      %v1040 = vunpack.c.h.b16 %v785
      %v1041 = vunpack.c.l.b16 %v786
      %v1042 = vunpack.c.h.b16 %v786
      %v1043 = vunpack.c.l.b16 %v787
      %v1044 = vunpack.c.h.b16 %v787
      %v1045 = vunpack.c.l.b16 %v788
      %v1046 = vunpack.c.h.b16 %v788
      %v1047 = vunpack.c.l.b16 %v789
      %v1048 = vunpack.c.h.b16 %v789
      %v1049 = vunpack.c.l.b16 %v790
      %v1050 = vunpack.c.h.b16 %v790
      %v1051 = vunpack.c.l.b16 %v791
      %v1052 = vunpack.c.h.b16 %v791
      %v1053 = vunpack.c.l.b16 %v792
      %v1054 = vunpack.c.h.b16 %v792
      %v1055 = vunpack.c.l.b16 %v793
      %v1056 = vunpack.c.h.b16 %v793
      %v1057 = vunpack.c.l.b16 %v794
      %v1058 = vunpack.c.h.b16 %v794
      %v1059 = vunpack.c.l.b16 %v795
      %v1060 = vunpack.c.h.b16 %v795
      %v1061 = vunpack.c.l.b16 %v796
      %v1062 = vunpack.c.h.b16 %v796
      %v1063 = vunpack.c.l.b16 %v797
      %v1064 = vunpack.c.h.b16 %v797
      %v1065 = vunpack.c.l.b16 %v798
      %v1066 = vunpack.c.h.b16 %v798
      %v1067 = vunpack.c.l.b16 %v799
      %v1068 = vunpack.c.h.b16 %v799
      %v1069 = vunpack.c.l.b16 %v800
      %v1070 = vunpack.c.h.b16 %v800
      %v1071 = vunpack.c.l.b16 %v801
      %v1072 = vunpack.c.h.b16 %v801
      %v1073 = vunpack.c.l.b16 %v802
      %v1074 = vunpack.c.h.b16 %v802
      %v1075 = vunpack.c.l.b16 %v803
      %v1076 = vunpack.c.h.b16 %v803
      %v1077 = vunpack.c.l.b16 %v804
      %v1078 = vunpack.c.h.b16 %v804
      %v1079 = vunpack.c.l.b16 %v805
      %v1080 = vunpack.c.h.b16 %v805
      %v1081 = vunpack.c.l.b16 %v806
      %v1082 = vunpack.c.h.b16 %v806
      %v1083 = vunpack.c.l.b16 %v807
      %v1084 = vunpack.c.h.b16 %v807
      %v1085 = vunpack.c.l.b16 %v808
      %v1086 = vunpack.c.h.b16 %v808
      %v1087 = vunpack.c.l.b16 %v809
      %v1088 = vunpack.c.h.b16 %v809
      %v1089 = vunpack.c.l.b16 %v810
      %v1090 = vunpack.c.h.b16 %v810
      %v1091 = vunpack.c.l.b16 %v811
      %v1092 = vunpack.c.h.b16 %v811
      %v1093 = vunpack.c.l.b16 %v812
      %v1094 = vunpack.c.h.b16 %v812
      %v1095 = vunpack.c.l.b16 %v813
      %v1096 = vunpack.c.h.b16 %v813
      %v1097 = vunpack.c.l.b16 %v814
      %v1098 = vunpack.c.h.b16 %v814
      %v1099 = vunpack.c.l.b16 %v815
      %v1100 = vunpack.c.h.b16 %v815
      %v1101 = vunpack.c.l.b16 %v816
      %v1102 = vunpack.c.h.b16 %v816
      %v1103 = vunpack.c.l.b16 %v817
      %v1104 = vunpack.c.h.b16 %v817
      %v1105 = vunpack.c.l.b16 %v818
      %v1106 = vunpack.c.h.b16 %v818
      %v1107 = vunpack.c.l.b16 %v819
      %v1108 = vunpack.c.h.b16 %v819
      %v1109 = vunpack.c.l.b16 %v820
      %v1110 = vunpack.c.h.b16 %v820
      %v1111 = vunpack.c.l.b16 %v821
      %v1112 = vunpack.c.h.b16 %v821
      %v1113 = vunpack.c.l.b16 %v822
      %v1114 = vunpack.c.h.b16 %v822
      %v1115 = vunpack.c.l.b16 %v823
      %v1116 = vunpack.c.h.b16 %v823
      %v1117 = vunpack.c.l.b16 %v824
      %v1118 = vunpack.c.h.b16 %v824
      %v1119 = vunpack.c.l.b16 %v825
      %v1120 = vunpack.c.h.b16 %v825
      %v1121 = vunpack.c.l.b16 %v826
      %v1122 = vunpack.c.h.b16 %v826
      %v1123 = vunpack.c.l.b16 %v827
      %v1124 = vunpack.c.h.b16 %v827
      %v1125 = vunpack.c.l.b16 %v828
      %v1126 = vunpack.c.h.b16 %v828
      %v1127 = vunpack.c.l.b16 %v829
      %v1128 = vunpack.c.h.b16 %v829
      %v1129 = vunpack.c.l.b16 %v830
      %v1130 = vunpack.c.h.b16 %v830
      %v1131 = vunpack.c.l.b16 %v831
      %v1132 = vunpack.c.h.b16 %v831
      %v1133 = vunpack.c.l.b16 %v832
      %v1134 = vunpack.c.h.b16 %v832
      %v1135 = vunpack.c.l.b16 %v833
      %v1136 = vunpack.c.h.b16 %v833
      %v1137 = vunpack.c.l.b16 %v834
      %v1138 = vunpack.c.h.b16 %v834
      %v1139 = vunpack.c.l.b16 %v835
      %v1140 = vunpack.c.h.b16 %v835
      %v1141 = vunpack.c.l.b16 %v836
      %v1142 = vunpack.c.h.b16 %v836
      %v1143 = vunpack.c.l.b16 %v837
      %v1144 = vunpack.c.h.b16 %v837
      %v1145 = vunpack.c.l.b16 %v838
      %v1146 = vunpack.c.h.b16 %v838
      %v1147 = vunpack.c.l.b16 %v839
      %v1148 = vunpack.c.h.b16 %v839
      %v1149 = vunpack.c.l.b16 %v840
      %v1150 = vunpack.c.h.b16 %v840
      %v1151 = vunpack.c.l.b16 %v841
      %v1152 = vunpack.c.h.b16 %v841
      %v1153 = vunpack.c.l.b16 %v842
      %v1154 = vunpack.c.h.b16 %v842
      %v1155 = vunpack.c.l.b16 %v843
      %v1156 = vunpack.c.h.b16 %v843
      %v1157 = vunpack.c.l.b16 %v844
      %v1158 = vunpack.c.h.b16 %v844
      %v1159 = vunpack.c.l.b16 %v845
      %v1160 = vunpack.c.h.b16 %v845
      %v1161 = vunpack.c.l.b16 %v846
      %v1162 = vunpack.c.h.b16 %v846
      %v1163 = vunpack.c.l.b16 %v847
      %v1164 = vunpack.c.h.b16 %v847
      %v1165 = vunpack.c.l.b16 %v848
      %v1166 = vunpack.c.h.b16 %v848
      %v1167 = vunpack.c.l.b16 %v849
      %v1168 = vunpack.c.h.b16 %v849
      %v1169 = vunpack.c.l.b16 %v850
      %v1170 = vunpack.c.h.b16 %v850
      %v1171 = vunpack.c.l.b16 %v851
      %v1172 = vunpack.c.h.b16 %v851
      %v1173 = vunpack.c.l.b16 %v852
      %v1174 = vunpack.c.h.b16 %v852
      %v1175 = vunpack.c.l.b16 %v853
      %v1176 = vunpack.c.h.b16 %v853
      %v1177 = vunpack.c.l.b16 %v854
      %v1178 = vunpack.c.h.b16 %v854
      %v1179 = vunpack.c.l.b16 %v855
      %v1180 = vunpack.c.h.b16 %v855
      %v1181 = vpack.c.b16 %v985, %v981
      %v1182 = vpack.c.b16 %v986, %v982
      %v1183 = vpack.c.b16 %v987, %v983
      %v1184 = vpack.c.b16 %v988, %v984
      %v1185 = vpack.c.b16 %v993, %v989
      %v1186 = vpack.c.b16 %v994, %v990
      %v1187 = vpack.c.b16 %v995, %v991
      %v1188 = vpack.c.b16 %v996, %v992
      %v1189 = vpack.c.b16 %v1001, %v997
      %v1190 = vpack.c.b16 %v1002, %v998
      %v1191 = vpack.c.b16 %v1003, %v999
      %v1192 = vpack.c.b16 %v1004, %v1000
      %v1193 = vpack.c.b16 %v1009, %v1005
      %v1194 = vpack.c.b16 %v1010, %v1006
      %v1195 = vpack.c.b16 %v1011, %v1007
      %v1196 = vpack.c.b16 %v1012, %v1008
      %v1197 = vpack.c.b16 %v1017, %v1013
      %v1198 = vpack.c.b16 %v1018, %v1014
      %v1199 = vpack.c.b16 %v1019, %v1015
      %v1200 = vpack.c.b16 %v1020, %v1016
      %v1201 = vpack.c.b16 %v1025, %v1021
      %v1202 = vpack.c.b16 %v1026, %v1022
      %v1203 = vpack.c.b16 %v1027, %v1023
      %v1204 = vpack.c.b16 %v1028, %v1024
      %v1205 = vpack.c.b16 %v1033, %v1029
      %v1206 = vpack.c.b16 %v1034, %v1030
      %v1207 = vpack.c.b16 %v1035, %v1031
      %v1208 = vpack.c.b16 %v1036, %v1032
      %v1209 = vpack.c.b16 %v1041, %v1037
      %v1210 = vpack.c.b16 %v1042, %v1038
      %v1211 = vpack.c.b16 %v1043, %v1039
      %v1212 = vpack.c.b16 %v1044, %v1040
      %v1213 = vpack.c.b16 %v1049, %v1045
      %v1214 = vpack.c.b16 %v1050, %v1046
      %v1215 = vpack.c.b16 %v1051, %v1047
      %v1216 = vpack.c.b16 %v1052, %v1048
      %v1217 = vpack.c.b16 %v1057, %v1053
      %v1218 = vpack.c.b16 %v1058, %v1054
      %v1219 = vpack.c.b16 %v1059, %v1055
      %v1220 = vpack.c.b16 %v1060, %v1056
      %v1221 = vpack.c.b16 %v1065, %v1061
      %v1222 = vpack.c.b16 %v1066, %v1062
      %v1223 = vpack.c.b16 %v1067, %v1063
      %v1224 = vpack.c.b16 %v1068, %v1064
      %v1225 = vpack.c.b16 %v1073, %v1069
      %v1226 = vpack.c.b16 %v1074, %v1070
      %v1227 = vpack.c.b16 %v1075, %v1071
      %v1228 = vpack.c.b16 %v1076, %v1072
      %v1229 = vpack.c.b16 %v1081, %v1077
      %v1230 = vpack.c.b16 %v1082, %v1078
      %v1231 = vpack.c.b16 %v1083, %v1079
      %v1232 = vpack.c.b16 %v1084, %v1080
      %v1233 = vpack.c.b16 %v1089, %v1085
      %v1234 = vpack.c.b16 %v1090, %v1086
      %v1235 = vpack.c.b16 %v1091, %v1087
      %v1236 = vpack.c.b16 %v1092, %v1088
      %v1237 = vpack.c.b16 %v1097, %v1093
      %v1238 = vpack.c.b16 %v1098, %v1094
      %v1239 = vpack.c.b16 %v1099, %v1095
      %v1240 = vpack.c.b16 %v1100, %v1096
      %v1241 = vpack.c.b16 %v1105, %v1101
      %v1242 = vpack.c.b16 %v1106, %v1102
      %v1243 = vpack.c.b16 %v1107, %v1103
      %v1244 = vpack.c.b16 %v1108, %v1104
      %v1245 = vpack.c.b16 %v1113, %v1109
      %v1246 = vpack.c.b16 %v1114, %v1110
      %v1247 = vpack.c.b16 %v1115, %v1111
      %v1248 = vpack.c.b16 %v1116, %v1112
      %v1249 = vpack.c.b16 %v1121, %v1117
      %v1250 = vpack.c.b16 %v1122, %v1118
      %v1251 = vpack.c.b16 %v1123, %v1119
      %v1252 = vpack.c.b16 %v1124, %v1120
      %v1253 = vpack.c.b16 %v1129, %v1125
      %v1254 = vpack.c.b16 %v1130, %v1126
      %v1255 = vpack.c.b16 %v1131, %v1127
      %v1256 = vpack.c.b16 %v1132, %v1128
      %v1257 = vpack.c.b16 %v1137, %v1133
      %v1258 = vpack.c.b16 %v1138, %v1134
      %v1259 = vpack.c.b16 %v1139, %v1135
      %v1260 = vpack.c.b16 %v1140, %v1136
      %v1261 = vpack.c.b16 %v1145, %v1141
      %v1262 = vpack.c.b16 %v1146, %v1142
      %v1263 = vpack.c.b16 %v1147, %v1143
      %v1264 = vpack.c.b16 %v1148, %v1144
      %v1265 = vpack.c.b16 %v1153, %v1149
      %v1266 = vpack.c.b16 %v1154, %v1150
      %v1267 = vpack.c.b16 %v1155, %v1151
      %v1268 = vpack.c.b16 %v1156, %v1152
      %v1269 = vpack.c.b16 %v1161, %v1157
      %v1270 = vpack.c.b16 %v1162, %v1158
      %v1271 = vpack.c.b16 %v1163, %v1159
      %v1272 = vpack.c.b16 %v1164, %v1160
      %v1273 = vpack.c.b16 %v1169, %v1165
      %v1274 = vpack.c.b16 %v1170, %v1166
      %v1275 = vpack.c.b16 %v1171, %v1167
      %v1276 = vpack.c.b16 %v1172, %v1168
      %v1277 = vpack.c.b16 %v1177, %v1173
      %v1278 = vpack.c.b16 %v1178, %v1174
      %v1279 = vpack.c.b16 %v1179, %v1175
      %v1280 = vpack.c.b16 %v1180, %v1176
      %vm1356 = vcmask 130048
      %v1358 = vsel %vm1356, %v1184, 0
      %v1361 = vsel %vm1356, %v1188, 0
      %v1364 = vsel %vm1356, %v1192, 0
      %v1367 = vsel %vm1356, %v1196, 0
      %v1370 = vsel %vm1356, %v1200, 0
      %v1373 = vsel %vm1356, %v1204, 0
      %v1376 = vsel %vm1356, %v1208, 0
      %v1379 = vsel %vm1356, %v1212, 0
      %v1382 = vsel %vm1356, %v1216, 0
      %v1385 = vsel %vm1356, %v1220, 0
      %v1388 = vsel %vm1356, %v1224, 0
      %v1391 = vsel %vm1356, %v1228, 0
      %v1394 = vsel %vm1356, %v1232, 0
      %v1397 = vsel %vm1356, %v1236, 0
      %v1400 = vsel %vm1356, %v1240, 0
      %v1403 = vsel %vm1356, %v1244, 0
      %v1406 = vsel %vm1356, %v1248, 0
      %v1409 = vsel %vm1356, %v1252, 0
      %v1412 = vsel %vm1356, %v1256, 0
      %v1415 = vsel %vm1356, %v1260, 0
      %v1418 = vsel %vm1356, %v1264, 0
      %v1421 = vsel %vm1356, %v1268, 0
      %v1424 = vsel %vm1356, %v1272, 0
      %v1427 = vsel %vm1356, %v1276, 0
      %v1430 = vsel %vm1356, %v1280, 0
      %1432 = vmatpush.bf16.msra.mxu0 %v863
      %1433 = vmatpush.bf16.msra.mxu0 %v862
      %1434 = vmatpush.bf16.msra.mxu0 %v861
      %1435 = vmatpush.bf16.msra.mxu0 %v860
      %1436 = vmatpush.bf16.msra.mxu0 %v859
      %1437 = vmatpush.bf16.msra.mxu0 %v858
      %1438 = vmatpush.bf16.msra.mxu0 %v857
      %1439 = vmatpush.bf16.msra.mxu0 %v856
      %1440 = vmatmul.bf16.gmra.mxu0 %v1181
      %v1441 = vpop.f32.mrf.mxu0
      %v1442 = vadd.f32 0.0, %v1441
      %v1443 = vpop.f32.mrf.mxu0
      %v1444 = vadd.f32 0.0, %v1443
      %1445 = vmatmul.bf16.gmra.mxu0 %v1185
      %v1446 = vpop.f32.mrf.mxu0
      %v1447 = vadd.f32 0.0, %v1446
      %v1448 = vpop.f32.mrf.mxu0
      %v1449 = vadd.f32 0.0, %v1448
      %1450 = vmatmul.bf16.gmra.mxu0 %v1189
      %v1451 = vpop.f32.mrf.mxu0
      %v1452 = vadd.f32 0.0, %v1451
      %v1453 = vpop.f32.mrf.mxu0
      %v1454 = vadd.f32 0.0, %v1453
      %1455 = vmatmul.bf16.gmra.mxu0 %v1193
      %v1456 = vpop.f32.mrf.mxu0
      %v1457 = vadd.f32 0.0, %v1456
      %v1458 = vpop.f32.mrf.mxu0
      %v1459 = vadd.f32 0.0, %v1458
      %1460 = vmatmul.bf16.gmra.mxu0 %v1197
      %v1461 = vpop.f32.mrf.mxu0
      %v1462 = vadd.f32 0.0, %v1461
      %v1463 = vpop.f32.mrf.mxu0
      %v1464 = vadd.f32 0.0, %v1463
      %1465 = vmatmul.bf16.gmra.mxu0 %v1201
      %v1466 = vpop.f32.mrf.mxu0
      %v1467 = vadd.f32 0.0, %v1466
      %v1468 = vpop.f32.mrf.mxu0
      %v1469 = vadd.f32 0.0, %v1468
      %1470 = vmatmul.bf16.gmra.mxu0 %v1205
      %v1471 = vpop.f32.mrf.mxu0
      %v1472 = vadd.f32 0.0, %v1471
      %v1473 = vpop.f32.mrf.mxu0
      %v1474 = vadd.f32 0.0, %v1473
      %1475 = vmatmul.bf16.gmra.mxu0 %v1209
      %v1476 = vpop.f32.mrf.mxu0
      %v1477 = vadd.f32 0.0, %v1476
      %v1478 = vpop.f32.mrf.mxu0
      %v1479 = vadd.f32 0.0, %v1478
      %1480 = vmatmul.bf16.gmra.mxu0 %v1213
      %v1481 = vpop.f32.mrf.mxu0
      %v1482 = vadd.f32 0.0, %v1481
      %v1483 = vpop.f32.mrf.mxu0
      %v1484 = vadd.f32 0.0, %v1483
      %1485 = vmatmul.bf16.gmra.mxu0 %v1217
      %v1486 = vpop.f32.mrf.mxu0
      %v1487 = vadd.f32 0.0, %v1486
      %v1488 = vpop.f32.mrf.mxu0
      %v1489 = vadd.f32 0.0, %v1488
      %1490 = vmatmul.bf16.gmra.mxu0 %v1221
      %v1491 = vpop.f32.mrf.mxu0
      %v1492 = vadd.f32 0.0, %v1491
      %v1493 = vpop.f32.mrf.mxu0
      %v1494 = vadd.f32 0.0, %v1493
      %1495 = vmatmul.bf16.gmra.mxu0 %v1225
      %v1496 = vpop.f32.mrf.mxu0
      %v1497 = vadd.f32 0.0, %v1496
      %v1498 = vpop.f32.mrf.mxu0
      %v1499 = vadd.f32 0.0, %v1498
      %1500 = vmatmul.bf16.gmra.mxu0 %v1229
      %v1501 = vpop.f32.mrf.mxu0
      %v1502 = vadd.f32 0.0, %v1501
      %v1503 = vpop.f32.mrf.mxu0
      %v1504 = vadd.f32 0.0, %v1503
      %1505 = vmatmul.bf16.gmra.mxu0 %v1233
      %v1506 = vpop.f32.mrf.mxu0
      %v1507 = vadd.f32 0.0, %v1506
      %v1508 = vpop.f32.mrf.mxu0
      %v1509 = vadd.f32 0.0, %v1508
      %1510 = vmatmul.bf16.gmra.mxu0 %v1237
      %v1511 = vpop.f32.mrf.mxu0
      %v1512 = vadd.f32 0.0, %v1511
      %v1513 = vpop.f32.mrf.mxu0
      %v1514 = vadd.f32 0.0, %v1513
      %1515 = vmatmul.bf16.gmra.mxu0 %v1241
      %v1516 = vpop.f32.mrf.mxu0
      %v1517 = vadd.f32 0.0, %v1516
      %v1518 = vpop.f32.mrf.mxu0
      %v1519 = vadd.f32 0.0, %v1518
      %1520 = vmatmul.bf16.gmra.mxu0 %v1245
      %v1521 = vpop.f32.mrf.mxu0
      %v1522 = vadd.f32 0.0, %v1521
      %v1523 = vpop.f32.mrf.mxu0
      %v1524 = vadd.f32 0.0, %v1523
      %1525 = vmatmul.bf16.gmra.mxu0 %v1249
      %v1526 = vpop.f32.mrf.mxu0
      %v1527 = vadd.f32 0.0, %v1526
      %v1528 = vpop.f32.mrf.mxu0
      %v1529 = vadd.f32 0.0, %v1528
      %1530 = vmatmul.bf16.gmra.mxu0 %v1253
      %v1531 = vpop.f32.mrf.mxu0
      %v1532 = vadd.f32 0.0, %v1531
      %v1533 = vpop.f32.mrf.mxu0
      %v1534 = vadd.f32 0.0, %v1533
      %1535 = vmatmul.bf16.gmra.mxu0 %v1257
      %v1536 = vpop.f32.mrf.mxu0
      %v1537 = vadd.f32 0.0, %v1536
      %v1538 = vpop.f32.mrf.mxu0
      %v1539 = vadd.f32 0.0, %v1538
      %1540 = vmatmul.bf16.gmra.mxu0 %v1261
      %v1541 = vpop.f32.mrf.mxu0
      %v1542 = vadd.f32 0.0, %v1541
      %v1543 = vpop.f32.mrf.mxu0
      %v1544 = vadd.f32 0.0, %v1543
      %1545 = vmatmul.bf16.gmra.mxu0 %v1265
      %v1546 = vpop.f32.mrf.mxu0
      %v1547 = vadd.f32 0.0, %v1546
      %v1548 = vpop.f32.mrf.mxu0
      %v1549 = vadd.f32 0.0, %v1548
      %1550 = vmatmul.bf16.gmra.mxu0 %v1269
      %v1551 = vpop.f32.mrf.mxu0
      %v1552 = vadd.f32 0.0, %v1551
      %v1553 = vpop.f32.mrf.mxu0
      %v1554 = vadd.f32 0.0, %v1553
      %1555 = vmatmul.bf16.gmra.mxu0 %v1273
      %v1556 = vpop.f32.mrf.mxu0
      %v1557 = vadd.f32 0.0, %v1556
      %v1558 = vpop.f32.mrf.mxu0
      %v1559 = vadd.f32 0.0, %v1558
      %1560 = vmatmul.bf16.gmra.mxu0 %v1277
      %v1561 = vpop.f32.mrf.mxu0
      %v1562 = vadd.f32 0.0, %v1561
      %v1563 = vpop.f32.mrf.mxu0
      %v1564 = vadd.f32 0.0, %v1563
      %1565 = vdwg.mxu0
      %1566 = vmatpush.bf16.msra.mxu0 %v871
      %1567 = vmatpush.bf16.msra.mxu0 %v870
      %1568 = vmatpush.bf16.msra.mxu0 %v869
      %1569 = vmatpush.bf16.msra.mxu0 %v868
      %1570 = vmatpush.bf16.msra.mxu0 %v867
      %1571 = vmatpush.bf16.msra.mxu0 %v866
      %1572 = vmatpush.bf16.msra.mxu0 %v865
      %1573 = vmatpush.bf16.msra.mxu0 %v864
      %1574 = vmatmul.bf16.gmra.mxu0 %v1182
      %v1575 = vpop.f32.mrf.mxu0
      %v1576 = vadd.f32 %v1442, %v1575
      %v1577 = vpop.f32.mrf.mxu0
      %v1578 = vadd.f32 %v1444, %v1577
      %1579 = vmatmul.bf16.gmra.mxu0 %v1186
      %v1580 = vpop.f32.mrf.mxu0
      %v1581 = vadd.f32 %v1447, %v1580
      %v1582 = vpop.f32.mrf.mxu0
      %v1583 = vadd.f32 %v1449, %v1582
      %1584 = vmatmul.bf16.gmra.mxu0 %v1190
      %v1585 = vpop.f32.mrf.mxu0
      %v1586 = vadd.f32 %v1452, %v1585
      %v1587 = vpop.f32.mrf.mxu0
      %v1588 = vadd.f32 %v1454, %v1587
      %1589 = vmatmul.bf16.gmra.mxu0 %v1194
      %v1590 = vpop.f32.mrf.mxu0
      %v1591 = vadd.f32 %v1457, %v1590
      %v1592 = vpop.f32.mrf.mxu0
      %v1593 = vadd.f32 %v1459, %v1592
      %1594 = vmatmul.bf16.gmra.mxu0 %v1198
      %v1595 = vpop.f32.mrf.mxu0
      %v1596 = vadd.f32 %v1462, %v1595
      %v1597 = vpop.f32.mrf.mxu0
      %v1598 = vadd.f32 %v1464, %v1597
      %1599 = vmatmul.bf16.gmra.mxu0 %v1202
      %v1600 = vpop.f32.mrf.mxu0
      %v1601 = vadd.f32 %v1467, %v1600
      %v1602 = vpop.f32.mrf.mxu0
      %v1603 = vadd.f32 %v1469, %v1602
      %1604 = vmatmul.bf16.gmra.mxu0 %v1206
      %v1605 = vpop.f32.mrf.mxu0
      %v1606 = vadd.f32 %v1472, %v1605
      %v1607 = vpop.f32.mrf.mxu0
      %v1608 = vadd.f32 %v1474, %v1607
      %1609 = vmatmul.bf16.gmra.mxu0 %v1210
      %v1610 = vpop.f32.mrf.mxu0
      %v1611 = vadd.f32 %v1477, %v1610
      %v1612 = vpop.f32.mrf.mxu0
      %v1613 = vadd.f32 %v1479, %v1612
      %1614 = vmatmul.bf16.gmra.mxu0 %v1214
      %v1615 = vpop.f32.mrf.mxu0
      %v1616 = vadd.f32 %v1482, %v1615
      %v1617 = vpop.f32.mrf.mxu0
      %v1618 = vadd.f32 %v1484, %v1617
      %1619 = vmatmul.bf16.gmra.mxu0 %v1218
      %v1620 = vpop.f32.mrf.mxu0
      %v1621 = vadd.f32 %v1487, %v1620
      %v1622 = vpop.f32.mrf.mxu0
      %v1623 = vadd.f32 %v1489, %v1622
      %1624 = vmatmul.bf16.gmra.mxu0 %v1222
      %v1625 = vpop.f32.mrf.mxu0
      %v1626 = vadd.f32 %v1492, %v1625
      %v1627 = vpop.f32.mrf.mxu0
      %v1628 = vadd.f32 %v1494, %v1627
      %1629 = vmatmul.bf16.gmra.mxu0 %v1226
      %v1630 = vpop.f32.mrf.mxu0
      %v1631 = vadd.f32 %v1497, %v1630
      %v1632 = vpop.f32.mrf.mxu0
      %v1633 = vadd.f32 %v1499, %v1632
      %1634 = vmatmul.bf16.gmra.mxu0 %v1230
      %v1635 = vpop.f32.mrf.mxu0
      %v1636 = vadd.f32 %v1502, %v1635
      %v1637 = vpop.f32.mrf.mxu0
      %v1638 = vadd.f32 %v1504, %v1637
      %1639 = vmatmul.bf16.gmra.mxu0 %v1234
      %v1640 = vpop.f32.mrf.mxu0
      %v1641 = vadd.f32 %v1507, %v1640
      %v1642 = vpop.f32.mrf.mxu0
      %v1643 = vadd.f32 %v1509, %v1642
      %1644 = vmatmul.bf16.gmra.mxu0 %v1238
      %v1645 = vpop.f32.mrf.mxu0
      %v1646 = vadd.f32 %v1512, %v1645
      %v1647 = vpop.f32.mrf.mxu0
      %v1648 = vadd.f32 %v1514, %v1647
      %1649 = vmatmul.bf16.gmra.mxu0 %v1242
      %v1650 = vpop.f32.mrf.mxu0
      %v1651 = vadd.f32 %v1517, %v1650
      %v1652 = vpop.f32.mrf.mxu0
      %v1653 = vadd.f32 %v1519, %v1652
      %1654 = vmatmul.bf16.gmra.mxu0 %v1246
      %v1655 = vpop.f32.mrf.mxu0
      %v1656 = vadd.f32 %v1522, %v1655
      %v1657 = vpop.f32.mrf.mxu0
      %v1658 = vadd.f32 %v1524, %v1657
      %1659 = vmatmul.bf16.gmra.mxu0 %v1250
      %v1660 = vpop.f32.mrf.mxu0
      %v1661 = vadd.f32 %v1527, %v1660
      %v1662 = vpop.f32.mrf.mxu0
      %v1663 = vadd.f32 %v1529, %v1662
      %1664 = vmatmul.bf16.gmra.mxu0 %v1254
      %v1665 = vpop.f32.mrf.mxu0
      %v1666 = vadd.f32 %v1532, %v1665
      %v1667 = vpop.f32.mrf.mxu0
      %v1668 = vadd.f32 %v1534, %v1667
      %1669 = vmatmul.bf16.gmra.mxu0 %v1258
      %v1670 = vpop.f32.mrf.mxu0
      %v1671 = vadd.f32 %v1537, %v1670
      %v1672 = vpop.f32.mrf.mxu0
      %v1673 = vadd.f32 %v1539, %v1672
      %1674 = vmatmul.bf16.gmra.mxu0 %v1262
      %v1675 = vpop.f32.mrf.mxu0
      %v1676 = vadd.f32 %v1542, %v1675
      %v1677 = vpop.f32.mrf.mxu0
      %v1678 = vadd.f32 %v1544, %v1677
      %1679 = vmatmul.bf16.gmra.mxu0 %v1266
      %v1680 = vpop.f32.mrf.mxu0
      %v1681 = vadd.f32 %v1547, %v1680
      %v1682 = vpop.f32.mrf.mxu0
      %v1683 = vadd.f32 %v1549, %v1682
      %1684 = vmatmul.bf16.gmra.mxu0 %v1270
      %v1685 = vpop.f32.mrf.mxu0
      %v1686 = vadd.f32 %v1552, %v1685
      %v1687 = vpop.f32.mrf.mxu0
      %v1688 = vadd.f32 %v1554, %v1687
      %1689 = vmatmul.bf16.gmra.mxu0 %v1274
      %v1690 = vpop.f32.mrf.mxu0
      %v1691 = vadd.f32 %v1557, %v1690
      %v1692 = vpop.f32.mrf.mxu0
      %v1693 = vadd.f32 %v1559, %v1692
      %1694 = vmatmul.bf16.gmra.mxu0 %v1278
      %v1695 = vpop.f32.mrf.mxu0
      %v1696 = vadd.f32 %v1562, %v1695
      %v1697 = vpop.f32.mrf.mxu0
      %v1698 = vadd.f32 %v1564, %v1697
      %1699 = vdwg.mxu0
      %1700 = vmatpush.bf16.msra.mxu0 %v879
      %1701 = vmatpush.bf16.msra.mxu0 %v878
      %1702 = vmatpush.bf16.msra.mxu0 %v877
      %1703 = vmatpush.bf16.msra.mxu0 %v876
      %1704 = vmatpush.bf16.msra.mxu0 %v875
      %1705 = vmatpush.bf16.msra.mxu0 %v874
      %1706 = vmatpush.bf16.msra.mxu0 %v873
      %1707 = vmatpush.bf16.msra.mxu0 %v872
      %1708 = vmatmul.bf16.gmra.mxu0 %v1183
      %v1709 = vpop.f32.mrf.mxu0
      %v1710 = vadd.f32 %v1576, %v1709
      %v1711 = vpop.f32.mrf.mxu0
      %v1712 = vadd.f32 %v1578, %v1711
      %1713 = vmatmul.bf16.gmra.mxu0 %v1187
      %v1714 = vpop.f32.mrf.mxu0
      %v1715 = vadd.f32 %v1581, %v1714
      %v1716 = vpop.f32.mrf.mxu0
      %v1717 = vadd.f32 %v1583, %v1716
      %1718 = vmatmul.bf16.gmra.mxu0 %v1191
      %v1719 = vpop.f32.mrf.mxu0
      %v1720 = vadd.f32 %v1586, %v1719
      %v1721 = vpop.f32.mrf.mxu0
      %v1722 = vadd.f32 %v1588, %v1721
      %1723 = vmatmul.bf16.gmra.mxu0 %v1195
      %v1724 = vpop.f32.mrf.mxu0
      %v1725 = vadd.f32 %v1591, %v1724
      %v1726 = vpop.f32.mrf.mxu0
      %v1727 = vadd.f32 %v1593, %v1726
      %1728 = vmatmul.bf16.gmra.mxu0 %v1199
      %v1729 = vpop.f32.mrf.mxu0
      %v1730 = vadd.f32 %v1596, %v1729
      %v1731 = vpop.f32.mrf.mxu0
      %v1732 = vadd.f32 %v1598, %v1731
      %1733 = vmatmul.bf16.gmra.mxu0 %v1203
      %v1734 = vpop.f32.mrf.mxu0
      %v1735 = vadd.f32 %v1601, %v1734
      %v1736 = vpop.f32.mrf.mxu0
      %v1737 = vadd.f32 %v1603, %v1736
      %1738 = vmatmul.bf16.gmra.mxu0 %v1207
      %v1739 = vpop.f32.mrf.mxu0
      %v1740 = vadd.f32 %v1606, %v1739
      %v1741 = vpop.f32.mrf.mxu0
      %v1742 = vadd.f32 %v1608, %v1741
      %1743 = vmatmul.bf16.gmra.mxu0 %v1211
      %v1744 = vpop.f32.mrf.mxu0
      %v1745 = vadd.f32 %v1611, %v1744
      %v1746 = vpop.f32.mrf.mxu0
      %v1747 = vadd.f32 %v1613, %v1746
      %1748 = vmatmul.bf16.gmra.mxu0 %v1215
      %v1749 = vpop.f32.mrf.mxu0
      %v1750 = vadd.f32 %v1616, %v1749
      %v1751 = vpop.f32.mrf.mxu0
      %v1752 = vadd.f32 %v1618, %v1751
      %1753 = vmatmul.bf16.gmra.mxu0 %v1219
      %v1754 = vpop.f32.mrf.mxu0
      %v1755 = vadd.f32 %v1621, %v1754
      %v1756 = vpop.f32.mrf.mxu0
      %v1757 = vadd.f32 %v1623, %v1756
      %1758 = vmatmul.bf16.gmra.mxu0 %v1223
      %v1759 = vpop.f32.mrf.mxu0
      %v1760 = vadd.f32 %v1626, %v1759
      %v1761 = vpop.f32.mrf.mxu0
      %v1762 = vadd.f32 %v1628, %v1761
      %1763 = vmatmul.bf16.gmra.mxu0 %v1227
      %v1764 = vpop.f32.mrf.mxu0
      %v1765 = vadd.f32 %v1631, %v1764
      %v1766 = vpop.f32.mrf.mxu0
      %v1767 = vadd.f32 %v1633, %v1766
      %1768 = vmatmul.bf16.gmra.mxu0 %v1231
      %v1769 = vpop.f32.mrf.mxu0
      %v1770 = vadd.f32 %v1636, %v1769
      %v1771 = vpop.f32.mrf.mxu0
      %v1772 = vadd.f32 %v1638, %v1771
      %1773 = vmatmul.bf16.gmra.mxu0 %v1235
      %v1774 = vpop.f32.mrf.mxu0
      %v1775 = vadd.f32 %v1641, %v1774
      %v1776 = vpop.f32.mrf.mxu0
      %v1777 = vadd.f32 %v1643, %v1776
      %1778 = vmatmul.bf16.gmra.mxu0 %v1239
      %v1779 = vpop.f32.mrf.mxu0
      %v1780 = vadd.f32 %v1646, %v1779
      %v1781 = vpop.f32.mrf.mxu0
      %v1782 = vadd.f32 %v1648, %v1781
      %1783 = vmatmul.bf16.gmra.mxu0 %v1243
      %v1784 = vpop.f32.mrf.mxu0
      %v1785 = vadd.f32 %v1651, %v1784
      %v1786 = vpop.f32.mrf.mxu0
      %v1787 = vadd.f32 %v1653, %v1786
      %1788 = vmatmul.bf16.gmra.mxu0 %v1247
      %v1789 = vpop.f32.mrf.mxu0
      %v1790 = vadd.f32 %v1656, %v1789
      %v1791 = vpop.f32.mrf.mxu0
      %v1792 = vadd.f32 %v1658, %v1791
      %1793 = vmatmul.bf16.gmra.mxu0 %v1251
      %v1794 = vpop.f32.mrf.mxu0
      %v1795 = vadd.f32 %v1661, %v1794
      %v1796 = vpop.f32.mrf.mxu0
      %v1797 = vadd.f32 %v1663, %v1796
      %1798 = vmatmul.bf16.gmra.mxu0 %v1255
      %v1799 = vpop.f32.mrf.mxu0
      %v1800 = vadd.f32 %v1666, %v1799
      %v1801 = vpop.f32.mrf.mxu0
      %v1802 = vadd.f32 %v1668, %v1801
      %1803 = vmatmul.bf16.gmra.mxu0 %v1259
      %v1804 = vpop.f32.mrf.mxu0
      %v1805 = vadd.f32 %v1671, %v1804
      %v1806 = vpop.f32.mrf.mxu0
      %v1807 = vadd.f32 %v1673, %v1806
      %1808 = vmatmul.bf16.gmra.mxu0 %v1263
      %v1809 = vpop.f32.mrf.mxu0
      %v1810 = vadd.f32 %v1676, %v1809
      %v1811 = vpop.f32.mrf.mxu0
      %v1812 = vadd.f32 %v1678, %v1811
      %1813 = vmatmul.bf16.gmra.mxu0 %v1267
      %v1814 = vpop.f32.mrf.mxu0
      %v1815 = vadd.f32 %v1681, %v1814
      %v1816 = vpop.f32.mrf.mxu0
      %v1817 = vadd.f32 %v1683, %v1816
      %1818 = vmatmul.bf16.gmra.mxu0 %v1271
      %v1819 = vpop.f32.mrf.mxu0
      %v1820 = vadd.f32 %v1686, %v1819
      %v1821 = vpop.f32.mrf.mxu0
      %v1822 = vadd.f32 %v1688, %v1821
      %1823 = vmatmul.bf16.gmra.mxu0 %v1275
      %v1824 = vpop.f32.mrf.mxu0
      %v1825 = vadd.f32 %v1691, %v1824
      %v1826 = vpop.f32.mrf.mxu0
      %v1827 = vadd.f32 %v1693, %v1826
      %1828 = vmatmul.bf16.gmra.mxu0 %v1279
      %v1829 = vpop.f32.mrf.mxu0
      %v1830 = vadd.f32 %v1696, %v1829
      %v1831 = vpop.f32.mrf.mxu0
      %v1832 = vadd.f32 %v1698, %v1831
      %1833 = vdwg.mxu0
      %1834 = vmatpush.bf16.msra.mxu0 0
      %1835 = vmatpush.bf16.msra.mxu0 0
      %1836 = vmatpush.bf16.msra.mxu0 0
      %1837 = vmatpush.bf16.msra.mxu0 0
      %1838 = vmatpush.bf16.msra.mxu0 0
      %1839 = vmatpush.bf16.msra.mxu0 0
      %1840 = vmatpush.bf16.msra.mxu0 0
      %1841 = vmatpush.bf16.msra.mxu0 %v880
      %1842 = vmatmul.bf16.gmra.mxu0 %v1358
      %v1843 = vpop.f32.mrf.mxu0
      %v1844 = vadd.f32 %v1710, %v1843
      %v1845 = vpop.f32.mrf.mxu0
      %v1846 = vadd.f32 %v1712, %v1845
      %1847 = vmatmul.bf16.gmra.mxu0 %v1361
      %v1848 = vpop.f32.mrf.mxu0
      %v1849 = vadd.f32 %v1715, %v1848
      %v1850 = vpop.f32.mrf.mxu0
      %v1851 = vadd.f32 %v1717, %v1850
      %1852 = vmatmul.bf16.gmra.mxu0 %v1364
      %v1853 = vpop.f32.mrf.mxu0
      %v1854 = vadd.f32 %v1720, %v1853
      %v1855 = vpop.f32.mrf.mxu0
      %v1856 = vadd.f32 %v1722, %v1855
      %1857 = vmatmul.bf16.gmra.mxu0 %v1367
      %v1858 = vpop.f32.mrf.mxu0
      %v1859 = vadd.f32 %v1725, %v1858
      %v1860 = vpop.f32.mrf.mxu0
      %v1861 = vadd.f32 %v1727, %v1860
      %1862 = vmatmul.bf16.gmra.mxu0 %v1370
      %v1863 = vpop.f32.mrf.mxu0
      %v1864 = vadd.f32 %v1730, %v1863
      %v1865 = vpop.f32.mrf.mxu0
      %v1866 = vadd.f32 %v1732, %v1865
      %1867 = vmatmul.bf16.gmra.mxu0 %v1373
      %v1868 = vpop.f32.mrf.mxu0
      %v1869 = vadd.f32 %v1735, %v1868
      %v1870 = vpop.f32.mrf.mxu0
      %v1871 = vadd.f32 %v1737, %v1870
      %1872 = vmatmul.bf16.gmra.mxu0 %v1376
      %v1873 = vpop.f32.mrf.mxu0
      %v1874 = vadd.f32 %v1740, %v1873
      %v1875 = vpop.f32.mrf.mxu0
      %v1876 = vadd.f32 %v1742, %v1875
      %1877 = vmatmul.bf16.gmra.mxu0 %v1379
      %v1878 = vpop.f32.mrf.mxu0
      %v1879 = vadd.f32 %v1745, %v1878
      %v1880 = vpop.f32.mrf.mxu0
      %v1881 = vadd.f32 %v1747, %v1880
      %1882 = vmatmul.bf16.gmra.mxu0 %v1382
      %v1883 = vpop.f32.mrf.mxu0
      %v1884 = vadd.f32 %v1750, %v1883
      %v1885 = vpop.f32.mrf.mxu0
      %v1886 = vadd.f32 %v1752, %v1885
      %1887 = vmatmul.bf16.gmra.mxu0 %v1385
      %v1888 = vpop.f32.mrf.mxu0
      %v1889 = vadd.f32 %v1755, %v1888
      %v1890 = vpop.f32.mrf.mxu0
      %v1891 = vadd.f32 %v1757, %v1890
      %1892 = vmatmul.bf16.gmra.mxu0 %v1388
      %v1893 = vpop.f32.mrf.mxu0
      %v1894 = vadd.f32 %v1760, %v1893
      %v1895 = vpop.f32.mrf.mxu0
      %v1896 = vadd.f32 %v1762, %v1895
      %1897 = vmatmul.bf16.gmra.mxu0 %v1391
      %v1898 = vpop.f32.mrf.mxu0
      %v1899 = vadd.f32 %v1765, %v1898
      %v1900 = vpop.f32.mrf.mxu0
      %v1901 = vadd.f32 %v1767, %v1900
      %1902 = vmatmul.bf16.gmra.mxu0 %v1394
      %v1903 = vpop.f32.mrf.mxu0
      %v1904 = vadd.f32 %v1770, %v1903
      %v1905 = vpop.f32.mrf.mxu0
      %v1906 = vadd.f32 %v1772, %v1905
      %1907 = vmatmul.bf16.gmra.mxu0 %v1397
      %v1908 = vpop.f32.mrf.mxu0
      %v1909 = vadd.f32 %v1775, %v1908
      %v1910 = vpop.f32.mrf.mxu0
      %v1911 = vadd.f32 %v1777, %v1910
      %1912 = vmatmul.bf16.gmra.mxu0 %v1400
      %v1913 = vpop.f32.mrf.mxu0
      %v1914 = vadd.f32 %v1780, %v1913
      %v1915 = vpop.f32.mrf.mxu0
      %v1916 = vadd.f32 %v1782, %v1915
      %1917 = vmatmul.bf16.gmra.mxu0 %v1403
      %v1918 = vpop.f32.mrf.mxu0
      %v1919 = vadd.f32 %v1785, %v1918
      %v1920 = vpop.f32.mrf.mxu0
      %v1921 = vadd.f32 %v1787, %v1920
      %1922 = vmatmul.bf16.gmra.mxu0 %v1406
      %v1923 = vpop.f32.mrf.mxu0
      %v1924 = vadd.f32 %v1790, %v1923
      %v1925 = vpop.f32.mrf.mxu0
      %v1926 = vadd.f32 %v1792, %v1925
      %1927 = vmatmul.bf16.gmra.mxu0 %v1409
      %v1928 = vpop.f32.mrf.mxu0
      %v1929 = vadd.f32 %v1795, %v1928
      %v1930 = vpop.f32.mrf.mxu0
      %v1931 = vadd.f32 %v1797, %v1930
      %1932 = vmatmul.bf16.gmra.mxu0 %v1412
      %v1933 = vpop.f32.mrf.mxu0
      %v1934 = vadd.f32 %v1800, %v1933
      %v1935 = vpop.f32.mrf.mxu0
      %v1936 = vadd.f32 %v1802, %v1935
      %1937 = vmatmul.bf16.gmra.mxu0 %v1415
      %v1938 = vpop.f32.mrf.mxu0
      %v1939 = vadd.f32 %v1805, %v1938
      %v1940 = vpop.f32.mrf.mxu0
      %v1941 = vadd.f32 %v1807, %v1940
      %1942 = vmatmul.bf16.gmra.mxu0 %v1418
      %v1943 = vpop.f32.mrf.mxu0
      %v1944 = vadd.f32 %v1810, %v1943
      %v1945 = vpop.f32.mrf.mxu0
      %v1946 = vadd.f32 %v1812, %v1945
      %1947 = vmatmul.bf16.gmra.mxu0 %v1421
      %v1948 = vpop.f32.mrf.mxu0
      %v1949 = vadd.f32 %v1815, %v1948
      %v1950 = vpop.f32.mrf.mxu0
      %v1951 = vadd.f32 %v1817, %v1950
      %1952 = vmatmul.bf16.gmra.mxu0 %v1424
      %v1953 = vpop.f32.mrf.mxu0
      %v1954 = vadd.f32 %v1820, %v1953
      %v1955 = vpop.f32.mrf.mxu0
      %v1956 = vadd.f32 %v1822, %v1955
      %1957 = vmatmul.bf16.gmra.mxu0 %v1427
      %v1958 = vpop.f32.mrf.mxu0
      %v1959 = vadd.f32 %v1825, %v1958
      %v1960 = vpop.f32.mrf.mxu0
      %v1961 = vadd.f32 %v1827, %v1960
      %1962 = vmatmul.bf16.gmra.mxu0 %v1430
      %v1963 = vpop.f32.mrf.mxu0
      %v1964 = vadd.f32 %v1830, %v1963
      %v1965 = vpop.f32.mrf.mxu0
      %v1966 = vadd.f32 %v1832, %v1965
      %1967 = vdwg.mxu0
      %v1968 = vmax.f32 %v1844, 0.0
      %v1969 = vmax.f32 %v1846, 0.0
      %v1970 = vmax.f32 %v1849, 0.0
      %v1971 = vmax.f32 %v1851, 0.0
      %v1972 = vmax.f32 %v1854, 0.0
      %v1973 = vmax.f32 %v1856, 0.0
      %v1974 = vmax.f32 %v1859, 0.0
      %v1975 = vmax.f32 %v1861, 0.0
      %v1976 = vmax.f32 %v1864, 0.0
      %v1977 = vmax.f32 %v1866, 0.0
      %v1978 = vmax.f32 %v1869, 0.0
      %v1979 = vmax.f32 %v1871, 0.0
      %v1980 = vmax.f32 %v1874, 0.0
      %v1981 = vmax.f32 %v1876, 0.0
      %v1982 = vmax.f32 %v1879, 0.0
      %v1983 = vmax.f32 %v1881, 0.0
      %v1984 = vmax.f32 %v1884, 0.0
      %v1985 = vmax.f32 %v1886, 0.0
      %v1986 = vmax.f32 %v1889, 0.0
      %v1987 = vmax.f32 %v1891, 0.0
      %v1988 = vmax.f32 %v1894, 0.0
      %v1989 = vmax.f32 %v1896, 0.0
      %v1990 = vmax.f32 %v1899, 0.0
      %v1991 = vmax.f32 %v1901, 0.0
      %v1992 = vmax.f32 %v1904, 0.0
      %v1993 = vmax.f32 %v1906, 0.0
      %v1994 = vmax.f32 %v1909, 0.0
      %v1995 = vmax.f32 %v1911, 0.0
      %v1996 = vmax.f32 %v1914, 0.0
      %v1997 = vmax.f32 %v1916, 0.0
      %v1998 = vmax.f32 %v1919, 0.0
      %v1999 = vmax.f32 %v1921, 0.0
      %v2000 = vmax.f32 %v1924, 0.0
      %v2001 = vmax.f32 %v1926, 0.0
      %v2002 = vmax.f32 %v1929, 0.0
      %v2003 = vmax.f32 %v1931, 0.0
      %v2004 = vmax.f32 %v1934, 0.0
      %v2005 = vmax.f32 %v1936, 0.0
      %v2006 = vmax.f32 %v1939, 0.0
      %v2007 = vmax.f32 %v1941, 0.0
      %v2008 = vmax.f32 %v1944, 0.0
      %v2009 = vmax.f32 %v1946, 0.0
      %v2010 = vmax.f32 %v1949, 0.0
      %v2011 = vmax.f32 %v1951, 0.0
      %v2012 = vmax.f32 %v1954, 0.0
      %v2013 = vmax.f32 %v1956, 0.0
      %v2014 = vmax.f32 %v1959, 0.0
      %v2015 = vmax.f32 %v1961, 0.0
      %v2016 = vmax.f32 %v1964, 0.0
      %v2017 = vmax.f32 %v1966, 0.0
      %v2018 = vpack.c.bf16 %v1968, %v1968
      %v2019 = vpack.c.bf16 %v1969, %v1969
      %v2020 = vpack.c.bf16 %v1970, %v1970
      %v2021 = vpack.c.bf16 %v1971, %v1971
      %v2022 = vpack.c.bf16 %v1972, %v1972
      %v2023 = vpack.c.bf16 %v1973, %v1973
      %v2024 = vpack.c.bf16 %v1974, %v1974
      %v2025 = vpack.c.bf16 %v1975, %v1975
      %v2026 = vpack.c.bf16 %v1976, %v1976
      %v2027 = vpack.c.bf16 %v1977, %v1977
      %v2028 = vpack.c.bf16 %v1978, %v1978
      %v2029 = vpack.c.bf16 %v1979, %v1979
      %v2030 = vpack.c.bf16 %v1980, %v1980
      %v2031 = vpack.c.bf16 %v1981, %v1981
      %v2032 = vpack.c.bf16 %v1982, %v1982
      %v2033 = vpack.c.bf16 %v1983, %v1983
      %v2034 = vpack.c.bf16 %v1984, %v1984
      %v2035 = vpack.c.bf16 %v1985, %v1985
      %v2036 = vpack.c.bf16 %v1986, %v1986
      %v2037 = vpack.c.bf16 %v1987, %v1987
      %v2038 = vpack.c.bf16 %v1988, %v1988
      %v2039 = vpack.c.bf16 %v1989, %v1989
      %v2040 = vpack.c.bf16 %v1990, %v1990
      %v2041 = vpack.c.bf16 %v1991, %v1991
      %v2042 = vpack.c.bf16 %v1992, %v1992
      %v2043 = vpack.c.bf16 %v1993, %v1993
      %v2044 = vpack.c.bf16 %v1994, %v1994
      %v2045 = vpack.c.bf16 %v1995, %v1995
      %v2046 = vpack.c.bf16 %v1996, %v1996
      %v2047 = vpack.c.bf16 %v1997, %v1997
      %v2048 = vpack.c.bf16 %v1998, %v1998
      %v2049 = vpack.c.bf16 %v1999, %v1999
      %v2050 = vpack.c.bf16 %v2000, %v2000
      %v2051 = vpack.c.bf16 %v2001, %v2001
      %v2052 = vpack.c.bf16 %v2002, %v2002
      %v2053 = vpack.c.bf16 %v2003, %v2003
      %v2054 = vpack.c.bf16 %v2004, %v2004
      %v2055 = vpack.c.bf16 %v2005, %v2005
      %v2056 = vpack.c.bf16 %v2006, %v2006
      %v2057 = vpack.c.bf16 %v2007, %v2007
      %v2058 = vpack.c.bf16 %v2008, %v2008
      %v2059 = vpack.c.bf16 %v2009, %v2009
      %v2060 = vpack.c.bf16 %v2010, %v2010
      %v2061 = vpack.c.bf16 %v2011, %v2011
      %v2062 = vpack.c.bf16 %v2012, %v2012
      %v2063 = vpack.c.bf16 %v2013, %v2013
      %v2064 = vpack.c.bf16 %v2014, %v2014
      %v2065 = vpack.c.bf16 %v2015, %v2015
      %v2066 = vpack.c.bf16 %v2016, %v2016
      %v2067 = vpack.c.bf16 %v2017, %v2017
      %vm2068 = vcmask 519168
      %2069 = vst.msk [vmem:[%s343] sm:$0xf] %vm2068, %v2018
      %2070 = vst.msk [vmem:[%s343 + $0x4] sm:$0xf] %vm2068, %v2019
      %2071 = vst.msk [vmem:[%s343 + $0x8] sm:$0xf] %vm2068, %v2020
      %2072 = vst.msk [vmem:[%s343 + $0xc] sm:$0xf] %vm2068, %v2021
      %2073 = vst.msk [vmem:[%s343 + $0x10] sm:$0xf] %vm2068, %v2022
      %2074 = vst.msk [vmem:[%s343 + $0x14] sm:$0xf] %vm2068, %v2023
      %2075 = vst.msk [vmem:[%s343 + $0x18] sm:$0xf] %vm2068, %v2024
      %2076 = vst.msk [vmem:[%s343 + $0x1c] sm:$0xf] %vm2068, %v2025
      %2077 = vst.msk [vmem:[%s343 + $0x20] sm:$0xf] %vm2068, %v2026
      %2078 = vst.msk [vmem:[%s343 + $0x24] sm:$0xf] %vm2068, %v2027
      %2079 = vst.msk [vmem:[%s343 + $0x28] sm:$0xf] %vm2068, %v2028
      %2080 = vst.msk [vmem:[%s343 + $0x2c] sm:$0xf] %vm2068, %v2029
      %2081 = vst.msk [vmem:[%s343 + $0x30] sm:$0xf] %vm2068, %v2030
      %2082 = vst.msk [vmem:[%s343 + $0x34] sm:$0xf] %vm2068, %v2031
      %2083 = vst.msk [vmem:[%s343 + $0x38] sm:$0xf] %vm2068, %v2032
      %2084 = vst.msk [vmem:[%s343 + $0x3c] sm:$0xf] %vm2068, %v2033
      %2085 = vst.msk [vmem:[%s343 + $0x40] sm:$0xf] %vm2068, %v2034
      %2086 = vst.msk [vmem:[%s343 + $0x44] sm:$0xf] %vm2068, %v2035
      %2087 = vst.msk [vmem:[%s343 + $0x48] sm:$0xf] %vm2068, %v2036
      %2088 = vst.msk [vmem:[%s343 + $0x4c] sm:$0xf] %vm2068, %v2037
      %2089 = vst.msk [vmem:[%s343 + $0x50] sm:$0xf] %vm2068, %v2038
      %2090 = vst.msk [vmem:[%s343 + $0x54] sm:$0xf] %vm2068, %v2039
      %2091 = vst.msk [vmem:[%s343 + $0x58] sm:$0xf] %vm2068, %v2040
      %2092 = vst.msk [vmem:[%s343 + $0x5c] sm:$0xf] %vm2068, %v2041
      %2093 = vst.msk [vmem:[%s343 + $0x60] sm:$0xf] %vm2068, %v2042
      %2094 = vst.msk [vmem:[%s343 + $0x64] sm:$0xf] %vm2068, %v2043
      %2095 = vst.msk [vmem:[%s343 + $0x68] sm:$0xf] %vm2068, %v2044
      %2096 = vst.msk [vmem:[%s343 + $0x6c] sm:$0xf] %vm2068, %v2045
      %2097 = vst.msk [vmem:[%s343 + $0x70] sm:$0xf] %vm2068, %v2046
      %2098 = vst.msk [vmem:[%s343 + $0x74] sm:$0xf] %vm2068, %v2047
      %2099 = vst.msk [vmem:[%s343 + $0x78] sm:$0xf] %vm2068, %v2048
      %2100 = vst.msk [vmem:[%s343 + $0x7c] sm:$0xf] %vm2068, %v2049
      %2101 = vst.msk [vmem:[%s343 + $0x80] sm:$0xf] %vm2068, %v2050
      %2102 = vst.msk [vmem:[%s343 + $0x84] sm:$0xf] %vm2068, %v2051
      %2103 = vst.msk [vmem:[%s343 + $0x88] sm:$0xf] %vm2068, %v2052
      %2104 = vst.msk [vmem:[%s343 + $0x8c] sm:$0xf] %vm2068, %v2053
      %2105 = vst.msk [vmem:[%s343 + $0x90] sm:$0xf] %vm2068, %v2054
      %2106 = vst.msk [vmem:[%s343 + $0x94] sm:$0xf] %vm2068, %v2055
      %2107 = vst.msk [vmem:[%s343 + $0x98] sm:$0xf] %vm2068, %v2056
      %2108 = vst.msk [vmem:[%s343 + $0x9c] sm:$0xf] %vm2068, %v2057
      %2109 = vst.msk [vmem:[%s343 + $0xa0] sm:$0xf] %vm2068, %v2058
      %2110 = vst.msk [vmem:[%s343 + $0xa4] sm:$0xf] %vm2068, %v2059
      %2111 = vst.msk [vmem:[%s343 + $0xa8] sm:$0xf] %vm2068, %v2060
      %2112 = vst.msk [vmem:[%s343 + $0xac] sm:$0xf] %vm2068, %v2061
      %2113 = vst.msk [vmem:[%s343 + $0xb0] sm:$0xf] %vm2068, %v2062
      %2114 = vst.msk [vmem:[%s343 + $0xb4] sm:$0xf] %vm2068, %v2063
      %2115 = vst.msk [vmem:[%s343 + $0xb8] sm:$0xf] %vm2068, %v2064
      %2116 = vst.msk [vmem:[%s343 + $0xbc] sm:$0xf] %vm2068, %v2065
      %2117 = vst.msk [vmem:[%s343 + $0xc0] sm:$0xf] %vm2068, %v2066
      %2118 = vst.msk [vmem:[%s343 + $0xc4] sm:$0xf] %vm2068, %v2067
      %v2119 = vld [vmem:[%s3] sm:$0xff]
      %v2120 = vld [vmem:[%s3 + $0x8] sm:$0xff]
      %v2121 = vld [vmem:[%s3 + $0x10] sm:$0xff]
      %v2122 = vld [vmem:[%s3 + $0x18] sm:$0xff]
      %v2123 = vld [vmem:[%s3 + $0x20] sm:$0xff]
      %v2124 = vld [vmem:[%s3 + $0x28] sm:$0xff]
      %v2125 = vld [vmem:[%s3 + $0x30] sm:$0xff]
      %v2126 = vld [vmem:[%s3 + $0x38] sm:$0xff]
      %v2127 = vld [vmem:[%s3 + $0x40] sm:$0xff]
      %v2128 = vld [vmem:[%s3 + $0x48] sm:$0xff]
      %v2129 = vld [vmem:[%s3 + $0x50] sm:$0xff]
      %v2130 = vld [vmem:[%s3 + $0x58] sm:$0xff]
      %v2131 = vld [vmem:[%s3 + $0x60] sm:$0xff]
      %v2132 = vld [vmem:[%s3 + $0x68] sm:$0xff]
      %v2133 = vld [vmem:[%s3 + $0x70] sm:$0xff]
      %v2134 = vld [vmem:[%s3 + $0x78] sm:$0xff]
      %v2135 = vld [vmem:[%s3 + $0x80] sm:$0xff]
      %v2136 = vld [vmem:[%s3 + $0x88] sm:$0xff]
      %v2137 = vld [vmem:[%s3 + $0x90] sm:$0xff]
      %v2138 = vld [vmem:[%s3 + $0x98] sm:$0xff]
      %v2139 = vld [vmem:[%s3 + $0xa0] sm:$0xff]
      %v2140 = vld [vmem:[%s3 + $0xa8] sm:$0xff]
      %v2141 = vld [vmem:[%s3 + $0xb0] sm:$0xff]
      %v2142 = vld [vmem:[%s3 + $0xb8] sm:$0xff]
      %v2143 = vld [vmem:[%s3 + $0xc0] sm:$0xff]
      %v2144 = vld [vmem:[%s3 + $0xc8] sm:$0xff]
      %v2145 = vld [vmem:[%s3 + $0xd0] sm:$0xff]
      %v2146 = vld [vmem:[%s3 + $0xd8] sm:$0xff]
      %v2147 = vld [vmem:[%s3 + $0xe0] sm:$0xff]
      %v2148 = vld [vmem:[%s3 + $0xe8] sm:$0xff]
      %v2149 = vld [vmem:[%s3 + $0xf0] sm:$0xff]
      %v2150 = vld [vmem:[%s3 + $0xf8] sm:$0xff]
      %v2151 = vld [vmem:[%s3 + $0x100] sm:$0xff]
      %v2152 = vld [vmem:[%s3 + $0x108] sm:$0xff]
      %v2153 = vld [vmem:[%s3 + $0x110] sm:$0xff]
      %v2154 = vld [vmem:[%s3 + $0x118] sm:$0xff]
      %v2155 = vld [vmem:[%s3 + $0x120] sm:$0xff]
      %v2156 = vld [vmem:[%s3 + $0x128] sm:$0xff]
      %v2157 = vld [vmem:[%s3 + $0x130] sm:$0xff]
      %v2158 = vld [vmem:[%s3 + $0x138] sm:$0xff]
      %v2159 = vld [vmem:[%s3 + $0x140] sm:$0xff]
      %v2160 = vld [vmem:[%s3 + $0x148] sm:$0xff]
      %v2161 = vld [vmem:[%s3 + $0x150] sm:$0xff]
      %v2162 = vld [vmem:[%s3 + $0x158] sm:$0xff]
      %v2207 = vunpack.c.l.b16 %v2119
      %v2208 = vunpack.c.h.b16 %v2119
      %v2209 = vunpack.c.l.b16 %v2120
      %v2210 = vunpack.c.h.b16 %v2120
      %v2211 = vunpack.c.l.b16 %v2121
      %v2212 = vunpack.c.h.b16 %v2121
      %v2213 = vunpack.c.l.b16 %v2122
      %v2214 = vunpack.c.h.b16 %v2122
      %v2215 = vunpack.c.l.b16 %v2123
      %v2216 = vunpack.c.h.b16 %v2123
      %v2217 = vunpack.c.l.b16 %v2124
      %v2218 = vunpack.c.h.b16 %v2124
      %v2219 = vunpack.c.l.b16 %v2125
      %v2220 = vunpack.c.h.b16 %v2125
      %v2221 = vunpack.c.l.b16 %v2126
      %v2222 = vunpack.c.h.b16 %v2126
      %v2223 = vunpack.c.l.b16 %v2127
      %v2224 = vunpack.c.h.b16 %v2127
      %v2225 = vunpack.c.l.b16 %v2128
      %v2226 = vunpack.c.h.b16 %v2128
      %v2227 = vunpack.c.l.b16 %v2129
      %v2228 = vunpack.c.h.b16 %v2129
      %v2229 = vunpack.c.l.b16 %v2130
      %v2230 = vunpack.c.h.b16 %v2130
      %v2231 = vunpack.c.l.b16 %v2131
      %v2232 = vunpack.c.h.b16 %v2131
      %v2233 = vunpack.c.l.b16 %v2132
      %v2234 = vunpack.c.h.b16 %v2132
      %v2235 = vunpack.c.l.b16 %v2133
      %v2236 = vunpack.c.h.b16 %v2133
      %v2237 = vunpack.c.l.b16 %v2134
      %v2238 = vunpack.c.h.b16 %v2134
      %v2239 = vunpack.c.l.b16 %v2135
      %v2240 = vunpack.c.h.b16 %v2135
      %v2241 = vunpack.c.l.b16 %v2136
      %v2242 = vunpack.c.h.b16 %v2136
      %v2243 = vunpack.c.l.b16 %v2137
      %v2244 = vunpack.c.h.b16 %v2137
      %v2245 = vunpack.c.l.b16 %v2138
      %v2246 = vunpack.c.h.b16 %v2138
      %v2247 = vunpack.c.l.b16 %v2139
      %v2248 = vunpack.c.h.b16 %v2139
      %v2249 = vunpack.c.l.b16 %v2140
      %v2250 = vunpack.c.h.b16 %v2140
      %v2251 = vunpack.c.l.b16 %v2141
      %v2252 = vunpack.c.h.b16 %v2141
      %v2253 = vunpack.c.l.b16 %v2142
      %v2254 = vunpack.c.h.b16 %v2142
      %v2255 = vunpack.c.l.b16 %v2143
      %v2256 = vunpack.c.h.b16 %v2143
      %v2257 = vunpack.c.l.b16 %v2144
      %v2258 = vunpack.c.h.b16 %v2144
      %v2259 = vunpack.c.l.b16 %v2145
      %v2260 = vunpack.c.h.b16 %v2145
      %v2261 = vunpack.c.l.b16 %v2146
      %v2262 = vunpack.c.h.b16 %v2146
      %v2263 = vunpack.c.l.b16 %v2147
      %v2264 = vunpack.c.h.b16 %v2147
      %v2265 = vunpack.c.l.b16 %v2148
      %v2266 = vunpack.c.h.b16 %v2148
      %v2267 = vunpack.c.l.b16 %v2149
      %v2268 = vunpack.c.h.b16 %v2149
      %v2269 = vunpack.c.l.b16 %v2150
      %v2270 = vunpack.c.h.b16 %v2150
      %v2271 = vunpack.c.l.b16 %v2151
      %v2272 = vunpack.c.h.b16 %v2151
      %v2273 = vunpack.c.l.b16 %v2152
      %v2274 = vunpack.c.h.b16 %v2152
      %v2275 = vunpack.c.l.b16 %v2153
      %v2276 = vunpack.c.h.b16 %v2153
      %v2277 = vunpack.c.l.b16 %v2154
      %v2278 = vunpack.c.h.b16 %v2154
      %v2279 = vunpack.c.l.b16 %v2155
      %v2280 = vunpack.c.h.b16 %v2155
      %v2281 = vunpack.c.l.b16 %v2156
      %v2282 = vunpack.c.h.b16 %v2156
      %v2283 = vunpack.c.l.b16 %v2157
      %v2284 = vunpack.c.h.b16 %v2157
      %v2285 = vunpack.c.l.b16 %v2158
      %v2286 = vunpack.c.h.b16 %v2158
      %v2287 = vunpack.c.l.b16 %v2159
      %v2288 = vunpack.c.h.b16 %v2159
      %v2289 = vunpack.c.l.b16 %v2160
      %v2290 = vunpack.c.h.b16 %v2160
      %v2291 = vunpack.c.l.b16 %v2161
      %v2292 = vunpack.c.h.b16 %v2161
      %v2293 = vunpack.c.l.b16 %v2162
      %v2294 = vunpack.c.h.b16 %v2162
      %v2295 = vpack.c.b16 %v2211, %v2207
      %v2296 = vpack.c.b16 %v2212, %v2208
      %v2297 = vpack.c.b16 %v2213, %v2209
      %v2298 = vpack.c.b16 %v2214, %v2210
      %v2299 = vpack.c.b16 %v2219, %v2215
      %v2300 = vpack.c.b16 %v2220, %v2216
      %v2301 = vpack.c.b16 %v2221, %v2217
      %v2302 = vpack.c.b16 %v2222, %v2218
      %v2303 = vpack.c.b16 %v2227, %v2223
      %v2304 = vpack.c.b16 %v2228, %v2224
      %v2305 = vpack.c.b16 %v2229, %v2225
      %v2306 = vpack.c.b16 %v2230, %v2226
      %v2307 = vpack.c.b16 %v2235, %v2231
      %v2308 = vpack.c.b16 %v2236, %v2232
      %v2309 = vpack.c.b16 %v2237, %v2233
      %v2310 = vpack.c.b16 %v2238, %v2234
      %v2311 = vpack.c.b16 %v2243, %v2239
      %v2312 = vpack.c.b16 %v2244, %v2240
      %v2313 = vpack.c.b16 %v2245, %v2241
      %v2314 = vpack.c.b16 %v2246, %v2242
      %v2315 = vpack.c.b16 %v2251, %v2247
      %v2316 = vpack.c.b16 %v2252, %v2248
      %v2317 = vpack.c.b16 %v2253, %v2249
      %v2318 = vpack.c.b16 %v2254, %v2250
      %v2319 = vpack.c.b16 %v2259, %v2255
      %v2320 = vpack.c.b16 %v2260, %v2256
      %v2321 = vpack.c.b16 %v2261, %v2257
      %v2322 = vpack.c.b16 %v2262, %v2258
      %v2323 = vpack.c.b16 %v2267, %v2263
      %v2324 = vpack.c.b16 %v2268, %v2264
      %v2325 = vpack.c.b16 %v2269, %v2265
      %v2326 = vpack.c.b16 %v2270, %v2266
      %v2327 = vpack.c.b16 %v2275, %v2271
      %v2328 = vpack.c.b16 %v2276, %v2272
      %v2329 = vpack.c.b16 %v2277, %v2273
      %v2330 = vpack.c.b16 %v2278, %v2274
      %v2331 = vpack.c.b16 %v2283, %v2279
      %v2332 = vpack.c.b16 %v2284, %v2280
      %v2333 = vpack.c.b16 %v2285, %v2281
      %v2334 = vpack.c.b16 %v2286, %v2282
      %v2335 = vpack.c.b16 %v2291, %v2287
      %v2336 = vpack.c.b16 %v2292, %v2288
      %v2337 = vpack.c.b16 %v2293, %v2289
      %v2338 = vpack.c.b16 %v2294, %v2290
      %v2422 = vunpack.c.l.b16 %v2018
      %v2423 = vunpack.c.l.b16 %v2019
      %v2424 = vunpack.c.l.b16 %v2020
      %v2425 = vunpack.c.l.b16 %v2021
      %v2426 = vunpack.c.l.b16 %v2022
      %v2427 = vunpack.c.l.b16 %v2023
      %v2428 = vunpack.c.l.b16 %v2024
      %v2429 = vunpack.c.l.b16 %v2025
      %v2430 = vunpack.c.l.b16 %v2026
      %v2431 = vunpack.c.l.b16 %v2027
      %v2432 = vunpack.c.l.b16 %v2028
      %v2433 = vunpack.c.l.b16 %v2029
      %v2434 = vunpack.c.l.b16 %v2030
      %v2435 = vunpack.c.l.b16 %v2031
      %v2436 = vunpack.c.l.b16 %v2032
      %v2437 = vunpack.c.l.b16 %v2033
      %v2438 = vunpack.c.l.b16 %v2034
      %v2439 = vunpack.c.l.b16 %v2035
      %v2440 = vunpack.c.l.b16 %v2036
      %v2441 = vunpack.c.l.b16 %v2037
      %v2442 = vunpack.c.l.b16 %v2038
      %v2443 = vunpack.c.l.b16 %v2039
      %v2444 = vunpack.c.l.b16 %v2040
      %v2445 = vunpack.c.l.b16 %v2041
      %v2446 = vunpack.c.l.b16 %v2042
      %v2447 = vunpack.c.l.b16 %v2043
      %v2448 = vunpack.c.l.b16 %v2044
      %v2449 = vunpack.c.l.b16 %v2045
      %v2450 = vunpack.c.l.b16 %v2046
      %v2451 = vunpack.c.l.b16 %v2047
      %v2452 = vunpack.c.l.b16 %v2048
      %v2453 = vunpack.c.l.b16 %v2049
      %v2454 = vunpack.c.l.b16 %v2050
      %v2455 = vunpack.c.l.b16 %v2051
      %v2456 = vunpack.c.l.b16 %v2052
      %v2457 = vunpack.c.l.b16 %v2053
      %v2458 = vunpack.c.l.b16 %v2054
      %v2459 = vunpack.c.l.b16 %v2055
      %v2460 = vunpack.c.l.b16 %v2056
      %v2461 = vunpack.c.l.b16 %v2057
      %v2462 = vunpack.c.l.b16 %v2058
      %v2463 = vunpack.c.l.b16 %v2059
      %v2464 = vunpack.c.l.b16 %v2060
      %v2465 = vunpack.c.l.b16 %v2061
      %v2466 = vunpack.c.l.b16 %v2062
      %v2467 = vunpack.c.l.b16 %v2063
      %v2468 = vunpack.c.l.b16 %v2064
      %v2469 = vunpack.c.l.b16 %v2065
      %v2470 = vunpack.c.l.b16 %v2066
      %v2471 = vunpack.c.l.b16 %v2067
      %v2472 = vpack.c.b16 %v2423, %v2422
      %v2473 = vpack.c.b16 %v2425, %v2424
      %v2474 = vpack.c.b16 %v2427, %v2426
      %v2475 = vpack.c.b16 %v2429, %v2428
      %v2476 = vpack.c.b16 %v2431, %v2430
      %v2477 = vpack.c.b16 %v2433, %v2432
      %v2478 = vpack.c.b16 %v2435, %v2434
      %v2479 = vpack.c.b16 %v2437, %v2436
      %v2480 = vpack.c.b16 %v2439, %v2438
      %v2481 = vpack.c.b16 %v2441, %v2440
      %v2482 = vpack.c.b16 %v2443, %v2442
      %v2483 = vpack.c.b16 %v2445, %v2444
      %v2484 = vpack.c.b16 %v2447, %v2446
      %v2485 = vpack.c.b16 %v2449, %v2448
      %v2486 = vpack.c.b16 %v2451, %v2450
      %v2487 = vpack.c.b16 %v2453, %v2452
      %v2488 = vpack.c.b16 %v2455, %v2454
      %v2489 = vpack.c.b16 %v2457, %v2456
      %v2490 = vpack.c.b16 %v2459, %v2458
      %v2491 = vpack.c.b16 %v2461, %v2460
      %v2492 = vpack.c.b16 %v2463, %v2462
      %v2493 = vpack.c.b16 %v2465, %v2464
      %v2494 = vpack.c.b16 %v2467, %v2466
      %v2495 = vpack.c.b16 %v2469, %v2468
      %v2496 = vpack.c.b16 %v2471, %v2470
      %v2523 = vsel %vm1356, %v2298, 0
      %v2526 = vsel %vm1356, %v2302, 0
      %v2529 = vsel %vm1356, %v2306, 0
      %v2532 = vsel %vm1356, %v2310, 0
      %v2535 = vsel %vm1356, %v2314, 0
      %v2538 = vsel %vm1356, %v2318, 0
      %v2541 = vsel %vm1356, %v2322, 0
      %v2544 = vsel %vm1356, %v2326, 0
      %v2547 = vsel %vm1356, %v2330, 0
      %v2550 = vsel %vm1356, %v2334, 0
      %v2553 = vsel %vm1356, %v2338, 0
      %2555 = vmatpush.bf16.msra.mxu0 %v2479
      %2556 = vmatpush.bf16.msra.mxu0 %v2478
      %2557 = vmatpush.bf16.msra.mxu0 %v2477
      %2558 = vmatpush.bf16.msra.mxu0 %v2476
      %2559 = vmatpush.bf16.msra.mxu0 %v2475
      %2560 = vmatpush.bf16.msra.mxu0 %v2474
      %2561 = vmatpush.bf16.msra.mxu0 %v2473
      %2562 = vmatpush.bf16.msra.mxu0 %v2472
      %2563 = vmatmul.bf16.gmra.mxu0 %v2295
      %v2564 = vpop.f32.mrf.mxu0
      %v2565 = vadd.f32 0.0, %v2564
      %v2566 = vpop.f32.mrf.mxu0
      %v2567 = vadd.f32 0.0, %v2566
      %2568 = vmatmul.bf16.gmra.mxu0 %v2299
      %v2569 = vpop.f32.mrf.mxu0
      %v2570 = vadd.f32 0.0, %v2569
      %v2571 = vpop.f32.mrf.mxu0
      %v2572 = vadd.f32 0.0, %v2571
      %2573 = vmatmul.bf16.gmra.mxu0 %v2303
      %v2574 = vpop.f32.mrf.mxu0
      %v2575 = vadd.f32 0.0, %v2574
      %v2576 = vpop.f32.mrf.mxu0
      %v2577 = vadd.f32 0.0, %v2576
      %2578 = vmatmul.bf16.gmra.mxu0 %v2307
      %v2579 = vpop.f32.mrf.mxu0
      %v2580 = vadd.f32 0.0, %v2579
      %v2581 = vpop.f32.mrf.mxu0
      %v2582 = vadd.f32 0.0, %v2581
      %2583 = vmatmul.bf16.gmra.mxu0 %v2311
      %v2584 = vpop.f32.mrf.mxu0
      %v2585 = vadd.f32 0.0, %v2584
      %v2586 = vpop.f32.mrf.mxu0
      %v2587 = vadd.f32 0.0, %v2586
      %2588 = vmatmul.bf16.gmra.mxu0 %v2315
      %v2589 = vpop.f32.mrf.mxu0
      %v2590 = vadd.f32 0.0, %v2589
      %v2591 = vpop.f32.mrf.mxu0
      %v2592 = vadd.f32 0.0, %v2591
      %2593 = vmatmul.bf16.gmra.mxu0 %v2319
      %v2594 = vpop.f32.mrf.mxu0
      %v2595 = vadd.f32 0.0, %v2594
      %v2596 = vpop.f32.mrf.mxu0
      %v2597 = vadd.f32 0.0, %v2596
      %2598 = vmatmul.bf16.gmra.mxu0 %v2323
      %v2599 = vpop.f32.mrf.mxu0
      %v2600 = vadd.f32 0.0, %v2599
      %v2601 = vpop.f32.mrf.mxu0
      %v2602 = vadd.f32 0.0, %v2601
      %2603 = vmatmul.bf16.gmra.mxu0 %v2327
      %v2604 = vpop.f32.mrf.mxu0
      %v2605 = vadd.f32 0.0, %v2604
      %v2606 = vpop.f32.mrf.mxu0
      %v2607 = vadd.f32 0.0, %v2606
      %2608 = vmatmul.bf16.gmra.mxu0 %v2331
      %v2609 = vpop.f32.mrf.mxu0
      %v2610 = vadd.f32 0.0, %v2609
      %v2611 = vpop.f32.mrf.mxu0
      %v2612 = vadd.f32 0.0, %v2611
      %2613 = vmatmul.bf16.gmra.mxu0 %v2335
      %v2614 = vpop.f32.mrf.mxu0
      %v2615 = vadd.f32 0.0, %v2614
      %v2616 = vpop.f32.mrf.mxu0
      %v2617 = vadd.f32 0.0, %v2616
      %2618 = vdwg.mxu0
      %2619 = vmatpush.bf16.msra.mxu0 %v2487
      %2620 = vmatpush.bf16.msra.mxu0 %v2486
      %2621 = vmatpush.bf16.msra.mxu0 %v2485
      %2622 = vmatpush.bf16.msra.mxu0 %v2484
      %2623 = vmatpush.bf16.msra.mxu0 %v2483
      %2624 = vmatpush.bf16.msra.mxu0 %v2482
      %2625 = vmatpush.bf16.msra.mxu0 %v2481
      %2626 = vmatpush.bf16.msra.mxu0 %v2480
      %2627 = vmatmul.bf16.gmra.mxu0 %v2296
      %v2628 = vpop.f32.mrf.mxu0
      %v2629 = vadd.f32 %v2565, %v2628
      %v2630 = vpop.f32.mrf.mxu0
      %v2631 = vadd.f32 %v2567, %v2630
      %2632 = vmatmul.bf16.gmra.mxu0 %v2300
      %v2633 = vpop.f32.mrf.mxu0
      %v2634 = vadd.f32 %v2570, %v2633
      %v2635 = vpop.f32.mrf.mxu0
      %v2636 = vadd.f32 %v2572, %v2635
      %2637 = vmatmul.bf16.gmra.mxu0 %v2304
      %v2638 = vpop.f32.mrf.mxu0
      %v2639 = vadd.f32 %v2575, %v2638
      %v2640 = vpop.f32.mrf.mxu0
      %v2641 = vadd.f32 %v2577, %v2640
      %2642 = vmatmul.bf16.gmra.mxu0 %v2308
      %v2643 = vpop.f32.mrf.mxu0
      %v2644 = vadd.f32 %v2580, %v2643
      %v2645 = vpop.f32.mrf.mxu0
      %v2646 = vadd.f32 %v2582, %v2645
      %2647 = vmatmul.bf16.gmra.mxu0 %v2312
      %v2648 = vpop.f32.mrf.mxu0
      %v2649 = vadd.f32 %v2585, %v2648
      %v2650 = vpop.f32.mrf.mxu0
      %v2651 = vadd.f32 %v2587, %v2650
      %2652 = vmatmul.bf16.gmra.mxu0 %v2316
      %v2653 = vpop.f32.mrf.mxu0
      %v2654 = vadd.f32 %v2590, %v2653
      %v2655 = vpop.f32.mrf.mxu0
      %v2656 = vadd.f32 %v2592, %v2655
      %2657 = vmatmul.bf16.gmra.mxu0 %v2320
      %v2658 = vpop.f32.mrf.mxu0
      %v2659 = vadd.f32 %v2595, %v2658
      %v2660 = vpop.f32.mrf.mxu0
      %v2661 = vadd.f32 %v2597, %v2660
      %2662 = vmatmul.bf16.gmra.mxu0 %v2324
      %v2663 = vpop.f32.mrf.mxu0
      %v2664 = vadd.f32 %v2600, %v2663
      %v2665 = vpop.f32.mrf.mxu0
      %v2666 = vadd.f32 %v2602, %v2665
      %2667 = vmatmul.bf16.gmra.mxu0 %v2328
      %v2668 = vpop.f32.mrf.mxu0
      %v2669 = vadd.f32 %v2605, %v2668
      %v2670 = vpop.f32.mrf.mxu0
      %v2671 = vadd.f32 %v2607, %v2670
      %2672 = vmatmul.bf16.gmra.mxu0 %v2332
      %v2673 = vpop.f32.mrf.mxu0
      %v2674 = vadd.f32 %v2610, %v2673
      %v2675 = vpop.f32.mrf.mxu0
      %v2676 = vadd.f32 %v2612, %v2675
      %2677 = vmatmul.bf16.gmra.mxu0 %v2336
      %v2678 = vpop.f32.mrf.mxu0
      %v2679 = vadd.f32 %v2615, %v2678
      %v2680 = vpop.f32.mrf.mxu0
      %v2681 = vadd.f32 %v2617, %v2680
      %2682 = vdwg.mxu0
      %2683 = vmatpush.bf16.msra.mxu0 %v2495
      %2684 = vmatpush.bf16.msra.mxu0 %v2494
      %2685 = vmatpush.bf16.msra.mxu0 %v2493
      %2686 = vmatpush.bf16.msra.mxu0 %v2492
      %2687 = vmatpush.bf16.msra.mxu0 %v2491
      %2688 = vmatpush.bf16.msra.mxu0 %v2490
      %2689 = vmatpush.bf16.msra.mxu0 %v2489
      %2690 = vmatpush.bf16.msra.mxu0 %v2488
      %2691 = vmatmul.bf16.gmra.mxu0 %v2297
      %v2692 = vpop.f32.mrf.mxu0
      %v2693 = vadd.f32 %v2629, %v2692
      %v2694 = vpop.f32.mrf.mxu0
      %v2695 = vadd.f32 %v2631, %v2694
      %2696 = vmatmul.bf16.gmra.mxu0 %v2301
      %v2697 = vpop.f32.mrf.mxu0
      %v2698 = vadd.f32 %v2634, %v2697
      %v2699 = vpop.f32.mrf.mxu0
      %v2700 = vadd.f32 %v2636, %v2699
      %2701 = vmatmul.bf16.gmra.mxu0 %v2305
      %v2702 = vpop.f32.mrf.mxu0
      %v2703 = vadd.f32 %v2639, %v2702
      %v2704 = vpop.f32.mrf.mxu0
      %v2705 = vadd.f32 %v2641, %v2704
      %2706 = vmatmul.bf16.gmra.mxu0 %v2309
      %v2707 = vpop.f32.mrf.mxu0
      %v2708 = vadd.f32 %v2644, %v2707
      %v2709 = vpop.f32.mrf.mxu0
      %v2710 = vadd.f32 %v2646, %v2709
      %2711 = vmatmul.bf16.gmra.mxu0 %v2313
      %v2712 = vpop.f32.mrf.mxu0
      %v2713 = vadd.f32 %v2649, %v2712
      %v2714 = vpop.f32.mrf.mxu0
      %v2715 = vadd.f32 %v2651, %v2714
      %2716 = vmatmul.bf16.gmra.mxu0 %v2317
      %v2717 = vpop.f32.mrf.mxu0
      %v2718 = vadd.f32 %v2654, %v2717
      %v2719 = vpop.f32.mrf.mxu0
      %v2720 = vadd.f32 %v2656, %v2719
      %2721 = vmatmul.bf16.gmra.mxu0 %v2321
      %v2722 = vpop.f32.mrf.mxu0
      %v2723 = vadd.f32 %v2659, %v2722
      %v2724 = vpop.f32.mrf.mxu0
      %v2725 = vadd.f32 %v2661, %v2724
      %2726 = vmatmul.bf16.gmra.mxu0 %v2325
      %v2727 = vpop.f32.mrf.mxu0
      %v2728 = vadd.f32 %v2664, %v2727
      %v2729 = vpop.f32.mrf.mxu0
      %v2730 = vadd.f32 %v2666, %v2729
      %2731 = vmatmul.bf16.gmra.mxu0 %v2329
      %v2732 = vpop.f32.mrf.mxu0
      %v2733 = vadd.f32 %v2669, %v2732
      %v2734 = vpop.f32.mrf.mxu0
      %v2735 = vadd.f32 %v2671, %v2734
      %2736 = vmatmul.bf16.gmra.mxu0 %v2333
      %v2737 = vpop.f32.mrf.mxu0
      %v2738 = vadd.f32 %v2674, %v2737
      %v2739 = vpop.f32.mrf.mxu0
      %v2740 = vadd.f32 %v2676, %v2739
      %2741 = vmatmul.bf16.gmra.mxu0 %v2337
      %v2742 = vpop.f32.mrf.mxu0
      %v2743 = vadd.f32 %v2679, %v2742
      %v2744 = vpop.f32.mrf.mxu0
      %v2745 = vadd.f32 %v2681, %v2744
      %2746 = vdwg.mxu0
      %2747 = vmatpush.bf16.msra.mxu0 0
      %2748 = vmatpush.bf16.msra.mxu0 0
      %2749 = vmatpush.bf16.msra.mxu0 0
      %2750 = vmatpush.bf16.msra.mxu0 0
      %2751 = vmatpush.bf16.msra.mxu0 0
      %2752 = vmatpush.bf16.msra.mxu0 0
      %2753 = vmatpush.bf16.msra.mxu0 0
      %2754 = vmatpush.bf16.msra.mxu0 %v2496
      %2755 = vmatmul.bf16.gmra.mxu0 %v2523
      %v2756 = vpop.f32.mrf.mxu0
      %v2757 = vadd.f32 %v2693, %v2756
      %v2758 = vpop.f32.mrf.mxu0
      %v2759 = vadd.f32 %v2695, %v2758
      %2760 = vmatmul.bf16.gmra.mxu0 %v2526
      %v2761 = vpop.f32.mrf.mxu0
      %v2762 = vadd.f32 %v2698, %v2761
      %v2763 = vpop.f32.mrf.mxu0
      %v2764 = vadd.f32 %v2700, %v2763
      %2765 = vmatmul.bf16.gmra.mxu0 %v2529
      %v2766 = vpop.f32.mrf.mxu0
      %v2767 = vadd.f32 %v2703, %v2766
      %v2768 = vpop.f32.mrf.mxu0
      %v2769 = vadd.f32 %v2705, %v2768
      %2770 = vmatmul.bf16.gmra.mxu0 %v2532
      %v2771 = vpop.f32.mrf.mxu0
      %v2772 = vadd.f32 %v2708, %v2771
      %v2773 = vpop.f32.mrf.mxu0
      %v2774 = vadd.f32 %v2710, %v2773
      %2775 = vmatmul.bf16.gmra.mxu0 %v2535
      %v2776 = vpop.f32.mrf.mxu0
      %v2777 = vadd.f32 %v2713, %v2776
      %v2778 = vpop.f32.mrf.mxu0
      %v2779 = vadd.f32 %v2715, %v2778
      %2780 = vmatmul.bf16.gmra.mxu0 %v2538
      %v2781 = vpop.f32.mrf.mxu0
      %v2782 = vadd.f32 %v2718, %v2781
      %v2783 = vpop.f32.mrf.mxu0
      %v2784 = vadd.f32 %v2720, %v2783
      %2785 = vmatmul.bf16.gmra.mxu0 %v2541
      %v2786 = vpop.f32.mrf.mxu0
      %v2787 = vadd.f32 %v2723, %v2786
      %v2788 = vpop.f32.mrf.mxu0
      %v2789 = vadd.f32 %v2725, %v2788
      %2790 = vmatmul.bf16.gmra.mxu0 %v2544
      %v2791 = vpop.f32.mrf.mxu0
      %v2792 = vadd.f32 %v2728, %v2791
      %v2793 = vpop.f32.mrf.mxu0
      %v2794 = vadd.f32 %v2730, %v2793
      %2795 = vmatmul.bf16.gmra.mxu0 %v2547
      %v2796 = vpop.f32.mrf.mxu0
      %v2797 = vadd.f32 %v2733, %v2796
      %v2798 = vpop.f32.mrf.mxu0
      %v2799 = vadd.f32 %v2735, %v2798
      %2800 = vmatmul.bf16.gmra.mxu0 %v2550
      %v2801 = vpop.f32.mrf.mxu0
      %v2802 = vadd.f32 %v2738, %v2801
      %v2803 = vpop.f32.mrf.mxu0
      %v2804 = vadd.f32 %v2740, %v2803
      %2805 = vmatmul.bf16.gmra.mxu0 %v2553
      %v2806 = vpop.f32.mrf.mxu0
      %v2807 = vadd.f32 %v2743, %v2806
      %v2808 = vpop.f32.mrf.mxu0
      %v2809 = vadd.f32 %v2745, %v2808
      %2810 = vdwg.mxu0
      %v2811 = vpack.c.bf16 %v2757, %v2757
      %v2812 = vpack.c.bf16 %v2759, %v2759
      %v2813 = vpack.c.bf16 %v2762, %v2762
      %v2814 = vpack.c.bf16 %v2764, %v2764
      %v2815 = vpack.c.bf16 %v2767, %v2767
      %v2816 = vpack.c.bf16 %v2769, %v2769
      %v2817 = vpack.c.bf16 %v2772, %v2772
      %v2818 = vpack.c.bf16 %v2774, %v2774
      %v2819 = vpack.c.bf16 %v2777, %v2777
      %v2820 = vpack.c.bf16 %v2779, %v2779
      %v2821 = vpack.c.bf16 %v2782, %v2782
      %v2822 = vpack.c.bf16 %v2784, %v2784
      %v2823 = vpack.c.bf16 %v2787, %v2787
      %v2824 = vpack.c.bf16 %v2789, %v2789
      %v2825 = vpack.c.bf16 %v2792, %v2792
      %v2826 = vpack.c.bf16 %v2794, %v2794
      %v2827 = vpack.c.bf16 %v2797, %v2797
      %v2828 = vpack.c.bf16 %v2799, %v2799
      %v2829 = vpack.c.bf16 %v2802, %v2802
      %v2830 = vpack.c.bf16 %v2804, %v2804
      %v2831 = vpack.c.bf16 %v2807, %v2807
      %v2832 = vpack.c.bf16 %v2809, %v2809
      %2833 = vst.msk [vmem:[%s353] sm:$0xf] %vm2068, %v2811
      %2834 = vst.msk [vmem:[%s353 + $0x4] sm:$0xf] %vm2068, %v2812
      %2835 = vst.msk [vmem:[%s353 + $0x8] sm:$0xf] %vm2068, %v2813
      %2836 = vst.msk [vmem:[%s353 + $0xc] sm:$0xf] %vm2068, %v2814
      %2837 = vst.msk [vmem:[%s353 + $0x10] sm:$0xf] %vm2068, %v2815
      %2838 = vst.msk [vmem:[%s353 + $0x14] sm:$0xf] %vm2068, %v2816
      %2839 = vst.msk [vmem:[%s353 + $0x18] sm:$0xf] %vm2068, %v2817
      %2840 = vst.msk [vmem:[%s353 + $0x1c] sm:$0xf] %vm2068, %v2818
      %2841 = vst.msk [vmem:[%s353 + $0x20] sm:$0xf] %vm2068, %v2819
      %2842 = vst.msk [vmem:[%s353 + $0x24] sm:$0xf] %vm2068, %v2820
      %2843 = vst.msk [vmem:[%s353 + $0x28] sm:$0xf] %vm2068, %v2821
      %2844 = vst.msk [vmem:[%s353 + $0x2c] sm:$0xf] %vm2068, %v2822
      %2845 = vst.msk [vmem:[%s353 + $0x30] sm:$0xf] %vm2068, %v2823
      %2846 = vst.msk [vmem:[%s353 + $0x34] sm:$0xf] %vm2068, %v2824
      %2847 = vst.msk [vmem:[%s353 + $0x38] sm:$0xf] %vm2068, %v2825
      %2848 = vst.msk [vmem:[%s353 + $0x3c] sm:$0xf] %vm2068, %v2826
      %2849 = vst.msk [vmem:[%s353 + $0x40] sm:$0xf] %vm2068, %v2827
      %2850 = vst.msk [vmem:[%s353 + $0x44] sm:$0xf] %vm2068, %v2828
      %2851 = vst.msk [vmem:[%s353 + $0x48] sm:$0xf] %vm2068, %v2829
      %2852 = vst.msk [vmem:[%s353 + $0x4c] sm:$0xf] %vm2068, %v2830
      %2853 = vst.msk [vmem:[%s353 + $0x50] sm:$0xf] %vm2068, %v2831
      %2854 = vst.msk [vmem:[%s353 + $0x54] sm:$0xf] %vm2068, %v2832
      %v2855 = vld [vmem:[%s4] sm:$0xff]
      %v2856 = vld [vmem:[%s4 + $0x8] sm:$0xff]
      %v2857 = vld [vmem:[%s4 + $0x10] sm:$0xff]
      %v2858 = vld [vmem:[%s4 + $0x18] sm:$0xff]
      %v2859 = vld [vmem:[%s4 + $0x20] sm:$0xff]
      %v2860 = vld [vmem:[%s4 + $0x28] sm:$0xff]
      %v2861 = vld [vmem:[%s4 + $0x30] sm:$0xff]
      %v2862 = vld [vmem:[%s4 + $0x38] sm:$0xff]
      %v2863 = vld [vmem:[%s4 + $0x40] sm:$0xff]
      %v2864 = vld [vmem:[%s4 + $0x48] sm:$0xff]
      %v2865 = vld [vmem:[%s4 + $0x50] sm:$0xff]
      %v2866 = vld [vmem:[%s4 + $0x58] sm:$0xff]
      %v2879 = vunpack.c.l.b16 %v2855
      %v2880 = vunpack.c.h.b16 %v2855
      %v2881 = vunpack.c.l.b16 %v2856
      %v2882 = vunpack.c.h.b16 %v2856
      %v2883 = vunpack.c.l.b16 %v2857
      %v2884 = vunpack.c.h.b16 %v2857
      %v2885 = vunpack.c.l.b16 %v2858
      %v2886 = vunpack.c.h.b16 %v2858
      %v2887 = vunpack.c.l.b16 %v2859
      %v2888 = vunpack.c.h.b16 %v2859
      %v2889 = vunpack.c.l.b16 %v2860
      %v2890 = vunpack.c.h.b16 %v2860
      %v2891 = vunpack.c.l.b16 %v2861
      %v2892 = vunpack.c.h.b16 %v2861
      %v2893 = vunpack.c.l.b16 %v2862
      %v2894 = vunpack.c.h.b16 %v2862
      %v2895 = vunpack.c.l.b16 %v2863
      %v2896 = vunpack.c.h.b16 %v2863
      %v2897 = vunpack.c.l.b16 %v2864
      %v2898 = vunpack.c.h.b16 %v2864
      %v2899 = vunpack.c.l.b16 %v2865
      %v2900 = vunpack.c.h.b16 %v2865
      %v2901 = vunpack.c.l.b16 %v2866
      %v2902 = vunpack.c.h.b16 %v2866
      %v2903 = vpack.c.b16 %v2881, %v2879
      %v2904 = vpack.c.b16 %v2882, %v2880
      %v2905 = vpack.c.b16 %v2885, %v2883
      %v2906 = vpack.c.b16 %v2886, %v2884
      %v2907 = vpack.c.b16 %v2889, %v2887
      %v2908 = vpack.c.b16 %v2890, %v2888
      %v2909 = vpack.c.b16 %v2893, %v2891
      %v2910 = vpack.c.b16 %v2894, %v2892
      %v2911 = vpack.c.b16 %v2897, %v2895
      %v2912 = vpack.c.b16 %v2898, %v2896
      %v2913 = vpack.c.b16 %v2901, %v2899
      %v2914 = vpack.c.b16 %v2902, %v2900
      %v2943 = vunpack.c.l.b16 %v2811
      %v2944 = vunpack.c.l.b16 %v2812
      %v2945 = vunpack.c.l.b16 %v2813
      %v2946 = vunpack.c.l.b16 %v2814
      %v2947 = vunpack.c.l.b16 %v2815
      %v2948 = vunpack.c.l.b16 %v2816
      %v2949 = vunpack.c.l.b16 %v2817
      %v2950 = vunpack.c.l.b16 %v2818
      %v2951 = vunpack.c.l.b16 %v2819
      %v2952 = vunpack.c.l.b16 %v2820
      %v2953 = vunpack.c.l.b16 %v2821
      %v2954 = vunpack.c.l.b16 %v2822
      %v2955 = vunpack.c.l.b16 %v2823
      %v2956 = vunpack.c.l.b16 %v2824
      %v2957 = vunpack.c.l.b16 %v2825
      %v2958 = vunpack.c.l.b16 %v2826
      %v2959 = vunpack.c.l.b16 %v2827
      %v2960 = vunpack.c.l.b16 %v2828
      %v2961 = vunpack.c.l.b16 %v2829
      %v2962 = vunpack.c.l.b16 %v2830
      %v2963 = vunpack.c.l.b16 %v2831
      %v2964 = vunpack.c.l.b16 %v2832
      %v2965 = vpack.c.b16 %v2944, %v2943
      %v2966 = vpack.c.b16 %v2946, %v2945
      %v2967 = vpack.c.b16 %v2948, %v2947
      %v2968 = vpack.c.b16 %v2950, %v2949
      %v2969 = vpack.c.b16 %v2952, %v2951
      %v2970 = vpack.c.b16 %v2954, %v2953
      %v2971 = vpack.c.b16 %v2956, %v2955
      %v2972 = vpack.c.b16 %v2958, %v2957
      %v2973 = vpack.c.b16 %v2960, %v2959
      %v2974 = vpack.c.b16 %v2962, %v2961
      %v2975 = vpack.c.b16 %v2964, %v2963
      %vm2987 = vcmask 392192
      %v2989 = vsel %vm2987, %v2904, 0
      %v2992 = vsel %vm2987, %v2906, 0
      %v2995 = vsel %vm2987, %v2908, 0
      %v2998 = vsel %vm2987, %v2910, 0
      %v3001 = vsel %vm2987, %v2912, 0
      %v3004 = vsel %vm2987, %v2914, 0
      %3006 = vmatpush.bf16.msra.mxu0 %v2972
      %3007 = vmatpush.bf16.msra.mxu0 %v2971
      %3008 = vmatpush.bf16.msra.mxu0 %v2970
      %3009 = vmatpush.bf16.msra.mxu0 %v2969
      %3010 = vmatpush.bf16.msra.mxu0 %v2968
      %3011 = vmatpush.bf16.msra.mxu0 %v2967
      %3012 = vmatpush.bf16.msra.mxu0 %v2966
      %3013 = vmatpush.bf16.msra.mxu0 %v2965
      %3014 = vmatmul.bf16.gmra.mxu0 %v2903
      %v3015 = vpop.f32.mrf.mxu0
      %v3016 = vadd.f32 0.0, %v3015
      %v3017 = vpop.f32.mrf.mxu0
      %v3018 = vadd.f32 0.0, %v3017
      %3019 = vmatmul.bf16.gmra.mxu0 %v2905
      %v3020 = vpop.f32.mrf.mxu0
      %v3021 = vadd.f32 0.0, %v3020
      %v3022 = vpop.f32.mrf.mxu0
      %v3023 = vadd.f32 0.0, %v3022
      %3024 = vmatmul.bf16.gmra.mxu0 %v2907
      %v3025 = vpop.f32.mrf.mxu0
      %v3026 = vadd.f32 0.0, %v3025
      %v3027 = vpop.f32.mrf.mxu0
      %v3028 = vadd.f32 0.0, %v3027
      %3029 = vmatmul.bf16.gmra.mxu0 %v2909
      %v3030 = vpop.f32.mrf.mxu0
      %v3031 = vadd.f32 0.0, %v3030
      %v3032 = vpop.f32.mrf.mxu0
      %v3033 = vadd.f32 0.0, %v3032
      %3034 = vmatmul.bf16.gmra.mxu0 %v2911
      %v3035 = vpop.f32.mrf.mxu0
      %v3036 = vadd.f32 0.0, %v3035
      %v3037 = vpop.f32.mrf.mxu0
      %v3038 = vadd.f32 0.0, %v3037
      %3039 = vmatmul.bf16.gmra.mxu0 %v2913
      %v3040 = vpop.f32.mrf.mxu0
      %v3041 = vadd.f32 0.0, %v3040
      %v3042 = vpop.f32.mrf.mxu0
      %v3043 = vadd.f32 0.0, %v3042
      %3044 = vdwg.mxu0
      %3045 = vmatpush.bf16.msra.mxu0 0
      %3046 = vmatpush.bf16.msra.mxu0 0
      %3047 = vmatpush.bf16.msra.mxu0 0
      %3048 = vmatpush.bf16.msra.mxu0 0
      %3049 = vmatpush.bf16.msra.mxu0 0
      %3050 = vmatpush.bf16.msra.mxu0 %v2975
      %3051 = vmatpush.bf16.msra.mxu0 %v2974
      %3052 = vmatpush.bf16.msra.mxu0 %v2973
      %3053 = vmatmul.bf16.gmra.mxu0 %v2989
      %v3054 = vpop.f32.mrf.mxu0
      %v3055 = vadd.f32 %v3016, %v3054
      %v3056 = vpop.f32.mrf.mxu0
      %v3057 = vadd.f32 %v3018, %v3056
      %3058 = vmatmul.bf16.gmra.mxu0 %v2992
      %v3059 = vpop.f32.mrf.mxu0
      %v3060 = vadd.f32 %v3021, %v3059
      %v3061 = vpop.f32.mrf.mxu0
      %v3062 = vadd.f32 %v3023, %v3061
      %3063 = vmatmul.bf16.gmra.mxu0 %v2995
      %v3064 = vpop.f32.mrf.mxu0
      %v3065 = vadd.f32 %v3026, %v3064
      %v3066 = vpop.f32.mrf.mxu0
      %v3067 = vadd.f32 %v3028, %v3066
      %3068 = vmatmul.bf16.gmra.mxu0 %v2998
      %v3069 = vpop.f32.mrf.mxu0
      %v3070 = vadd.f32 %v3031, %v3069
      %v3071 = vpop.f32.mrf.mxu0
      %v3072 = vadd.f32 %v3033, %v3071
      %3073 = vmatmul.bf16.gmra.mxu0 %v3001
      %v3074 = vpop.f32.mrf.mxu0
      %v3075 = vadd.f32 %v3036, %v3074
      %v3076 = vpop.f32.mrf.mxu0
      %v3077 = vadd.f32 %v3038, %v3076
      %3078 = vmatmul.bf16.gmra.mxu0 %v3004
      %v3079 = vpop.f32.mrf.mxu0
      %v3080 = vadd.f32 %v3041, %v3079
      %v3081 = vpop.f32.mrf.mxu0
      %v3082 = vadd.f32 %v3043, %v3081
      %3083 = vdwg.mxu0
      %v3084 = vpack.c.bf16 %v3055, %v3055
      %v3085 = vpack.c.bf16 %v3057, %v3057
      %v3086 = vpack.c.bf16 %v3060, %v3060
      %v3087 = vpack.c.bf16 %v3062, %v3062
      %v3088 = vpack.c.bf16 %v3065, %v3065
      %v3089 = vpack.c.bf16 %v3067, %v3067
      %v3090 = vpack.c.bf16 %v3070, %v3070
      %v3091 = vpack.c.bf16 %v3072, %v3072
      %v3092 = vpack.c.bf16 %v3075, %v3075
      %v3093 = vpack.c.bf16 %v3077, %v3077
      %v3094 = vpack.c.bf16 %v3080, %v3080
      %v3095 = vpack.c.bf16 %v3082, %v3082
      %3096 = vst.msk [vmem:[%s363] sm:$0xf] %vm2068, %v3084
      %3097 = vst.msk [vmem:[%s363 + $0x4] sm:$0xf] %vm2068, %v3085
      %3098 = vst.msk [vmem:[%s363 + $0x8] sm:$0xf] %vm2068, %v3086
      %3099 = vst.msk [vmem:[%s363 + $0xc] sm:$0xf] %vm2068, %v3087
      %3100 = vst.msk [vmem:[%s363 + $0x10] sm:$0xf] %vm2068, %v3088
      %3101 = vst.msk [vmem:[%s363 + $0x14] sm:$0xf] %vm2068, %v3089
      %3102 = vst.msk [vmem:[%s363 + $0x18] sm:$0xf] %vm2068, %v3090
      %3103 = vst.msk [vmem:[%s363 + $0x1c] sm:$0xf] %vm2068, %v3091
      %3104 = vst.msk [vmem:[%s363 + $0x20] sm:$0xf] %vm2068, %v3092
      %3105 = vst.msk [vmem:[%s363 + $0x24] sm:$0xf] %vm2068, %v3093
      %3106 = vst.msk [vmem:[%s363 + $0x28] sm:$0xf] %vm2068, %v3094
      %3107 = vst.msk [vmem:[%s363 + $0x2c] sm:$0xf] %vm2068, %v3095
      %s3108 = smul.u32 50, %s24
      %p3109 = scmp.lt.s32.totalorder %s23, 3
      %s3110 = scalar_select %p3109, %s23, 3
      %p3111 = scmp.lt.s32.totalorder %s3108, 99
      %s3112 = scalar_select %p3111, %s3108, 99
      %s3113 = smul.addr %s3110, 100
      %s3114 = sadd.s32 %s3112, %s3113
      %s3115 = smul.addr %s3114, 4
      %s3116 = scalar_lea.vmem %s5, %s3115
      %s3117 = smul.u32 22, %s24
      %p3118 = scmp.lt.s32.totalorder %s23, 3
      %s3119 = scalar_select %p3118, %s23, 3
      %p3120 = scmp.lt.s32.totalorder %s3117, 43
      %s3121 = scalar_select %p3120, %s3117, 43
      %s3122 = smul.addr %s3119, 44
      %s3123 = sadd.s32 %s3121, %s3122
      %s3124 = smul.addr %s3123, 4
      %s3125 = scalar_lea.vmem %s6, %s3124
      %s3126 = smul.u32 12, %s24
      %p3127 = scmp.lt.s32.totalorder %s23, 3
      %s3128 = scalar_select %p3127, %s23, 3
      %p3129 = scmp.lt.s32.totalorder %s3126, 23
      %s3130 = scalar_select %p3129, %s3126, 23
      %s3131 = smul.addr %s3128, 24
      %s3132 = sadd.s32 %s3130, %s3131
      %s3133 = smul.addr %s3132, 4
      %s3134 = scalar_lea.vmem %s7, %s3133
      // Predicated region
      $region41: #{forward.4} parent=39 // pred_check
        %p3135 = pneg %p163
      $region42: #{forward.4} parent=39 // pred_check_branch
        %3137 = sbr.rel (%p3135) target = $region44
      $region43: #{forward.4} parent=39 // pred_region
        %s3138 = smul.u32 50, %s24
      $region44: #{forward.4} parent=39 // pred_fallthru
        _
      // Predicated region
      $region45: #{forward.4} parent=39 // pred_check
        %p3139 = pneg %p191
      $region46: #{forward.4} parent=39 // pred_check_branch
        %3141 = sbr.rel (%p3139) target = $region48
      $region47: #{forward.4} parent=39 // pred_region
        %s3142 = smul.u32 22, %s24
      $region48: #{forward.4} parent=39 // pred_fallthru
        _
      // Predicated region
      $region49: #{forward.4} parent=39 // pred_check
        %p3143 = pneg %p219
      $region50: #{forward.4} parent=39 // pred_check_branch
        %3145 = sbr.rel (%p3143) target = $region52
      $region51: #{forward.4} parent=39 // pred_region
        %s3146 = smul.u32 12, %s24
      $region52: #{forward.4} parent=39 // pred_fallthru
        _
    $region40: #{forward.4} parent=5 // pred_fallthru
      _
    %p3147 = scmp.le.s32.totalorder 2, %s14
    // Predicated region
    $region53: #{forward.4} parent=5 // pred_check
      %p3148 = pneg %p3147
    $region54: #{forward.4} parent=5 // pred_check_branch
      %3150 = sbr.rel (%p3148) target = $region56
    $region55: #{forward.4} parent=5 // pred_region
      %s3151 = ssub.s32 %s14, 2
      // Predicated region
      $region57: #{forward.4} parent=55 // pred_check
        %p3152 = pneg %p169
      $region58: #{forward.4} parent=55 // pred_check_branch
        %3154 = sbr.rel (%p3152) target = $region60
      $region59: #{forward.4} parent=55 // pred_region
        %s3155 = smul.u32 50, %s26
        %p3156 = scmp.lt.s32.totalorder %s25, 3
        %s3157 = scalar_select %p3156, %s25, 3
        %p3158 = scmp.lt.s32.totalorder %s3155, 99
        %s3159 = scalar_select %p3158, %s3155, 99
        %s3160 = smul.addr %s3157, 100
        %s3161 = sadd.s32 %s3159, %s3160
        %s3162 = smul.addr %s3161, 4
        %s3163 = scalar_lea.vmem %s5, %s3162
      $region60: #{forward.4} parent=55 // pred_fallthru
        _
      // Predicated region
      $region61: #{forward.4} parent=55 // pred_check
        %p3164 = pneg %p197
      $region62: #{forward.4} parent=55 // pred_check_branch
        %3166 = sbr.rel (%p3164) target = $region64
      $region63: #{forward.4} parent=55 // pred_region
        %s3167 = smul.u32 22, %s26
        %p3168 = scmp.lt.s32.totalorder %s25, 3
        %s3169 = scalar_select %p3168, %s25, 3
        %p3170 = scmp.lt.s32.totalorder %s3167, 43
        %s3171 = scalar_select %p3170, %s3167, 43
        %s3172 = smul.addr %s3169, 44
        %s3173 = sadd.s32 %s3171, %s3172
        %s3174 = smul.addr %s3173, 4
        %s3175 = scalar_lea.vmem %s6, %s3174
      $region64: #{forward.4} parent=55 // pred_fallthru
        _
      // Predicated region
      $region65: #{forward.4} parent=55 // pred_check
        %p3176 = pneg %p225
      $region66: #{forward.4} parent=55 // pred_check_branch
        %3178 = sbr.rel (%p3176) target = $region68
      $region67: #{forward.4} parent=55 // pred_region
        %s3179 = smul.u32 12, %s26
        %p3180 = scmp.lt.s32.totalorder %s25, 3
        %s3181 = scalar_select %p3180, %s25, 3
        %p3182 = scmp.lt.s32.totalorder %s3179, 23
        %s3183 = scalar_select %p3182, %s3179, 23
        %s3184 = smul.addr %s3181, 24
        %s3185 = sadd.s32 %s3183, %s3184
        %s3186 = smul.addr %s3185, 4
        %s3187 = scalar_lea.vmem %s7, %s3186
      $region68: #{forward.4} parent=55 // pred_fallthru
        _
    $region56: #{forward.4} parent=5 // pred_fallthru
      _
  $region6: #{forward.4} parent=0 // loop_footer
    %s18 = sadd.s32 1, %s14
  $region7: #{forward.4} parent=0 // loop_footer_branch
    %13 = sbr.rel target = $region3
  $region8: #{forward.4} parent=0 // loop_exit
    _

// kernel: forward.6
$region0: #{forward.6}
  #allocation0 [shape = 'u32[]', space=smem, size = 0x4, offset = 0x4, fixed_abs, tag = 'smem constant byte address 0x4 - core index']
  #allocation1 [shape = 'u32[72,128]{1,0:T(1,128)}', space=vmem, size = 0x9000, scoped, tag = 'internal scratch']
  %s0 = inlined_call_operand.vmem [shape: bf16[4,352,64], index: 0, kind: input, shape index: {}]
  %s1 = inlined_call_operand.vmem [shape: bf16[176,176], index: 1, kind: input, shape index: {}]
  %s2 = inlined_call_operand.vmem [shape: bf16[64,128], index: 2, kind: input, shape index: {}]
  %s3 = inlined_call_operand.vmem [shape: f32[4,1,128], index: 3, kind: output, shape index: {}]
  %s4 = sld [smem:[#allocation0]]
  $region53: #{forward.6} parent=0
    _
  %s6 = ssub.s32 1, %s4
  %s7 = scalar_select 0, %s6, %s4
  loop: start=0, step=1, limit=10
  $region2: #{forward.6} parent=0 // loop_pre_header
    _
  $region3: #{forward.6} parent=0 // loop_header
    %s9 = sphi 0, %s13
    %p10 = scmp.ge.s32.totalorder %s9, 10
    %s16 = sphi 0, %s28
    %s17 = sphi 0, %s24
    %s18 = sphi 0, %s16
    %s19 = sphi 0, %s17
    %s20 = sphi 0, %s18
    %s21 = sphi 0, %s19
    %s33 = sphi 0, %s35
    %s36 = sphi 0, %s33
    %s37 = sphi 0, %s36
    %s53 = sphi 0, %s37
    %s57 = sphi 0, %s57
    %s59 = sphi 0, %s57
    %s60 = sphi 0, %s59
    %s74 = sphi 0, %s60
    %s78 = sphi 0, %s78
    %s80 = sphi 0, %s78
    %s81 = sphi 0, %s80
    %s95 = sphi 0, %s81
    %s101 = sphi 0, %s103
    %s104 = sphi 0, %s101
    %s105 = sphi 0, %s104
    %s121 = sphi 0, %s105
  $region4: #{forward.6} parent=0 // loop_header_branch
    %12 = sbr.rel (%p10) target = $region8
  $region5: #{forward.6} parent=0 // loop_body
    %s14 = ssub.s32 %s9, 1
    %s15 = ssub.s32 %s9, 2
    %s22 = sadd.s32 1, %s17
    %p23 = scmp.ge.s32.totalorder %s22, 2
    %s24 = scalar_select %p23, 0, %s22
    %s25 = sadd.s32 1, %s16
    %s26 = scalar_select %p23, %s25, %s16
    %p27 = scmp.ge.s32.totalorder %s26, 4
    %s28 = scalar_select %p27, 0, %s26
    %s29 = ssub.s32 %s16, %s28
    %s30 = ssub.s32 %s17, %s24
    %s31 = sor.u32 %s29, %s30
    %p32 = scmp.eq.s32.totalorder %s31, 0
    %s34 = sadd.s32 %s33, 1
    %s35 = scalar_select %p32, %s33, %s34
    %p38 = pneg %p32
    %p39 = scmp.eq.s32.totalorder %s9, 7
    %p40 = por %p38, %p39
    %p41 = scmp.ne.s32.totalorder %s33, %s36
    %p42 = scmp.eq.s32.totalorder %s9, 0
    %p43 = por %p41, %p42
    %p44 = scmp.ne.s32.totalorder %s33, %s36
    %p45 = scmp.eq.s32.totalorder %s14, 7
    %p46 = por %p44, %p45
    %p47 = scmp.ne.s32.totalorder %s36, %s37
    %p48 = scmp.eq.s32.totalorder %s14, 0
    %p49 = por %p47, %p48
    %p50 = scmp.ne.s32.totalorder %s36, %s37
    %p51 = scmp.eq.s32.totalorder %s15, 7
    %p52 = por %p50, %p51
    %p54 = scmp.ne.s32.totalorder %s37, %s53
    %p55 = scmp.eq.s32.totalorder %s15, 0
    %p56 = por %p54, %p55
    %s58 = sadd.s32 %s57, 1
    %p61 = scmp.eq.s32.totalorder %s9, 7
    %p62 = scmp.ne.s32.totalorder %s57, %s59
    %p63 = scmp.eq.s32.totalorder %s9, 0
    %p64 = por %p62, %p63
    %p65 = scmp.ne.s32.totalorder %s57, %s59
    %p66 = scmp.eq.s32.totalorder %s14, 7
    %p67 = por %p65, %p66
    %p68 = scmp.ne.s32.totalorder %s59, %s60
    %p69 = scmp.eq.s32.totalorder %s14, 0
    %p70 = por %p68, %p69
    %p71 = scmp.ne.s32.totalorder %s59, %s60
    %p72 = scmp.eq.s32.totalorder %s15, 7
    %p73 = por %p71, %p72
    %p75 = scmp.ne.s32.totalorder %s60, %s74
    %p76 = scmp.eq.s32.totalorder %s15, 0
    %p77 = por %p75, %p76
    %s79 = sadd.s32 %s78, 1
    %p82 = scmp.eq.s32.totalorder %s9, 7
    %p83 = scmp.ne.s32.totalorder %s78, %s80
    %p84 = scmp.eq.s32.totalorder %s9, 0
    %p85 = por %p83, %p84
    %p86 = scmp.ne.s32.totalorder %s78, %s80
    %p87 = scmp.eq.s32.totalorder %s14, 7
    %p88 = por %p86, %p87
    %p89 = scmp.ne.s32.totalorder %s80, %s81
    %p90 = scmp.eq.s32.totalorder %s14, 0
    %p91 = por %p89, %p90
    %p92 = scmp.ne.s32.totalorder %s80, %s81
    %p93 = scmp.eq.s32.totalorder %s15, 7
    %p94 = por %p92, %p93
    %p96 = scmp.ne.s32.totalorder %s81, %s95
    %p97 = scmp.eq.s32.totalorder %s15, 0
    %p98 = por %p96, %p97
    %s99 = ssub.s32 %s16, %s28
    %p100 = scmp.eq.s32.totalorder %s99, 0
    %s102 = sadd.s32 %s101, 1
    %s103 = scalar_select %p100, %s101, %s102
    %p106 = pneg %p100
    %p107 = scmp.eq.s32.totalorder %s9, 7
    %p108 = por %p106, %p107
    %p109 = scmp.ne.s32.totalorder %s101, %s104
    %p110 = scmp.eq.s32.totalorder %s9, 0
    %p111 = por %p109, %p110
    %p112 = scmp.ne.s32.totalorder %s101, %s104
    %p113 = scmp.eq.s32.totalorder %s14, 7
    %p114 = por %p112, %p113
    %p115 = scmp.ne.s32.totalorder %s104, %s105
    %p116 = scmp.eq.s32.totalorder %s14, 0
    %p117 = por %p115, %p116
    %p118 = scmp.ne.s32.totalorder %s104, %s105
    %p119 = scmp.eq.s32.totalorder %s15, 7
    %p120 = por %p118, %p119
    %p122 = scmp.ne.s32.totalorder %s105, %s121
    %p123 = scmp.eq.s32.totalorder %s15, 0
    %p124 = por %p122, %p123
    %p125 = scmp.le.s32.totalorder 1, %s9
    %p126 = scmp.lt.s32.totalorder %s9, 9
    %p127 = pnand %p125, %p126
    %p128 = pneg %p127
    // Predicated region
    $region9: #{forward.6} parent=5 // pred_check
      _
    $region10: #{forward.6} parent=5 // pred_check_branch
      %130 = sbr.rel (%p127) target = $region12
    $region11: #{forward.6} parent=5 // pred_region
      %s131 = ssub.s32 %s9, 1
      // Predicated region
      $region13: #{forward.6} parent=11 // pred_check
        %p132 = pneg %p70
      $region14: #{forward.6} parent=11 // pred_check_branch
        %134 = sbr.rel (%p132) target = $region16
      $region15: #{forward.6} parent=11 // pred_region
        _
      $region16: #{forward.6} parent=11 // pred_fallthru
        _
      // Predicated region
      $region17: #{forward.6} parent=11 // pred_check
        %p135 = pneg %p91
      $region18: #{forward.6} parent=11 // pred_check_branch
        %137 = sbr.rel (%p135) target = $region20
      $region19: #{forward.6} parent=11 // pred_region
        _
      $region20: #{forward.6} parent=11 // pred_fallthru
        _
    $region12: #{forward.6} parent=5 // pred_fallthru
      _
    %p138 = scmp.lt.s32.totalorder %s9, 8
    // Predicated region
    $region21: #{forward.6} parent=5 // pred_check
      %p139 = pneg %p138
    $region22: #{forward.6} parent=5 // pred_check_branch
      %141 = sbr.rel (%p139) target = $region24
    $region23: #{forward.6} parent=5 // pred_region
      // Predicated region
      $region25: #{forward.6} parent=23 // pred_check
        %p142 = pneg %p43
      $region26: #{forward.6} parent=23 // pred_check_branch
        %144 = sbr.rel (%p142) target = $region28
      $region27: #{forward.6} parent=23 // pred_region
        %s145 = smul.u32 22, %s17
        %p146 = scmp.lt.s32.totalorder %s16, 3
        %s147 = scalar_select %p146, %s16, 3
        %p148 = scmp.lt.s32.totalorder %s145, 43
        %s149 = scalar_select %p148, %s145, 43
        %s150 = smul.addr %s147, 44
        %s151 = sadd.s32 %s149, %s150
        %s152 = smul.addr %s151, 4
        %s153 = scalar_lea.vmem %s0, %s152
        %s154 = smul.u32 22, %s17
      $region28: #{forward.6} parent=23 // pred_fallthru
        _
    $region24: #{forward.6} parent=5 // pred_fallthru
      _
    %p155 = scmp.le.s32.totalorder 1, %s9
    %p156 = scmp.lt.s32.totalorder %s9, 9
    %p157 = pnand %p155, %p156
    %p158 = pneg %p157
    // Predicated region
    $region29: #{forward.6} parent=5 // pred_check
      _
    $region30: #{forward.6} parent=5 // pred_check_branch
      %160 = sbr.rel (%p157) target = $region32
    $region31: #{forward.6} parent=5 // pred_region
      %s161 = ssub.s32 %s9, 1
      %s162 = smul.u32 22, %s19
      %p163 = scmp.lt.s32.totalorder %s18, 3
      %s164 = scalar_select %p163, %s18, 3
      %p165 = scmp.lt.s32.totalorder %s162, 43
      %s166 = scalar_select %p165, %s162, 43
      %s167 = smul.addr %s164, 44
      %s168 = sadd.s32 %s166, %s167
      %s169 = smul.addr %s168, 4
      %s170 = scalar_lea.vmem %s0, %s169
      %p171 = pneg %p49
      %p172 = pneg %p46
      %p173 = pneg %p70
      %p174 = pneg %p67
      %p175 = pneg %p91
      %p176 = pneg %p88
      %p177 = pneg %p117
      %p178 = pneg %p114
      %p179 = scmp.lt.s32.totalorder %s18, 3
      %s180 = scalar_select %p179, %s18, 3
      %s181 = scalar_lea.vmem %s3, %s180
      %s182 = smul.u32 22, %s19
      %p183 = scmp.lt.s32.totalorder %s18, 3
      %s184 = scalar_select %p183, %s18, 3
      %p185 = scmp.lt.s32.totalorder %s182, 43
      %s186 = scalar_select %p185, %s182, 43
      %s187 = smul.addr %s184, 44
      %s188 = sadd.s32 %s186, %s187
      %s189 = smul.addr %s188, 4
      %s190 = scalar_lea.vmem %s0, %s189
      %s191 = smul.u32 22, %s19
      %p192 = scmp.lt.s32.totalorder %s18, 3
      %s193 = scalar_select %p192, %s18, 3
      %s194 = scalar_lea.vmem %s3, %s193
      %v196 = vld [vmem:[%s190] sm:$0xf]
      %v197 = vld [vmem:[%s190 + $0x4] sm:$0xf]
      %v198 = vld [vmem:[%s190 + $0x8] sm:$0xf]
      %v199 = vld [vmem:[%s190 + $0xc] sm:$0xf]
      %v200 = vld [vmem:[%s190 + $0x10] sm:$0xf]
      %v201 = vld [vmem:[%s190 + $0x14] sm:$0xf]
      %v202 = vld [vmem:[%s190 + $0x18] sm:$0xf]
      %v203 = vld [vmem:[%s190 + $0x1c] sm:$0xf]
      %v204 = vld [vmem:[%s190 + $0x20] sm:$0xf]
      %v205 = vld [vmem:[%s190 + $0x24] sm:$0xf]
      %v206 = vld [vmem:[%s190 + $0x28] sm:$0xf]
      %v207 = vld [vmem:[%s190 + $0x2c] sm:$0xf]
      %v208 = vld [vmem:[%s190 + $0x30] sm:$0xf]
      %v209 = vld [vmem:[%s190 + $0x34] sm:$0xf]
      %v210 = vld [vmem:[%s190 + $0x38] sm:$0xf]
      %v211 = vld [vmem:[%s190 + $0x3c] sm:$0xf]
      %v212 = vld [vmem:[%s190 + $0x40] sm:$0xf]
      %v213 = vld [vmem:[%s190 + $0x44] sm:$0xf]
      %v214 = vld [vmem:[%s190 + $0x48] sm:$0xf]
      %v215 = vld [vmem:[%s190 + $0x4c] sm:$0xf]
      %v216 = vld [vmem:[%s190 + $0x50] sm:$0xf]
      %v217 = vld [vmem:[%s190 + $0x54] sm:$0xf]
      %v218 = vld [vmem:[%s1] sm:$0xff]
      %v219 = vld [vmem:[%s1 + $0x8] sm:$0xff]
      %v220 = vld [vmem:[%s1 + $0x10] sm:$0xff]
      %v221 = vld [vmem:[%s1 + $0x18] sm:$0xff]
      %v222 = vld [vmem:[%s1 + $0x20] sm:$0xff]
      %v223 = vld [vmem:[%s1 + $0x28] sm:$0xff]
      %v224 = vld [vmem:[%s1 + $0x30] sm:$0xff]
      %v225 = vld [vmem:[%s1 + $0x38] sm:$0xff]
      %v226 = vld [vmem:[%s1 + $0x40] sm:$0xff]
      %v227 = vld [vmem:[%s1 + $0x48] sm:$0xff]
      %v228 = vld [vmem:[%s1 + $0x50] sm:$0xff]
      %v229 = vld [vmem:[%s1 + $0x58] sm:$0xff]
      %v230 = vld [vmem:[%s1 + $0x60] sm:$0xff]
      %v231 = vld [vmem:[%s1 + $0x68] sm:$0xff]
      %v232 = vld [vmem:[%s1 + $0x70] sm:$0xff]
      %v233 = vld [vmem:[%s1 + $0x78] sm:$0xff]
      %v234 = vld [vmem:[%s1 + $0x80] sm:$0xff]
      %v235 = vld [vmem:[%s1 + $0x88] sm:$0xff]
      %v236 = vld [vmem:[%s1 + $0x90] sm:$0xff]
      %v237 = vld [vmem:[%s1 + $0x98] sm:$0xff]
      %v238 = vld [vmem:[%s1 + $0xa0] sm:$0xff]
      %v239 = vld [vmem:[%s1 + $0xa8] sm:$0xff]
      %v262 = vunpack.c.l.b16 %v218
      %v263 = vunpack.c.h.b16 %v218
      %v264 = vunpack.c.l.b16 %v219
      %v265 = vunpack.c.h.b16 %v219
      %v266 = vunpack.c.l.b16 %v220
      %v267 = vunpack.c.h.b16 %v220
      %v268 = vunpack.c.l.b16 %v221
      %v269 = vunpack.c.h.b16 %v221
      %v270 = vunpack.c.l.b16 %v222
      %v271 = vunpack.c.h.b16 %v222
      %v272 = vunpack.c.l.b16 %v223
      %v273 = vunpack.c.h.b16 %v223
      %v274 = vunpack.c.l.b16 %v224
      %v275 = vunpack.c.h.b16 %v224
      %v276 = vunpack.c.l.b16 %v225
      %v277 = vunpack.c.h.b16 %v225
      %v278 = vunpack.c.l.b16 %v226
      %v279 = vunpack.c.h.b16 %v226
      %v280 = vunpack.c.l.b16 %v227
      %v281 = vunpack.c.h.b16 %v227
      %v282 = vunpack.c.l.b16 %v228
      %v283 = vunpack.c.h.b16 %v228
      %v284 = vunpack.c.l.b16 %v229
      %v285 = vunpack.c.h.b16 %v229
      %v286 = vunpack.c.l.b16 %v230
      %v287 = vunpack.c.h.b16 %v230
      %v288 = vunpack.c.l.b16 %v231
      %v289 = vunpack.c.h.b16 %v231
      %v290 = vunpack.c.l.b16 %v232
      %v291 = vunpack.c.h.b16 %v232
      %v292 = vunpack.c.l.b16 %v233
      %v293 = vunpack.c.h.b16 %v233
      %v294 = vunpack.c.l.b16 %v234
      %v295 = vunpack.c.h.b16 %v234
      %v296 = vunpack.c.l.b16 %v235
      %v297 = vunpack.c.h.b16 %v235
      %v298 = vunpack.c.l.b16 %v236
      %v299 = vunpack.c.h.b16 %v236
      %v300 = vunpack.c.l.b16 %v237
      %v301 = vunpack.c.h.b16 %v237
      %v302 = vunpack.c.l.b16 %v238
      %v303 = vunpack.c.h.b16 %v238
      %v304 = vunpack.c.l.b16 %v239
      %v305 = vunpack.c.h.b16 %v239
      %v306 = vpack.c.b16 %v264, %v262
      %v307 = vpack.c.b16 %v265, %v263
      %v308 = vpack.c.b16 %v268, %v266
      %v309 = vpack.c.b16 %v269, %v267
      %v310 = vpack.c.b16 %v272, %v270
      %v311 = vpack.c.b16 %v273, %v271
      %v312 = vpack.c.b16 %v276, %v274
      %v313 = vpack.c.b16 %v277, %v275
      %v314 = vpack.c.b16 %v280, %v278
      %v315 = vpack.c.b16 %v281, %v279
      %v316 = vpack.c.b16 %v284, %v282
      %v317 = vpack.c.b16 %v285, %v283
      %v318 = vpack.c.b16 %v288, %v286
      %v319 = vpack.c.b16 %v289, %v287
      %v320 = vpack.c.b16 %v292, %v290
      %v321 = vpack.c.b16 %v293, %v291
      %v322 = vpack.c.b16 %v296, %v294
      %v323 = vpack.c.b16 %v297, %v295
      %v324 = vpack.c.b16 %v300, %v298
      %v325 = vpack.c.b16 %v301, %v299
      %v326 = vpack.c.b16 %v304, %v302
      %v327 = vpack.c.b16 %v305, %v303
      %v361 = vunpack.c.l.b16 %v196
      %v362 = vunpack.c.l.b16 %v197
      %v363 = vunpack.c.l.b16 %v198
      %v364 = vunpack.c.l.b16 %v199
      %v365 = vunpack.c.l.b16 %v200
      %v366 = vunpack.c.l.b16 %v201
      %v367 = vunpack.c.l.b16 %v202
      %v368 = vunpack.c.l.b16 %v203
      %v369 = vunpack.c.l.b16 %v204
      %v370 = vunpack.c.l.b16 %v205
      %v371 = vunpack.c.l.b16 %v206
      %v372 = vunpack.c.l.b16 %v207
      %v373 = vunpack.c.l.b16 %v208
      %v374 = vunpack.c.l.b16 %v209
      %v375 = vunpack.c.l.b16 %v210
      %v376 = vunpack.c.l.b16 %v211
      %v377 = vunpack.c.l.b16 %v212
      %v378 = vunpack.c.l.b16 %v213
      %v379 = vunpack.c.l.b16 %v214
      %v380 = vunpack.c.l.b16 %v215
      %v381 = vunpack.c.l.b16 %v216
      %v382 = vunpack.c.l.b16 %v217
      %v383 = vpack.c.b16 %v362, %v361
      %v384 = vpack.c.b16 %v364, %v363
      %v385 = vpack.c.b16 %v366, %v365
      %v386 = vpack.c.b16 %v368, %v367
      %v387 = vpack.c.b16 %v370, %v369
      %v388 = vpack.c.b16 %v372, %v371
      %v389 = vpack.c.b16 %v374, %v373
      %v390 = vpack.c.b16 %v376, %v375
      %v391 = vpack.c.b16 %v378, %v377
      %v392 = vpack.c.b16 %v380, %v379
      %v393 = vpack.c.b16 %v382, %v381
      %vm405 = vcmask 392192
      %v407 = vsel %vm405, %v307, 0
      %v410 = vsel %vm405, %v309, 0
      %v413 = vsel %vm405, %v311, 0
      %v416 = vsel %vm405, %v313, 0
      %v419 = vsel %vm405, %v315, 0
      %v422 = vsel %vm405, %v317, 0
      %v425 = vsel %vm405, %v319, 0
      %v428 = vsel %vm405, %v321, 0
      %v431 = vsel %vm405, %v323, 0
      %v434 = vsel %vm405, %v325, 0
      %v437 = vsel %vm405, %v327, 0
      %439 = vmatpush.bf16.msra.mxu0 %v390
      %440 = vmatpush.bf16.msra.mxu0 %v389
      %441 = vmatpush.bf16.msra.mxu0 %v388
      %442 = vmatpush.bf16.msra.mxu0 %v387
      %443 = vmatpush.bf16.msra.mxu0 %v386
      %444 = vmatpush.bf16.msra.mxu0 %v385
      %445 = vmatpush.bf16.msra.mxu0 %v384
      %446 = vmatpush.bf16.msra.mxu0 %v383
      %447 = vmatmul.bf16.gmra.mxu0 %v306
      %v448 = vpop.f32.mrf.mxu0
      %v449 = vadd.f32 0.0, %v448
      %v450 = vpop.f32.mrf.mxu0
      %v451 = vadd.f32 0.0, %v450
      %452 = vmatmul.bf16.gmra.mxu0 %v308
      %v453 = vpop.f32.mrf.mxu0
      %v454 = vadd.f32 0.0, %v453
      %v455 = vpop.f32.mrf.mxu0
      %v456 = vadd.f32 0.0, %v455
      %457 = vmatmul.bf16.gmra.mxu0 %v310
      %v458 = vpop.f32.mrf.mxu0
      %v459 = vadd.f32 0.0, %v458
      %v460 = vpop.f32.mrf.mxu0
      %v461 = vadd.f32 0.0, %v460
      %462 = vmatmul.bf16.gmra.mxu0 %v312
      %v463 = vpop.f32.mrf.mxu0
      %v464 = vadd.f32 0.0, %v463
      %v465 = vpop.f32.mrf.mxu0
      %v466 = vadd.f32 0.0, %v465
      %467 = vmatmul.bf16.gmra.mxu0 %v314
      %v468 = vpop.f32.mrf.mxu0
      %v469 = vadd.f32 0.0, %v468
      %v470 = vpop.f32.mrf.mxu0
      %v471 = vadd.f32 0.0, %v470
      %472 = vmatmul.bf16.gmra.mxu0 %v316
      %v473 = vpop.f32.mrf.mxu0
      %v474 = vadd.f32 0.0, %v473
      %v475 = vpop.f32.mrf.mxu0
      %v476 = vadd.f32 0.0, %v475
      %477 = vmatmul.bf16.gmra.mxu0 %v318
      %v478 = vpop.f32.mrf.mxu0
      %v479 = vadd.f32 0.0, %v478
      %v480 = vpop.f32.mrf.mxu0
      %v481 = vadd.f32 0.0, %v480
      %482 = vmatmul.bf16.gmra.mxu0 %v320
      %v483 = vpop.f32.mrf.mxu0
      %v484 = vadd.f32 0.0, %v483
      %v485 = vpop.f32.mrf.mxu0
      %v486 = vadd.f32 0.0, %v485
      %487 = vmatmul.bf16.gmra.mxu0 %v322
      %v488 = vpop.f32.mrf.mxu0
      %v489 = vadd.f32 0.0, %v488
      %v490 = vpop.f32.mrf.mxu0
      %v491 = vadd.f32 0.0, %v490
      %492 = vmatmul.bf16.gmra.mxu0 %v324
      %v493 = vpop.f32.mrf.mxu0
      %v494 = vadd.f32 0.0, %v493
      %v495 = vpop.f32.mrf.mxu0
      %v496 = vadd.f32 0.0, %v495
      %497 = vmatmul.bf16.gmra.mxu0 %v326
      %v498 = vpop.f32.mrf.mxu0
      %v499 = vadd.f32 0.0, %v498
      %v500 = vpop.f32.mrf.mxu0
      %v501 = vadd.f32 0.0, %v500
      %502 = vdwg.mxu0
      %503 = vmatpush.bf16.msra.mxu0 0
      %504 = vmatpush.bf16.msra.mxu0 0
      %505 = vmatpush.bf16.msra.mxu0 0
      %506 = vmatpush.bf16.msra.mxu0 0
      %507 = vmatpush.bf16.msra.mxu0 0
      %508 = vmatpush.bf16.msra.mxu0 %v393
      %509 = vmatpush.bf16.msra.mxu0 %v392
      %510 = vmatpush.bf16.msra.mxu0 %v391
      %511 = vmatmul.bf16.gmra.mxu0 %v407
      %v512 = vpop.f32.mrf.mxu0
      %v513 = vadd.f32 %v449, %v512
      %v514 = vpop.f32.mrf.mxu0
      %v515 = vadd.f32 %v451, %v514
      %516 = vmatmul.bf16.gmra.mxu0 %v410
      %v517 = vpop.f32.mrf.mxu0
      %v518 = vadd.f32 %v454, %v517
      %v519 = vpop.f32.mrf.mxu0
      %v520 = vadd.f32 %v456, %v519
      %521 = vmatmul.bf16.gmra.mxu0 %v413
      %v522 = vpop.f32.mrf.mxu0
      %v523 = vadd.f32 %v459, %v522
      %v524 = vpop.f32.mrf.mxu0
      %v525 = vadd.f32 %v461, %v524
      %526 = vmatmul.bf16.gmra.mxu0 %v416
      %v527 = vpop.f32.mrf.mxu0
      %v528 = vadd.f32 %v464, %v527
      %v529 = vpop.f32.mrf.mxu0
      %v530 = vadd.f32 %v466, %v529
      %531 = vmatmul.bf16.gmra.mxu0 %v419
      %v532 = vpop.f32.mrf.mxu0
      %v533 = vadd.f32 %v469, %v532
      %v534 = vpop.f32.mrf.mxu0
      %v535 = vadd.f32 %v471, %v534
      %536 = vmatmul.bf16.gmra.mxu0 %v422
      %v537 = vpop.f32.mrf.mxu0
      %v538 = vadd.f32 %v474, %v537
      %v539 = vpop.f32.mrf.mxu0
      %v540 = vadd.f32 %v476, %v539
      %541 = vmatmul.bf16.gmra.mxu0 %v425
      %v542 = vpop.f32.mrf.mxu0
      %v543 = vadd.f32 %v479, %v542
      %v544 = vpop.f32.mrf.mxu0
      %v545 = vadd.f32 %v481, %v544
      %546 = vmatmul.bf16.gmra.mxu0 %v428
      %v547 = vpop.f32.mrf.mxu0
      %v548 = vadd.f32 %v484, %v547
      %v549 = vpop.f32.mrf.mxu0
      %v550 = vadd.f32 %v486, %v549
      %551 = vmatmul.bf16.gmra.mxu0 %v431
      %v552 = vpop.f32.mrf.mxu0
      %v553 = vadd.f32 %v489, %v552
      %v554 = vpop.f32.mrf.mxu0
      %v555 = vadd.f32 %v491, %v554
      %556 = vmatmul.bf16.gmra.mxu0 %v434
      %v557 = vpop.f32.mrf.mxu0
      %v558 = vadd.f32 %v494, %v557
      %v559 = vpop.f32.mrf.mxu0
      %v560 = vadd.f32 %v496, %v559
      %561 = vmatmul.bf16.gmra.mxu0 %v437
      %v562 = vpop.f32.mrf.mxu0
      %v563 = vadd.f32 %v499, %v562
      %v564 = vpop.f32.mrf.mxu0
      %v565 = vadd.f32 %v501, %v564
      %566 = vdwg.mxu0
      %v567 = vpack.c.bf16 %v515, %v513
      %v568 = vpack.c.bf16 %v520, %v518
      %v569 = vpack.c.bf16 %v525, %v523
      %v570 = vpack.c.bf16 %v530, %v528
      %v571 = vpack.c.bf16 %v535, %v533
      %v572 = vpack.c.bf16 %v540, %v538
      %v573 = vpack.c.bf16 %v545, %v543
      %v574 = vpack.c.bf16 %v550, %v548
      %v575 = vpack.c.bf16 %v555, %v553
      %v576 = vpack.c.bf16 %v560, %v558
      %v577 = vpack.c.bf16 %v565, %v563
      %v578 = vld [vmem:[%s2] sm:$0xf]
      %v579 = vld [vmem:[%s2 + $0x4] sm:$0xf]
      %v580 = vld [vmem:[%s2 + $0x8] sm:$0xf]
      %v581 = vld [vmem:[%s2 + $0xc] sm:$0xf]
      %v582 = vld [vmem:[%s2 + $0x10] sm:$0xf]
      %v583 = vld [vmem:[%s2 + $0x14] sm:$0xf]
      %v584 = vld [vmem:[%s2 + $0x18] sm:$0xf]
      %v585 = vld [vmem:[%s2 + $0x1c] sm:$0xf]
      %v594 = vunpack.c.l.b16 %v578
      %v595 = vunpack.c.l.b16 %v579
      %v596 = vunpack.c.l.b16 %v580
      %v597 = vunpack.c.l.b16 %v581
      %v598 = vunpack.c.l.b16 %v582
      %v599 = vunpack.c.l.b16 %v583
      %v600 = vunpack.c.l.b16 %v584
      %v601 = vunpack.c.l.b16 %v585
      %v602 = vpack.c.b16 %v595, %v594
      %v603 = vpack.c.b16 %v597, %v596
      %v604 = vpack.c.b16 %v599, %v598
      %v605 = vpack.c.b16 %v601, %v600
      %vm610 = vcmask 523264
      %v612 = vsel %vm610, %v567, 0
      %v615 = vsel %vm610, %v568, 0
      %v618 = vsel %vm610, %v569, 0
      %v621 = vsel %vm610, %v570, 0
      %v624 = vsel %vm610, %v571, 0
      %v627 = vsel %vm610, %v572, 0
      %v630 = vsel %vm610, %v573, 0
      %v633 = vsel %vm610, %v574, 0
      %v636 = vsel %vm610, %v575, 0
      %v639 = vsel %vm610, %v576, 0
      %v642 = vsel %vm610, %v577, 0
      %644 = vmatpush.bf16.msra.mxu0 0
      %645 = vmatpush.bf16.msra.mxu0 0
      %646 = vmatpush.bf16.msra.mxu0 0
      %647 = vmatpush.bf16.msra.mxu0 0
      %648 = vmatpush.bf16.msra.mxu0 %v605
      %649 = vmatpush.bf16.msra.mxu0 %v604
      %650 = vmatpush.bf16.msra.mxu0 %v603
      %651 = vmatpush.bf16.msra.mxu0 %v602
      %652 = vmatmul.bf16.gmra.mxu0 %v612
      %v653 = vpop.f32.mrf.mxu0
      %v654 = vadd.f32 0.0, %v653
      %v655 = vpop.f32.mrf.mxu0
      %v656 = vadd.f32 0.0, %v655
      %657 = vmatmul.bf16.gmra.mxu0 %v615
      %v658 = vpop.f32.mrf.mxu0
      %v659 = vadd.f32 0.0, %v658
      %v660 = vpop.f32.mrf.mxu0
      %v661 = vadd.f32 0.0, %v660
      %662 = vmatmul.bf16.gmra.mxu0 %v618
      %v663 = vpop.f32.mrf.mxu0
      %v664 = vadd.f32 0.0, %v663
      %v665 = vpop.f32.mrf.mxu0
      %v666 = vadd.f32 0.0, %v665
      %667 = vmatmul.bf16.gmra.mxu0 %v621
      %v668 = vpop.f32.mrf.mxu0
      %v669 = vadd.f32 0.0, %v668
      %v670 = vpop.f32.mrf.mxu0
      %v671 = vadd.f32 0.0, %v670
      %672 = vmatmul.bf16.gmra.mxu0 %v624
      %v673 = vpop.f32.mrf.mxu0
      %v674 = vadd.f32 0.0, %v673
      %v675 = vpop.f32.mrf.mxu0
      %v676 = vadd.f32 0.0, %v675
      %677 = vmatmul.bf16.gmra.mxu0 %v627
      %v678 = vpop.f32.mrf.mxu0
      %v679 = vadd.f32 0.0, %v678
      %v680 = vpop.f32.mrf.mxu0
      %v681 = vadd.f32 0.0, %v680
      %682 = vmatmul.bf16.gmra.mxu0 %v630
      %v683 = vpop.f32.mrf.mxu0
      %v684 = vadd.f32 0.0, %v683
      %v685 = vpop.f32.mrf.mxu0
      %v686 = vadd.f32 0.0, %v685
      %687 = vmatmul.bf16.gmra.mxu0 %v633
      %v688 = vpop.f32.mrf.mxu0
      %v689 = vadd.f32 0.0, %v688
      %v690 = vpop.f32.mrf.mxu0
      %v691 = vadd.f32 0.0, %v690
      %692 = vmatmul.bf16.gmra.mxu0 %v636
      %v693 = vpop.f32.mrf.mxu0
      %v694 = vadd.f32 0.0, %v693
      %v695 = vpop.f32.mrf.mxu0
      %v696 = vadd.f32 0.0, %v695
      %697 = vmatmul.bf16.gmra.mxu0 %v639
      %v698 = vpop.f32.mrf.mxu0
      %v699 = vadd.f32 0.0, %v698
      %v700 = vpop.f32.mrf.mxu0
      %v701 = vadd.f32 0.0, %v700
      %702 = vmatmul.bf16.gmra.mxu0 %v642
      %v703 = vpop.f32.mrf.mxu0
      %v704 = vadd.f32 0.0, %v703
      %v705 = vpop.f32.mrf.mxu0
      %v706 = vadd.f32 0.0, %v705
      %707 = vdwg.mxu0
      %v708 = vmax.f32 %v654, 0.0
      %v709 = vmax.f32 %v656, 0.0
      %v710 = vmax.f32 %v659, 0.0
      %v711 = vmax.f32 %v661, 0.0
      %v712 = vmax.f32 %v664, 0.0
      %v713 = vmax.f32 %v666, 0.0
      %v714 = vmax.f32 %v669, 0.0
      %v715 = vmax.f32 %v671, 0.0
      %v716 = vmax.f32 %v674, 0.0
      %v717 = vmax.f32 %v676, 0.0
      %v718 = vmax.f32 %v679, 0.0
      %v719 = vmax.f32 %v681, 0.0
      %v720 = vmax.f32 %v684, 0.0
      %v721 = vmax.f32 %v686, 0.0
      %v722 = vmax.f32 %v689, 0.0
      %v723 = vmax.f32 %v691, 0.0
      %v724 = vmax.f32 %v694, 0.0
      %v725 = vmax.f32 %v696, 0.0
      %v726 = vmax.f32 %v699, 0.0
      %v727 = vmax.f32 %v701, 0.0
      %v728 = vmax.f32 %v704, 0.0
      %v729 = vmax.f32 %v706, 0.0
      %v730 = vadd.f32 %v708, %v709
      %v731 = vadd.f32 %v730, %v710
      %v732 = vadd.f32 %v731, %v711
      %v733 = vadd.f32 %v732, %v712
      %v734 = vadd.f32 %v733, %v713
      %v735 = vadd.f32 %v734, %v714
      %v736 = vadd.f32 %v735, %v715
      %v737 = vadd.f32 %v736, %v716
      %v738 = vadd.f32 %v737, %v717
      %v739 = vadd.f32 %v738, %v718
      %v740 = vadd.f32 %v739, %v719
      %v741 = vadd.f32 %v740, %v720
      %v742 = vadd.f32 %v741, %v721
      %v743 = vadd.f32 %v742, %v722
      %v744 = vadd.f32 %v743, %v723
      %v745 = vadd.f32 %v744, %v724
      %v746 = vadd.f32 %v745, %v725
      %v747 = vadd.f32 %v746, %v726
      %v748 = vadd.f32 %v747, %v727
      %v749 = vadd.f32 %v748, %v728
      %v750 = vadd.f32 %v749, %v729
      %v751 = vrot.slane %v750, 4
      %v752 = vadd.f32 %v750, %v751
      %v753 = vrot.slane %v752, 2
      %v754 = vadd.f32 %v752, %v753
      %v755 = vrot.slane %v754, 1
      %v756 = vadd.f32 %v754, %v755
      %p757 = scmp.eq.s32.totalorder %s19, 0
      // Predicated region
      $region33: #{forward.6} parent=31 // pred_check
        %p758 = pneg %p757
      $region34: #{forward.6} parent=31 // pred_check_branch
        %760 = sbr.rel (%p758) target = $region36
      $region35: #{forward.6} parent=31 // pred_region
        %761 = vst [vmem:[%s194] sm:$0x1] 0.0
      $region36: #{forward.6} parent=31 // pred_fallthru
        _
      %v762 = vld [vmem:[%s194] sm:$0x1]
      %v763 = vadd.f32 %v762, %v756
      %764 = vst [vmem:[%s194] sm:$0x1] %v763
      %p765 = scmp.eq.s32.totalorder %s19, 1
      // Predicated region
      $region37: #{forward.6} parent=31 // pred_check
        %p766 = pneg %p765
      $region38: #{forward.6} parent=31 // pred_check_branch
        %768 = sbr.rel (%p766) target = $region40
      $region39: #{forward.6} parent=31 // pred_region
        %v769 = vld [vmem:[%s194] sm:$0x1]
        %v770 = vmul.f32 %v769, 0.003787879
        %771 = vst [vmem:[%s194] sm:$0x1] %v770
      $region40: #{forward.6} parent=31 // pred_fallthru
        _
      %p772 = scmp.lt.s32.totalorder %s18, 3
      %s773 = scalar_select %p772, %s18, 3
      %s774 = scalar_lea.vmem %s3, %s773
      // Predicated region
      $region41: #{forward.6} parent=31 // pred_check
        %p775 = pneg %p114
      $region42: #{forward.6} parent=31 // pred_check_branch
        %777 = sbr.rel (%p775) target = $region44
      $region43: #{forward.6} parent=31 // pred_region
        _
      $region44: #{forward.6} parent=31 // pred_fallthru
        _
    $region32: #{forward.6} parent=5 // pred_fallthru
      _
    %p778 = scmp.le.s32.totalorder 2, %s9
    // Predicated region
    $region45: #{forward.6} parent=5 // pred_check
      %p779 = pneg %p778
    $region46: #{forward.6} parent=5 // pred_check_branch
      %781 = sbr.rel (%p779) target = $region48
    $region47: #{forward.6} parent=5 // pred_region
      %s782 = ssub.s32 %s9, 2
      // Predicated region
      $region49: #{forward.6} parent=47 // pred_check
        %p783 = pneg %p120
      $region50: #{forward.6} parent=47 // pred_check_branch
        %785 = sbr.rel (%p783) target = $region52
      $region51: #{forward.6} parent=47 // pred_region
        %p786 = scmp.lt.s32.totalorder %s20, 3
        %s787 = scalar_select %p786, %s20, 3
        %s788 = scalar_lea.vmem %s3, %s787
      $region52: #{forward.6} parent=47 // pred_fallthru
        _
    $region48: #{forward.6} parent=5 // pred_fallthru
      _
  $region6: #{forward.6} parent=0 // loop_footer
    %s13 = sadd.s32 1, %s9
  $region7: #{forward.6} parent=0 // loop_footer_branch
    %8 = sbr.rel target = $region3
  $region8: #{forward.6} parent=0 // loop_exit
    _

// kernel: forward.5
$region0: #{forward.5}
  #allocation0 [shape = 'u32[]', space=smem, size = 0x4, offset = 0x4, fixed_abs, tag = 'smem constant byte address 0x4 - core index']
  #allocation1 [shape = 'u32[72,128]{1,0:T(1,128)}', space=vmem, size = 0x9000, scoped, tag = 'internal scratch']
  %s0 = inlined_call_operand.vmem [shape: bf16[4,800,64], index: 0, kind: input, shape index: {}]
  %s1 = inlined_call_operand.vmem [shape: bf16[400,400], index: 1, kind: input, shape index: {}]
  %s2 = inlined_call_operand.vmem [shape: bf16[64,128], index: 2, kind: input, shape index: {}]
  %s3 = inlined_call_operand.vmem [shape: f32[4,1,128], index: 3, kind: output, shape index: {}]
  %s4 = sld [smem:[#allocation0]]
  $region53: #{forward.5} parent=0
    _
  %s6 = ssub.s32 1, %s4
  %s7 = scalar_select 0, %s6, %s4
  loop: start=0, step=1, limit=10
  $region2: #{forward.5} parent=0 // loop_pre_header
    _
  $region3: #{forward.5} parent=0 // loop_header
    %s9 = sphi 0, %s13
    %p10 = scmp.ge.s32.totalorder %s9, 10
    %s16 = sphi 0, %s28
    %s17 = sphi 0, %s24
    %s18 = sphi 0, %s16
    %s19 = sphi 0, %s17
    %s20 = sphi 0, %s18
    %s21 = sphi 0, %s19
    %s33 = sphi 0, %s35
    %s36 = sphi 0, %s33
    %s37 = sphi 0, %s36
    %s53 = sphi 0, %s37
    %s57 = sphi 0, %s57
    %s59 = sphi 0, %s57
    %s60 = sphi 0, %s59
    %s74 = sphi 0, %s60
    %s78 = sphi 0, %s78
    %s80 = sphi 0, %s78
    %s81 = sphi 0, %s80
    %s95 = sphi 0, %s81
    %s101 = sphi 0, %s103
    %s104 = sphi 0, %s101
    %s105 = sphi 0, %s104
    %s121 = sphi 0, %s105
  $region4: #{forward.5} parent=0 // loop_header_branch
    %12 = sbr.rel (%p10) target = $region8
  $region5: #{forward.5} parent=0 // loop_body
    %s14 = ssub.s32 %s9, 1
    %s15 = ssub.s32 %s9, 2
    %s22 = sadd.s32 1, %s17
    %p23 = scmp.ge.s32.totalorder %s22, 2
    %s24 = scalar_select %p23, 0, %s22
    %s25 = sadd.s32 1, %s16
    %s26 = scalar_select %p23, %s25, %s16
    %p27 = scmp.ge.s32.totalorder %s26, 4
    %s28 = scalar_select %p27, 0, %s26
    %s29 = ssub.s32 %s16, %s28
    %s30 = ssub.s32 %s17, %s24
    %s31 = sor.u32 %s29, %s30
    %p32 = scmp.eq.s32.totalorder %s31, 0
    %s34 = sadd.s32 %s33, 1
    %s35 = scalar_select %p32, %s33, %s34
    %p38 = pneg %p32
    %p39 = scmp.eq.s32.totalorder %s9, 7
    %p40 = por %p38, %p39
    %p41 = scmp.ne.s32.totalorder %s33, %s36
    %p42 = scmp.eq.s32.totalorder %s9, 0
    %p43 = por %p41, %p42
    %p44 = scmp.ne.s32.totalorder %s33, %s36
    %p45 = scmp.eq.s32.totalorder %s14, 7
    %p46 = por %p44, %p45
    %p47 = scmp.ne.s32.totalorder %s36, %s37
    %p48 = scmp.eq.s32.totalorder %s14, 0
    %p49 = por %p47, %p48
    %p50 = scmp.ne.s32.totalorder %s36, %s37
    %p51 = scmp.eq.s32.totalorder %s15, 7
    %p52 = por %p50, %p51
    %p54 = scmp.ne.s32.totalorder %s37, %s53
    %p55 = scmp.eq.s32.totalorder %s15, 0
    %p56 = por %p54, %p55
    %s58 = sadd.s32 %s57, 1
    %p61 = scmp.eq.s32.totalorder %s9, 7
    %p62 = scmp.ne.s32.totalorder %s57, %s59
    %p63 = scmp.eq.s32.totalorder %s9, 0
    %p64 = por %p62, %p63
    %p65 = scmp.ne.s32.totalorder %s57, %s59
    %p66 = scmp.eq.s32.totalorder %s14, 7
    %p67 = por %p65, %p66
    %p68 = scmp.ne.s32.totalorder %s59, %s60
    %p69 = scmp.eq.s32.totalorder %s14, 0
    %p70 = por %p68, %p69
    %p71 = scmp.ne.s32.totalorder %s59, %s60
    %p72 = scmp.eq.s32.totalorder %s15, 7
    %p73 = por %p71, %p72
    %p75 = scmp.ne.s32.totalorder %s60, %s74
    %p76 = scmp.eq.s32.totalorder %s15, 0
    %p77 = por %p75, %p76
    %s79 = sadd.s32 %s78, 1
    %p82 = scmp.eq.s32.totalorder %s9, 7
    %p83 = scmp.ne.s32.totalorder %s78, %s80
    %p84 = scmp.eq.s32.totalorder %s9, 0
    %p85 = por %p83, %p84
    %p86 = scmp.ne.s32.totalorder %s78, %s80
    %p87 = scmp.eq.s32.totalorder %s14, 7
    %p88 = por %p86, %p87
    %p89 = scmp.ne.s32.totalorder %s80, %s81
    %p90 = scmp.eq.s32.totalorder %s14, 0
    %p91 = por %p89, %p90
    %p92 = scmp.ne.s32.totalorder %s80, %s81
    %p93 = scmp.eq.s32.totalorder %s15, 7
    %p94 = por %p92, %p93
    %p96 = scmp.ne.s32.totalorder %s81, %s95
    %p97 = scmp.eq.s32.totalorder %s15, 0
    %p98 = por %p96, %p97
    %s99 = ssub.s32 %s16, %s28
    %p100 = scmp.eq.s32.totalorder %s99, 0
    %s102 = sadd.s32 %s101, 1
    %s103 = scalar_select %p100, %s101, %s102
    %p106 = pneg %p100
    %p107 = scmp.eq.s32.totalorder %s9, 7
    %p108 = por %p106, %p107
    %p109 = scmp.ne.s32.totalorder %s101, %s104
    %p110 = scmp.eq.s32.totalorder %s9, 0
    %p111 = por %p109, %p110
    %p112 = scmp.ne.s32.totalorder %s101, %s104
    %p113 = scmp.eq.s32.totalorder %s14, 7
    %p114 = por %p112, %p113
    %p115 = scmp.ne.s32.totalorder %s104, %s105
    %p116 = scmp.eq.s32.totalorder %s14, 0
    %p117 = por %p115, %p116
    %p118 = scmp.ne.s32.totalorder %s104, %s105
    %p119 = scmp.eq.s32.totalorder %s15, 7
    %p120 = por %p118, %p119
    %p122 = scmp.ne.s32.totalorder %s105, %s121
    %p123 = scmp.eq.s32.totalorder %s15, 0
    %p124 = por %p122, %p123
    %p125 = scmp.le.s32.totalorder 1, %s9
    %p126 = scmp.lt.s32.totalorder %s9, 9
    %p127 = pnand %p125, %p126
    %p128 = pneg %p127
    // Predicated region
    $region9: #{forward.5} parent=5 // pred_check
      _
    $region10: #{forward.5} parent=5 // pred_check_branch
      %130 = sbr.rel (%p127) target = $region12
    $region11: #{forward.5} parent=5 // pred_region
      %s131 = ssub.s32 %s9, 1
      // Predicated region
      $region13: #{forward.5} parent=11 // pred_check
        %p132 = pneg %p70
      $region14: #{forward.5} parent=11 // pred_check_branch
        %134 = sbr.rel (%p132) target = $region16
      $region15: #{forward.5} parent=11 // pred_region
        _
      $region16: #{forward.5} parent=11 // pred_fallthru
        _
      // Predicated region
      $region17: #{forward.5} parent=11 // pred_check
        %p135 = pneg %p91
      $region18: #{forward.5} parent=11 // pred_check_branch
        %137 = sbr.rel (%p135) target = $region20
      $region19: #{forward.5} parent=11 // pred_region
        _
      $region20: #{forward.5} parent=11 // pred_fallthru
        _
    $region12: #{forward.5} parent=5 // pred_fallthru
      _
    %p138 = scmp.lt.s32.totalorder %s9, 8
    // Predicated region
    $region21: #{forward.5} parent=5 // pred_check
      %p139 = pneg %p138
    $region22: #{forward.5} parent=5 // pred_check_branch
      %141 = sbr.rel (%p139) target = $region24
    $region23: #{forward.5} parent=5 // pred_region
      // Predicated region
      $region25: #{forward.5} parent=23 // pred_check
        %p142 = pneg %p43
      $region26: #{forward.5} parent=23 // pred_check_branch
        %144 = sbr.rel (%p142) target = $region28
      $region27: #{forward.5} parent=23 // pred_region
        %s145 = smul.u32 50, %s17
        %p146 = scmp.lt.s32.totalorder %s16, 3
        %s147 = scalar_select %p146, %s16, 3
        %p148 = scmp.lt.s32.totalorder %s145, 99
        %s149 = scalar_select %p148, %s145, 99
        %s150 = smul.addr %s147, 100
        %s151 = sadd.s32 %s149, %s150
        %s152 = smul.addr %s151, 4
        %s153 = scalar_lea.vmem %s0, %s152
        %s154 = smul.u32 50, %s17
      $region28: #{forward.5} parent=23 // pred_fallthru
        _
    $region24: #{forward.5} parent=5 // pred_fallthru
      _
    %p155 = scmp.le.s32.totalorder 1, %s9
    %p156 = scmp.lt.s32.totalorder %s9, 9
    %p157 = pnand %p155, %p156
    %p158 = pneg %p157
    // Predicated region
    $region29: #{forward.5} parent=5 // pred_check
      _
    $region30: #{forward.5} parent=5 // pred_check_branch
      %160 = sbr.rel (%p157) target = $region32
    $region31: #{forward.5} parent=5 // pred_region
      %s161 = ssub.s32 %s9, 1
      %s162 = smul.u32 50, %s19
      %p163 = scmp.lt.s32.totalorder %s18, 3
      %s164 = scalar_select %p163, %s18, 3
      %p165 = scmp.lt.s32.totalorder %s162, 99
      %s166 = scalar_select %p165, %s162, 99
      %s167 = smul.addr %s164, 100
      %s168 = sadd.s32 %s166, %s167
      %s169 = smul.addr %s168, 4
      %s170 = scalar_lea.vmem %s0, %s169
      %p171 = pneg %p49
      %p172 = pneg %p46
      %p173 = pneg %p70
      %p174 = pneg %p67
      %p175 = pneg %p91
      %p176 = pneg %p88
      %p177 = pneg %p117
      %p178 = pneg %p114
      %p179 = scmp.lt.s32.totalorder %s18, 3
      %s180 = scalar_select %p179, %s18, 3
      %s181 = scalar_lea.vmem %s3, %s180
      %s182 = smul.u32 50, %s19
      %p183 = scmp.lt.s32.totalorder %s18, 3
      %s184 = scalar_select %p183, %s18, 3
      %p185 = scmp.lt.s32.totalorder %s182, 99
      %s186 = scalar_select %p185, %s182, 99
      %s187 = smul.addr %s184, 100
      %s188 = sadd.s32 %s186, %s187
      %s189 = smul.addr %s188, 4
      %s190 = scalar_lea.vmem %s0, %s189
      %s191 = smul.u32 50, %s19
      %p192 = scmp.lt.s32.totalorder %s18, 3
      %s193 = scalar_select %p192, %s18, 3
      %s194 = scalar_lea.vmem %s3, %s193
      %v196 = vld [vmem:[%s190] sm:$0xf]
      %v197 = vld [vmem:[%s190 + $0x4] sm:$0xf]
      %v198 = vld [vmem:[%s190 + $0x8] sm:$0xf]
      %v199 = vld [vmem:[%s190 + $0xc] sm:$0xf]
      %v200 = vld [vmem:[%s190 + $0x10] sm:$0xf]
      %v201 = vld [vmem:[%s190 + $0x14] sm:$0xf]
      %v202 = vld [vmem:[%s190 + $0x18] sm:$0xf]
      %v203 = vld [vmem:[%s190 + $0x1c] sm:$0xf]
      %v204 = vld [vmem:[%s190 + $0x20] sm:$0xf]
      %v205 = vld [vmem:[%s190 + $0x24] sm:$0xf]
      %v206 = vld [vmem:[%s190 + $0x28] sm:$0xf]
      %v207 = vld [vmem:[%s190 + $0x2c] sm:$0xf]
      %v208 = vld [vmem:[%s190 + $0x30] sm:$0xf]
      %v209 = vld [vmem:[%s190 + $0x34] sm:$0xf]
      %v210 = vld [vmem:[%s190 + $0x38] sm:$0xf]
      %v211 = vld [vmem:[%s190 + $0x3c] sm:$0xf]
      %v212 = vld [vmem:[%s190 + $0x40] sm:$0xf]
      %v213 = vld [vmem:[%s190 + $0x44] sm:$0xf]
      %v214 = vld [vmem:[%s190 + $0x48] sm:$0xf]
      %v215 = vld [vmem:[%s190 + $0x4c] sm:$0xf]
      %v216 = vld [vmem:[%s190 + $0x50] sm:$0xf]
      %v217 = vld [vmem:[%s190 + $0x54] sm:$0xf]
      %v218 = vld [vmem:[%s190 + $0x58] sm:$0xf]
      %v219 = vld [vmem:[%s190 + $0x5c] sm:$0xf]
      %v220 = vld [vmem:[%s190 + $0x60] sm:$0xf]
      %v221 = vld [vmem:[%s190 + $0x64] sm:$0xf]
      %v222 = vld [vmem:[%s190 + $0x68] sm:$0xf]
      %v223 = vld [vmem:[%s190 + $0x6c] sm:$0xf]
      %v224 = vld [vmem:[%s190 + $0x70] sm:$0xf]
      %v225 = vld [vmem:[%s190 + $0x74] sm:$0xf]
      %v226 = vld [vmem:[%s190 + $0x78] sm:$0xf]
      %v227 = vld [vmem:[%s190 + $0x7c] sm:$0xf]
      %v228 = vld [vmem:[%s190 + $0x80] sm:$0xf]
      %v229 = vld [vmem:[%s190 + $0x84] sm:$0xf]
      %v230 = vld [vmem:[%s190 + $0x88] sm:$0xf]
      %v231 = vld [vmem:[%s190 + $0x8c] sm:$0xf]
      %v232 = vld [vmem:[%s190 + $0x90] sm:$0xf]
      %v233 = vld [vmem:[%s190 + $0x94] sm:$0xf]
      %v234 = vld [vmem:[%s190 + $0x98] sm:$0xf]
      %v235 = vld [vmem:[%s190 + $0x9c] sm:$0xf]
      %v236 = vld [vmem:[%s190 + $0xa0] sm:$0xf]
      %v237 = vld [vmem:[%s190 + $0xa4] sm:$0xf]
      %v238 = vld [vmem:[%s190 + $0xa8] sm:$0xf]
      %v239 = vld [vmem:[%s190 + $0xac] sm:$0xf]
      %v240 = vld [vmem:[%s190 + $0xb0] sm:$0xf]
      %v241 = vld [vmem:[%s190 + $0xb4] sm:$0xf]
      %v242 = vld [vmem:[%s190 + $0xb8] sm:$0xf]
      %v243 = vld [vmem:[%s190 + $0xbc] sm:$0xf]
      %v244 = vld [vmem:[%s190 + $0xc0] sm:$0xf]
      %v245 = vld [vmem:[%s190 + $0xc4] sm:$0xf]
      %v246 = vld [vmem:[%s1] sm:$0xff]
      %v247 = vld [vmem:[%s1 + $0x8] sm:$0xff]
      %v248 = vld [vmem:[%s1 + $0x10] sm:$0xff]
      %v249 = vld [vmem:[%s1 + $0x18] sm:$0xff]
      %v250 = vld [vmem:[%s1 + $0x20] sm:$0xff]
      %v251 = vld [vmem:[%s1 + $0x28] sm:$0xff]
      %v252 = vld [vmem:[%s1 + $0x30] sm:$0xff]
      %v253 = vld [vmem:[%s1 + $0x38] sm:$0xff]
      %v254 = vld [vmem:[%s1 + $0x40] sm:$0xff]
      %v255 = vld [vmem:[%s1 + $0x48] sm:$0xff]
      %v256 = vld [vmem:[%s1 + $0x50] sm:$0xff]
      %v257 = vld [vmem:[%s1 + $0x58] sm:$0xff]
      %v258 = vld [vmem:[%s1 + $0x60] sm:$0xff]
      %v259 = vld [vmem:[%s1 + $0x68] sm:$0xff]
      %v260 = vld [vmem:[%s1 + $0x70] sm:$0xff]
      %v261 = vld [vmem:[%s1 + $0x78] sm:$0xff]
      %v262 = vld [vmem:[%s1 + $0x80] sm:$0xff]
      %v263 = vld [vmem:[%s1 + $0x88] sm:$0xff]
      %v264 = vld [vmem:[%s1 + $0x90] sm:$0xff]
      %v265 = vld [vmem:[%s1 + $0x98] sm:$0xff]
      %v266 = vld [vmem:[%s1 + $0xa0] sm:$0xff]
      %v267 = vld [vmem:[%s1 + $0xa8] sm:$0xff]
      %v268 = vld [vmem:[%s1 + $0xb0] sm:$0xff]
      %v269 = vld [vmem:[%s1 + $0xb8] sm:$0xff]
      %v270 = vld [vmem:[%s1 + $0xc0] sm:$0xff]
      %v271 = vld [vmem:[%s1 + $0xc8] sm:$0xff]
      %v272 = vld [vmem:[%s1 + $0xd0] sm:$0xff]
      %v273 = vld [vmem:[%s1 + $0xd8] sm:$0xff]
      %v274 = vld [vmem:[%s1 + $0xe0] sm:$0xff]
      %v275 = vld [vmem:[%s1 + $0xe8] sm:$0xff]
      %v276 = vld [vmem:[%s1 + $0xf0] sm:$0xff]
      %v277 = vld [vmem:[%s1 + $0xf8] sm:$0xff]
      %v278 = vld [vmem:[%s1 + $0x100] sm:$0xff]
      %v279 = vld [vmem:[%s1 + $0x108] sm:$0xff]
      %v280 = vld [vmem:[%s1 + $0x110] sm:$0xff]
      %v281 = vld [vmem:[%s1 + $0x118] sm:$0xff]
      %v282 = vld [vmem:[%s1 + $0x120] sm:$0xff]
      %v283 = vld [vmem:[%s1 + $0x128] sm:$0xff]
      %v284 = vld [vmem:[%s1 + $0x130] sm:$0xff]
      %v285 = vld [vmem:[%s1 + $0x138] sm:$0xff]
      %v286 = vld [vmem:[%s1 + $0x140] sm:$0xff]
      %v287 = vld [vmem:[%s1 + $0x148] sm:$0xff]
      %v288 = vld [vmem:[%s1 + $0x150] sm:$0xff]
      %v289 = vld [vmem:[%s1 + $0x158] sm:$0xff]
      %v290 = vld [vmem:[%s1 + $0x160] sm:$0xff]
      %v291 = vld [vmem:[%s1 + $0x168] sm:$0xff]
      %v292 = vld [vmem:[%s1 + $0x170] sm:$0xff]
      %v293 = vld [vmem:[%s1 + $0x178] sm:$0xff]
      %v294 = vld [vmem:[%s1 + $0x180] sm:$0xff]
      %v295 = vld [vmem:[%s1 + $0x188] sm:$0xff]
      %v296 = vld [vmem:[%s1 + $0x190] sm:$0xff]
      %v297 = vld [vmem:[%s1 + $0x198] sm:$0xff]
      %v298 = vld [vmem:[%s1 + $0x1a0] sm:$0xff]
      %v299 = vld [vmem:[%s1 + $0x1a8] sm:$0xff]
      %v300 = vld [vmem:[%s1 + $0x1b0] sm:$0xff]
      %v301 = vld [vmem:[%s1 + $0x1b8] sm:$0xff]
      %v302 = vld [vmem:[%s1 + $0x1c0] sm:$0xff]
      %v303 = vld [vmem:[%s1 + $0x1c8] sm:$0xff]
      %v304 = vld [vmem:[%s1 + $0x1d0] sm:$0xff]
      %v305 = vld [vmem:[%s1 + $0x1d8] sm:$0xff]
      %v306 = vld [vmem:[%s1 + $0x1e0] sm:$0xff]
      %v307 = vld [vmem:[%s1 + $0x1e8] sm:$0xff]
      %v308 = vld [vmem:[%s1 + $0x1f0] sm:$0xff]
      %v309 = vld [vmem:[%s1 + $0x1f8] sm:$0xff]
      %v310 = vld [vmem:[%s1 + $0x200] sm:$0xff]
      %v311 = vld [vmem:[%s1 + $0x208] sm:$0xff]
      %v312 = vld [vmem:[%s1 + $0x210] sm:$0xff]
      %v313 = vld [vmem:[%s1 + $0x218] sm:$0xff]
      %v314 = vld [vmem:[%s1 + $0x220] sm:$0xff]
      %v315 = vld [vmem:[%s1 + $0x228] sm:$0xff]
      %v316 = vld [vmem:[%s1 + $0x230] sm:$0xff]
      %v317 = vld [vmem:[%s1 + $0x238] sm:$0xff]
      %v318 = vld [vmem:[%s1 + $0x240] sm:$0xff]
      %v319 = vld [vmem:[%s1 + $0x248] sm:$0xff]
      %v320 = vld [vmem:[%s1 + $0x250] sm:$0xff]
      %v321 = vld [vmem:[%s1 + $0x258] sm:$0xff]
      %v322 = vld [vmem:[%s1 + $0x260] sm:$0xff]
      %v323 = vld [vmem:[%s1 + $0x268] sm:$0xff]
      %v324 = vld [vmem:[%s1 + $0x270] sm:$0xff]
      %v325 = vld [vmem:[%s1 + $0x278] sm:$0xff]
      %v326 = vld [vmem:[%s1 + $0x280] sm:$0xff]
      %v327 = vld [vmem:[%s1 + $0x288] sm:$0xff]
      %v328 = vld [vmem:[%s1 + $0x290] sm:$0xff]
      %v329 = vld [vmem:[%s1 + $0x298] sm:$0xff]
      %v330 = vld [vmem:[%s1 + $0x2a0] sm:$0xff]
      %v331 = vld [vmem:[%s1 + $0x2a8] sm:$0xff]
      %v332 = vld [vmem:[%s1 + $0x2b0] sm:$0xff]
      %v333 = vld [vmem:[%s1 + $0x2b8] sm:$0xff]
      %v334 = vld [vmem:[%s1 + $0x2c0] sm:$0xff]
      %v335 = vld [vmem:[%s1 + $0x2c8] sm:$0xff]
      %v336 = vld [vmem:[%s1 + $0x2d0] sm:$0xff]
      %v337 = vld [vmem:[%s1 + $0x2d8] sm:$0xff]
      %v338 = vld [vmem:[%s1 + $0x2e0] sm:$0xff]
      %v339 = vld [vmem:[%s1 + $0x2e8] sm:$0xff]
      %v340 = vld [vmem:[%s1 + $0x2f0] sm:$0xff]
      %v341 = vld [vmem:[%s1 + $0x2f8] sm:$0xff]
      %v342 = vld [vmem:[%s1 + $0x300] sm:$0xff]
      %v343 = vld [vmem:[%s1 + $0x308] sm:$0xff]
      %v344 = vld [vmem:[%s1 + $0x310] sm:$0xff]
      %v345 = vld [vmem:[%s1 + $0x318] sm:$0xff]
      %v446 = vunpack.c.l.b16 %v246
      %v447 = vunpack.c.h.b16 %v246
      %v448 = vunpack.c.l.b16 %v247
      %v449 = vunpack.c.h.b16 %v247
      %v450 = vunpack.c.l.b16 %v248
      %v451 = vunpack.c.h.b16 %v248
      %v452 = vunpack.c.l.b16 %v249
      %v453 = vunpack.c.h.b16 %v249
      %v454 = vunpack.c.l.b16 %v250
      %v455 = vunpack.c.h.b16 %v250
      %v456 = vunpack.c.l.b16 %v251
      %v457 = vunpack.c.h.b16 %v251
      %v458 = vunpack.c.l.b16 %v252
      %v459 = vunpack.c.h.b16 %v252
      %v460 = vunpack.c.l.b16 %v253
      %v461 = vunpack.c.h.b16 %v253
      %v462 = vunpack.c.l.b16 %v254
      %v463 = vunpack.c.h.b16 %v254
      %v464 = vunpack.c.l.b16 %v255
      %v465 = vunpack.c.h.b16 %v255
      %v466 = vunpack.c.l.b16 %v256
      %v467 = vunpack.c.h.b16 %v256
      %v468 = vunpack.c.l.b16 %v257
      %v469 = vunpack.c.h.b16 %v257
      %v470 = vunpack.c.l.b16 %v258
      %v471 = vunpack.c.h.b16 %v258
      %v472 = vunpack.c.l.b16 %v259
      %v473 = vunpack.c.h.b16 %v259
      %v474 = vunpack.c.l.b16 %v260
      %v475 = vunpack.c.h.b16 %v260
      %v476 = vunpack.c.l.b16 %v261
      %v477 = vunpack.c.h.b16 %v261
      %v478 = vunpack.c.l.b16 %v262
      %v479 = vunpack.c.h.b16 %v262
      %v480 = vunpack.c.l.b16 %v263
      %v481 = vunpack.c.h.b16 %v263
      %v482 = vunpack.c.l.b16 %v264
      %v483 = vunpack.c.h.b16 %v264
      %v484 = vunpack.c.l.b16 %v265
      %v485 = vunpack.c.h.b16 %v265
      %v486 = vunpack.c.l.b16 %v266
      %v487 = vunpack.c.h.b16 %v266
      %v488 = vunpack.c.l.b16 %v267
      %v489 = vunpack.c.h.b16 %v267
      %v490 = vunpack.c.l.b16 %v268
      %v491 = vunpack.c.h.b16 %v268
      %v492 = vunpack.c.l.b16 %v269
      %v493 = vunpack.c.h.b16 %v269
      %v494 = vunpack.c.l.b16 %v270
      %v495 = vunpack.c.h.b16 %v270
      %v496 = vunpack.c.l.b16 %v271
      %v497 = vunpack.c.h.b16 %v271
      %v498 = vunpack.c.l.b16 %v272
      %v499 = vunpack.c.h.b16 %v272
      %v500 = vunpack.c.l.b16 %v273
      %v501 = vunpack.c.h.b16 %v273
      %v502 = vunpack.c.l.b16 %v274
      %v503 = vunpack.c.h.b16 %v274
      %v504 = vunpack.c.l.b16 %v275
      %v505 = vunpack.c.h.b16 %v275
      %v506 = vunpack.c.l.b16 %v276
      %v507 = vunpack.c.h.b16 %v276
      %v508 = vunpack.c.l.b16 %v277
      %v509 = vunpack.c.h.b16 %v277
      %v510 = vunpack.c.l.b16 %v278
      %v511 = vunpack.c.h.b16 %v278
      %v512 = vunpack.c.l.b16 %v279
      %v513 = vunpack.c.h.b16 %v279
      %v514 = vunpack.c.l.b16 %v280
      %v515 = vunpack.c.h.b16 %v280
      %v516 = vunpack.c.l.b16 %v281
      %v517 = vunpack.c.h.b16 %v281
      %v518 = vunpack.c.l.b16 %v282
      %v519 = vunpack.c.h.b16 %v282
      %v520 = vunpack.c.l.b16 %v283
      %v521 = vunpack.c.h.b16 %v283
      %v522 = vunpack.c.l.b16 %v284
      %v523 = vunpack.c.h.b16 %v284
      %v524 = vunpack.c.l.b16 %v285
      %v525 = vunpack.c.h.b16 %v285
      %v526 = vunpack.c.l.b16 %v286
      %v527 = vunpack.c.h.b16 %v286
      %v528 = vunpack.c.l.b16 %v287
      %v529 = vunpack.c.h.b16 %v287
      %v530 = vunpack.c.l.b16 %v288
      %v531 = vunpack.c.h.b16 %v288
      %v532 = vunpack.c.l.b16 %v289
      %v533 = vunpack.c.h.b16 %v289
      %v534 = vunpack.c.l.b16 %v290
      %v535 = vunpack.c.h.b16 %v290
      %v536 = vunpack.c.l.b16 %v291
      %v537 = vunpack.c.h.b16 %v291
      %v538 = vunpack.c.l.b16 %v292
      %v539 = vunpack.c.h.b16 %v292
      %v540 = vunpack.c.l.b16 %v293
      %v541 = vunpack.c.h.b16 %v293
      %v542 = vunpack.c.l.b16 %v294
      %v543 = vunpack.c.h.b16 %v294
      %v544 = vunpack.c.l.b16 %v295
      %v545 = vunpack.c.h.b16 %v295
      %v546 = vunpack.c.l.b16 %v296
      %v547 = vunpack.c.h.b16 %v296
      %v548 = vunpack.c.l.b16 %v297
      %v549 = vunpack.c.h.b16 %v297
      %v550 = vunpack.c.l.b16 %v298
      %v551 = vunpack.c.h.b16 %v298
      %v552 = vunpack.c.l.b16 %v299
      %v553 = vunpack.c.h.b16 %v299
      %v554 = vunpack.c.l.b16 %v300
      %v555 = vunpack.c.h.b16 %v300
      %v556 = vunpack.c.l.b16 %v301
      %v557 = vunpack.c.h.b16 %v301
      %v558 = vunpack.c.l.b16 %v302
      %v559 = vunpack.c.h.b16 %v302
      %v560 = vunpack.c.l.b16 %v303
      %v561 = vunpack.c.h.b16 %v303
      %v562 = vunpack.c.l.b16 %v304
      %v563 = vunpack.c.h.b16 %v304
      %v564 = vunpack.c.l.b16 %v305
      %v565 = vunpack.c.h.b16 %v305
      %v566 = vunpack.c.l.b16 %v306
      %v567 = vunpack.c.h.b16 %v306
      %v568 = vunpack.c.l.b16 %v307
      %v569 = vunpack.c.h.b16 %v307
      %v570 = vunpack.c.l.b16 %v308
      %v571 = vunpack.c.h.b16 %v308
      %v572 = vunpack.c.l.b16 %v309
      %v573 = vunpack.c.h.b16 %v309
      %v574 = vunpack.c.l.b16 %v310
      %v575 = vunpack.c.h.b16 %v310
      %v576 = vunpack.c.l.b16 %v311
      %v577 = vunpack.c.h.b16 %v311
      %v578 = vunpack.c.l.b16 %v312
      %v579 = vunpack.c.h.b16 %v312
      %v580 = vunpack.c.l.b16 %v313
      %v581 = vunpack.c.h.b16 %v313
      %v582 = vunpack.c.l.b16 %v314
      %v583 = vunpack.c.h.b16 %v314
      %v584 = vunpack.c.l.b16 %v315
      %v585 = vunpack.c.h.b16 %v315
      %v586 = vunpack.c.l.b16 %v316
      %v587 = vunpack.c.h.b16 %v316
      %v588 = vunpack.c.l.b16 %v317
      %v589 = vunpack.c.h.b16 %v317
      %v590 = vunpack.c.l.b16 %v318
      %v591 = vunpack.c.h.b16 %v318
      %v592 = vunpack.c.l.b16 %v319
      %v593 = vunpack.c.h.b16 %v319
      %v594 = vunpack.c.l.b16 %v320
      %v595 = vunpack.c.h.b16 %v320
      %v596 = vunpack.c.l.b16 %v321
      %v597 = vunpack.c.h.b16 %v321
      %v598 = vunpack.c.l.b16 %v322
      %v599 = vunpack.c.h.b16 %v322
      %v600 = vunpack.c.l.b16 %v323
      %v601 = vunpack.c.h.b16 %v323
      %v602 = vunpack.c.l.b16 %v324
      %v603 = vunpack.c.h.b16 %v324
      %v604 = vunpack.c.l.b16 %v325
      %v605 = vunpack.c.h.b16 %v325
      %v606 = vunpack.c.l.b16 %v326
      %v607 = vunpack.c.h.b16 %v326
      %v608 = vunpack.c.l.b16 %v327
      %v609 = vunpack.c.h.b16 %v327
      %v610 = vunpack.c.l.b16 %v328
      %v611 = vunpack.c.h.b16 %v328
      %v612 = vunpack.c.l.b16 %v329
      %v613 = vunpack.c.h.b16 %v329
      %v614 = vunpack.c.l.b16 %v330
      %v615 = vunpack.c.h.b16 %v330
      %v616 = vunpack.c.l.b16 %v331
      %v617 = vunpack.c.h.b16 %v331
      %v618 = vunpack.c.l.b16 %v332
      %v619 = vunpack.c.h.b16 %v332
      %v620 = vunpack.c.l.b16 %v333
      %v621 = vunpack.c.h.b16 %v333
      %v622 = vunpack.c.l.b16 %v334
      %v623 = vunpack.c.h.b16 %v334
      %v624 = vunpack.c.l.b16 %v335
      %v625 = vunpack.c.h.b16 %v335
      %v626 = vunpack.c.l.b16 %v336
      %v627 = vunpack.c.h.b16 %v336
      %v628 = vunpack.c.l.b16 %v337
      %v629 = vunpack.c.h.b16 %v337
      %v630 = vunpack.c.l.b16 %v338
      %v631 = vunpack.c.h.b16 %v338
      %v632 = vunpack.c.l.b16 %v339
      %v633 = vunpack.c.h.b16 %v339
      %v634 = vunpack.c.l.b16 %v340
      %v635 = vunpack.c.h.b16 %v340
      %v636 = vunpack.c.l.b16 %v341
      %v637 = vunpack.c.h.b16 %v341
      %v638 = vunpack.c.l.b16 %v342
      %v639 = vunpack.c.h.b16 %v342
      %v640 = vunpack.c.l.b16 %v343
      %v641 = vunpack.c.h.b16 %v343
      %v642 = vunpack.c.l.b16 %v344
      %v643 = vunpack.c.h.b16 %v344
      %v644 = vunpack.c.l.b16 %v345
      %v645 = vunpack.c.h.b16 %v345
      %v646 = vpack.c.b16 %v450, %v446
      %v647 = vpack.c.b16 %v451, %v447
      %v648 = vpack.c.b16 %v452, %v448
      %v649 = vpack.c.b16 %v453, %v449
      %v650 = vpack.c.b16 %v458, %v454
      %v651 = vpack.c.b16 %v459, %v455
      %v652 = vpack.c.b16 %v460, %v456
      %v653 = vpack.c.b16 %v461, %v457
      %v654 = vpack.c.b16 %v466, %v462
      %v655 = vpack.c.b16 %v467, %v463
      %v656 = vpack.c.b16 %v468, %v464
      %v657 = vpack.c.b16 %v469, %v465
      %v658 = vpack.c.b16 %v474, %v470
      %v659 = vpack.c.b16 %v475, %v471
      %v660 = vpack.c.b16 %v476, %v472
      %v661 = vpack.c.b16 %v477, %v473
      %v662 = vpack.c.b16 %v482, %v478
      %v663 = vpack.c.b16 %v483, %v479
      %v664 = vpack.c.b16 %v484, %v480
      %v665 = vpack.c.b16 %v485, %v481
      %v666 = vpack.c.b16 %v490, %v486
      %v667 = vpack.c.b16 %v491, %v487
      %v668 = vpack.c.b16 %v492, %v488
      %v669 = vpack.c.b16 %v493, %v489
      %v670 = vpack.c.b16 %v498, %v494
      %v671 = vpack.c.b16 %v499, %v495
      %v672 = vpack.c.b16 %v500, %v496
      %v673 = vpack.c.b16 %v501, %v497
      %v674 = vpack.c.b16 %v506, %v502
      %v675 = vpack.c.b16 %v507, %v503
      %v676 = vpack.c.b16 %v508, %v504
      %v677 = vpack.c.b16 %v509, %v505
      %v678 = vpack.c.b16 %v514, %v510
      %v679 = vpack.c.b16 %v515, %v511
      %v680 = vpack.c.b16 %v516, %v512
      %v681 = vpack.c.b16 %v517, %v513
      %v682 = vpack.c.b16 %v522, %v518
      %v683 = vpack.c.b16 %v523, %v519
      %v684 = vpack.c.b16 %v524, %v520
      %v685 = vpack.c.b16 %v525, %v521
      %v686 = vpack.c.b16 %v530, %v526
      %v687 = vpack.c.b16 %v531, %v527
      %v688 = vpack.c.b16 %v532, %v528
      %v689 = vpack.c.b16 %v533, %v529
      %v690 = vpack.c.b16 %v538, %v534
      %v691 = vpack.c.b16 %v539, %v535
      %v692 = vpack.c.b16 %v540, %v536
      %v693 = vpack.c.b16 %v541, %v537
      %v694 = vpack.c.b16 %v546, %v542
      %v695 = vpack.c.b16 %v547, %v543
      %v696 = vpack.c.b16 %v548, %v544
      %v697 = vpack.c.b16 %v549, %v545
      %v698 = vpack.c.b16 %v554, %v550
      %v699 = vpack.c.b16 %v555, %v551
      %v700 = vpack.c.b16 %v556, %v552
      %v701 = vpack.c.b16 %v557, %v553
      %v702 = vpack.c.b16 %v562, %v558
      %v703 = vpack.c.b16 %v563, %v559
      %v704 = vpack.c.b16 %v564, %v560
      %v705 = vpack.c.b16 %v565, %v561
      %v706 = vpack.c.b16 %v570, %v566
      %v707 = vpack.c.b16 %v571, %v567
      %v708 = vpack.c.b16 %v572, %v568
      %v709 = vpack.c.b16 %v573, %v569
      %v710 = vpack.c.b16 %v578, %v574
      %v711 = vpack.c.b16 %v579, %v575
      %v712 = vpack.c.b16 %v580, %v576
      %v713 = vpack.c.b16 %v581, %v577
      %v714 = vpack.c.b16 %v586, %v582
      %v715 = vpack.c.b16 %v587, %v583
      %v716 = vpack.c.b16 %v588, %v584
      %v717 = vpack.c.b16 %v589, %v585
      %v718 = vpack.c.b16 %v594, %v590
      %v719 = vpack.c.b16 %v595, %v591
      %v720 = vpack.c.b16 %v596, %v592
      %v721 = vpack.c.b16 %v597, %v593
      %v722 = vpack.c.b16 %v602, %v598
      %v723 = vpack.c.b16 %v603, %v599
      %v724 = vpack.c.b16 %v604, %v600
      %v725 = vpack.c.b16 %v605, %v601
      %v726 = vpack.c.b16 %v610, %v606
      %v727 = vpack.c.b16 %v611, %v607
      %v728 = vpack.c.b16 %v612, %v608
      %v729 = vpack.c.b16 %v613, %v609
      %v730 = vpack.c.b16 %v618, %v614
      %v731 = vpack.c.b16 %v619, %v615
      %v732 = vpack.c.b16 %v620, %v616
      %v733 = vpack.c.b16 %v621, %v617
      %v734 = vpack.c.b16 %v626, %v622
      %v735 = vpack.c.b16 %v627, %v623
      %v736 = vpack.c.b16 %v628, %v624
      %v737 = vpack.c.b16 %v629, %v625
      %v738 = vpack.c.b16 %v634, %v630
      %v739 = vpack.c.b16 %v635, %v631
      %v740 = vpack.c.b16 %v636, %v632
      %v741 = vpack.c.b16 %v637, %v633
      %v742 = vpack.c.b16 %v642, %v638
      %v743 = vpack.c.b16 %v643, %v639
      %v744 = vpack.c.b16 %v644, %v640
      %v745 = vpack.c.b16 %v645, %v641
      %v871 = vunpack.c.l.b16 %v196
      %v872 = vunpack.c.l.b16 %v197
      %v873 = vunpack.c.l.b16 %v198
      %v874 = vunpack.c.l.b16 %v199
      %v875 = vunpack.c.l.b16 %v200
      %v876 = vunpack.c.l.b16 %v201
      %v877 = vunpack.c.l.b16 %v202
      %v878 = vunpack.c.l.b16 %v203
      %v879 = vunpack.c.l.b16 %v204
      %v880 = vunpack.c.l.b16 %v205
      %v881 = vunpack.c.l.b16 %v206
      %v882 = vunpack.c.l.b16 %v207
      %v883 = vunpack.c.l.b16 %v208
      %v884 = vunpack.c.l.b16 %v209
      %v885 = vunpack.c.l.b16 %v210
      %v886 = vunpack.c.l.b16 %v211
      %v887 = vunpack.c.l.b16 %v212
      %v888 = vunpack.c.l.b16 %v213
      %v889 = vunpack.c.l.b16 %v214
      %v890 = vunpack.c.l.b16 %v215
      %v891 = vunpack.c.l.b16 %v216
      %v892 = vunpack.c.l.b16 %v217
      %v893 = vunpack.c.l.b16 %v218
      %v894 = vunpack.c.l.b16 %v219
      %v895 = vunpack.c.l.b16 %v220
      %v896 = vunpack.c.l.b16 %v221
      %v897 = vunpack.c.l.b16 %v222
      %v898 = vunpack.c.l.b16 %v223
      %v899 = vunpack.c.l.b16 %v224
      %v900 = vunpack.c.l.b16 %v225
      %v901 = vunpack.c.l.b16 %v226
      %v902 = vunpack.c.l.b16 %v227
      %v903 = vunpack.c.l.b16 %v228
      %v904 = vunpack.c.l.b16 %v229
      %v905 = vunpack.c.l.b16 %v230
      %v906 = vunpack.c.l.b16 %v231
      %v907 = vunpack.c.l.b16 %v232
      %v908 = vunpack.c.l.b16 %v233
      %v909 = vunpack.c.l.b16 %v234
      %v910 = vunpack.c.l.b16 %v235
      %v911 = vunpack.c.l.b16 %v236
      %v912 = vunpack.c.l.b16 %v237
      %v913 = vunpack.c.l.b16 %v238
      %v914 = vunpack.c.l.b16 %v239
      %v915 = vunpack.c.l.b16 %v240
      %v916 = vunpack.c.l.b16 %v241
      %v917 = vunpack.c.l.b16 %v242
      %v918 = vunpack.c.l.b16 %v243
      %v919 = vunpack.c.l.b16 %v244
      %v920 = vunpack.c.l.b16 %v245
      %v921 = vpack.c.b16 %v872, %v871
      %v922 = vpack.c.b16 %v874, %v873
      %v923 = vpack.c.b16 %v876, %v875
      %v924 = vpack.c.b16 %v878, %v877
      %v925 = vpack.c.b16 %v880, %v879
      %v926 = vpack.c.b16 %v882, %v881
      %v927 = vpack.c.b16 %v884, %v883
      %v928 = vpack.c.b16 %v886, %v885
      %v929 = vpack.c.b16 %v888, %v887
      %v930 = vpack.c.b16 %v890, %v889
      %v931 = vpack.c.b16 %v892, %v891
      %v932 = vpack.c.b16 %v894, %v893
      %v933 = vpack.c.b16 %v896, %v895
      %v934 = vpack.c.b16 %v898, %v897
      %v935 = vpack.c.b16 %v900, %v899
      %v936 = vpack.c.b16 %v902, %v901
      %v937 = vpack.c.b16 %v904, %v903
      %v938 = vpack.c.b16 %v906, %v905
      %v939 = vpack.c.b16 %v908, %v907
      %v940 = vpack.c.b16 %v910, %v909
      %v941 = vpack.c.b16 %v912, %v911
      %v942 = vpack.c.b16 %v914, %v913
      %v943 = vpack.c.b16 %v916, %v915
      %v944 = vpack.c.b16 %v918, %v917
      %v945 = vpack.c.b16 %v920, %v919
      %vm971 = vcmask 130048
      %v973 = vsel %vm971, %v649, 0
      %v976 = vsel %vm971, %v653, 0
      %v979 = vsel %vm971, %v657, 0
      %v982 = vsel %vm971, %v661, 0
      %v985 = vsel %vm971, %v665, 0
      %v988 = vsel %vm971, %v669, 0
      %v991 = vsel %vm971, %v673, 0
      %v994 = vsel %vm971, %v677, 0
      %v997 = vsel %vm971, %v681, 0
      %v1000 = vsel %vm971, %v685, 0
      %v1003 = vsel %vm971, %v689, 0
      %v1006 = vsel %vm971, %v693, 0
      %v1009 = vsel %vm971, %v697, 0
      %v1012 = vsel %vm971, %v701, 0
      %v1015 = vsel %vm971, %v705, 0
      %v1018 = vsel %vm971, %v709, 0
      %v1021 = vsel %vm971, %v713, 0
      %v1024 = vsel %vm971, %v717, 0
      %v1027 = vsel %vm971, %v721, 0
      %v1030 = vsel %vm971, %v725, 0
      %v1033 = vsel %vm971, %v729, 0
      %v1036 = vsel %vm971, %v733, 0
      %v1039 = vsel %vm971, %v737, 0
      %v1042 = vsel %vm971, %v741, 0
      %v1045 = vsel %vm971, %v745, 0
      %1047 = vmatpush.bf16.msra.mxu0 %v928
      %1048 = vmatpush.bf16.msra.mxu0 %v927
      %1049 = vmatpush.bf16.msra.mxu0 %v926
      %1050 = vmatpush.bf16.msra.mxu0 %v925
      %1051 = vmatpush.bf16.msra.mxu0 %v924
      %1052 = vmatpush.bf16.msra.mxu0 %v923
      %1053 = vmatpush.bf16.msra.mxu0 %v922
      %1054 = vmatpush.bf16.msra.mxu0 %v921
      %1055 = vmatmul.bf16.gmra.mxu0 %v646
      %v1056 = vpop.f32.mrf.mxu0
      %v1057 = vadd.f32 0.0, %v1056
      %v1058 = vpop.f32.mrf.mxu0
      %v1059 = vadd.f32 0.0, %v1058
      %1060 = vmatmul.bf16.gmra.mxu0 %v650
      %v1061 = vpop.f32.mrf.mxu0
      %v1062 = vadd.f32 0.0, %v1061
      %v1063 = vpop.f32.mrf.mxu0
      %v1064 = vadd.f32 0.0, %v1063
      %1065 = vmatmul.bf16.gmra.mxu0 %v654
      %v1066 = vpop.f32.mrf.mxu0
      %v1067 = vadd.f32 0.0, %v1066
      %v1068 = vpop.f32.mrf.mxu0
      %v1069 = vadd.f32 0.0, %v1068
      %1070 = vmatmul.bf16.gmra.mxu0 %v658
      %v1071 = vpop.f32.mrf.mxu0
      %v1072 = vadd.f32 0.0, %v1071
      %v1073 = vpop.f32.mrf.mxu0
      %v1074 = vadd.f32 0.0, %v1073
      %1075 = vmatmul.bf16.gmra.mxu0 %v662
      %v1076 = vpop.f32.mrf.mxu0
      %v1077 = vadd.f32 0.0, %v1076
      %v1078 = vpop.f32.mrf.mxu0
      %v1079 = vadd.f32 0.0, %v1078
      %1080 = vmatmul.bf16.gmra.mxu0 %v666
      %v1081 = vpop.f32.mrf.mxu0
      %v1082 = vadd.f32 0.0, %v1081
      %v1083 = vpop.f32.mrf.mxu0
      %v1084 = vadd.f32 0.0, %v1083
      %1085 = vmatmul.bf16.gmra.mxu0 %v670
      %v1086 = vpop.f32.mrf.mxu0
      %v1087 = vadd.f32 0.0, %v1086
      %v1088 = vpop.f32.mrf.mxu0
      %v1089 = vadd.f32 0.0, %v1088
      %1090 = vmatmul.bf16.gmra.mxu0 %v674
      %v1091 = vpop.f32.mrf.mxu0
      %v1092 = vadd.f32 0.0, %v1091
      %v1093 = vpop.f32.mrf.mxu0
      %v1094 = vadd.f32 0.0, %v1093
      %1095 = vmatmul.bf16.gmra.mxu0 %v678
      %v1096 = vpop.f32.mrf.mxu0
      %v1097 = vadd.f32 0.0, %v1096
      %v1098 = vpop.f32.mrf.mxu0
      %v1099 = vadd.f32 0.0, %v1098
      %1100 = vmatmul.bf16.gmra.mxu0 %v682
      %v1101 = vpop.f32.mrf.mxu0
      %v1102 = vadd.f32 0.0, %v1101
      %v1103 = vpop.f32.mrf.mxu0
      %v1104 = vadd.f32 0.0, %v1103
      %1105 = vmatmul.bf16.gmra.mxu0 %v686
      %v1106 = vpop.f32.mrf.mxu0
      %v1107 = vadd.f32 0.0, %v1106
      %v1108 = vpop.f32.mrf.mxu0
      %v1109 = vadd.f32 0.0, %v1108
      %1110 = vmatmul.bf16.gmra.mxu0 %v690
      %v1111 = vpop.f32.mrf.mxu0
      %v1112 = vadd.f32 0.0, %v1111
      %v1113 = vpop.f32.mrf.mxu0
      %v1114 = vadd.f32 0.0, %v1113
      %1115 = vmatmul.bf16.gmra.mxu0 %v694
      %v1116 = vpop.f32.mrf.mxu0
      %v1117 = vadd.f32 0.0, %v1116
      %v1118 = vpop.f32.mrf.mxu0
      %v1119 = vadd.f32 0.0, %v1118
      %1120 = vmatmul.bf16.gmra.mxu0 %v698
      %v1121 = vpop.f32.mrf.mxu0
      %v1122 = vadd.f32 0.0, %v1121
      %v1123 = vpop.f32.mrf.mxu0
      %v1124 = vadd.f32 0.0, %v1123
      %1125 = vmatmul.bf16.gmra.mxu0 %v702
      %v1126 = vpop.f32.mrf.mxu0
      %v1127 = vadd.f32 0.0, %v1126
      %v1128 = vpop.f32.mrf.mxu0
      %v1129 = vadd.f32 0.0, %v1128
      %1130 = vmatmul.bf16.gmra.mxu0 %v706
      %v1131 = vpop.f32.mrf.mxu0
      %v1132 = vadd.f32 0.0, %v1131
      %v1133 = vpop.f32.mrf.mxu0
      %v1134 = vadd.f32 0.0, %v1133
      %1135 = vmatmul.bf16.gmra.mxu0 %v710
      %v1136 = vpop.f32.mrf.mxu0
      %v1137 = vadd.f32 0.0, %v1136
      %v1138 = vpop.f32.mrf.mxu0
      %v1139 = vadd.f32 0.0, %v1138
      %1140 = vmatmul.bf16.gmra.mxu0 %v714
      %v1141 = vpop.f32.mrf.mxu0
      %v1142 = vadd.f32 0.0, %v1141
      %v1143 = vpop.f32.mrf.mxu0
      %v1144 = vadd.f32 0.0, %v1143
      %1145 = vmatmul.bf16.gmra.mxu0 %v718
      %v1146 = vpop.f32.mrf.mxu0
      %v1147 = vadd.f32 0.0, %v1146
      %v1148 = vpop.f32.mrf.mxu0
      %v1149 = vadd.f32 0.0, %v1148
      %1150 = vmatmul.bf16.gmra.mxu0 %v722
      %v1151 = vpop.f32.mrf.mxu0
      %v1152 = vadd.f32 0.0, %v1151
      %v1153 = vpop.f32.mrf.mxu0
      %v1154 = vadd.f32 0.0, %v1153
      %1155 = vmatmul.bf16.gmra.mxu0 %v726
      %v1156 = vpop.f32.mrf.mxu0
      %v1157 = vadd.f32 0.0, %v1156
      %v1158 = vpop.f32.mrf.mxu0
      %v1159 = vadd.f32 0.0, %v1158
      %1160 = vmatmul.bf16.gmra.mxu0 %v730
      %v1161 = vpop.f32.mrf.mxu0
      %v1162 = vadd.f32 0.0, %v1161
      %v1163 = vpop.f32.mrf.mxu0
      %v1164 = vadd.f32 0.0, %v1163
      %1165 = vmatmul.bf16.gmra.mxu0 %v734
      %v1166 = vpop.f32.mrf.mxu0
      %v1167 = vadd.f32 0.0, %v1166
      %v1168 = vpop.f32.mrf.mxu0
      %v1169 = vadd.f32 0.0, %v1168
      %1170 = vmatmul.bf16.gmra.mxu0 %v738
      %v1171 = vpop.f32.mrf.mxu0
      %v1172 = vadd.f32 0.0, %v1171
      %v1173 = vpop.f32.mrf.mxu0
      %v1174 = vadd.f32 0.0, %v1173
      %1175 = vmatmul.bf16.gmra.mxu0 %v742
      %v1176 = vpop.f32.mrf.mxu0
      %v1177 = vadd.f32 0.0, %v1176
      %v1178 = vpop.f32.mrf.mxu0
      %v1179 = vadd.f32 0.0, %v1178
      %1180 = vdwg.mxu0
      %1181 = vmatpush.bf16.msra.mxu0 %v936
      %1182 = vmatpush.bf16.msra.mxu0 %v935
      %1183 = vmatpush.bf16.msra.mxu0 %v934
      %1184 = vmatpush.bf16.msra.mxu0 %v933
      %1185 = vmatpush.bf16.msra.mxu0 %v932
      %1186 = vmatpush.bf16.msra.mxu0 %v931
      %1187 = vmatpush.bf16.msra.mxu0 %v930
      %1188 = vmatpush.bf16.msra.mxu0 %v929
      %1189 = vmatmul.bf16.gmra.mxu0 %v647
      %v1190 = vpop.f32.mrf.mxu0
      %v1191 = vadd.f32 %v1057, %v1190
      %v1192 = vpop.f32.mrf.mxu0
      %v1193 = vadd.f32 %v1059, %v1192
      %1194 = vmatmul.bf16.gmra.mxu0 %v651
      %v1195 = vpop.f32.mrf.mxu0
      %v1196 = vadd.f32 %v1062, %v1195
      %v1197 = vpop.f32.mrf.mxu0
      %v1198 = vadd.f32 %v1064, %v1197
      %1199 = vmatmul.bf16.gmra.mxu0 %v655
      %v1200 = vpop.f32.mrf.mxu0
      %v1201 = vadd.f32 %v1067, %v1200
      %v1202 = vpop.f32.mrf.mxu0
      %v1203 = vadd.f32 %v1069, %v1202
      %1204 = vmatmul.bf16.gmra.mxu0 %v659
      %v1205 = vpop.f32.mrf.mxu0
      %v1206 = vadd.f32 %v1072, %v1205
      %v1207 = vpop.f32.mrf.mxu0
      %v1208 = vadd.f32 %v1074, %v1207
      %1209 = vmatmul.bf16.gmra.mxu0 %v663
      %v1210 = vpop.f32.mrf.mxu0
      %v1211 = vadd.f32 %v1077, %v1210
      %v1212 = vpop.f32.mrf.mxu0
      %v1213 = vadd.f32 %v1079, %v1212
      %1214 = vmatmul.bf16.gmra.mxu0 %v667
      %v1215 = vpop.f32.mrf.mxu0
      %v1216 = vadd.f32 %v1082, %v1215
      %v1217 = vpop.f32.mrf.mxu0
      %v1218 = vadd.f32 %v1084, %v1217
      %1219 = vmatmul.bf16.gmra.mxu0 %v671
      %v1220 = vpop.f32.mrf.mxu0
      %v1221 = vadd.f32 %v1087, %v1220
      %v1222 = vpop.f32.mrf.mxu0
      %v1223 = vadd.f32 %v1089, %v1222
      %1224 = vmatmul.bf16.gmra.mxu0 %v675
      %v1225 = vpop.f32.mrf.mxu0
      %v1226 = vadd.f32 %v1092, %v1225
      %v1227 = vpop.f32.mrf.mxu0
      %v1228 = vadd.f32 %v1094, %v1227
      %1229 = vmatmul.bf16.gmra.mxu0 %v679
      %v1230 = vpop.f32.mrf.mxu0
      %v1231 = vadd.f32 %v1097, %v1230
      %v1232 = vpop.f32.mrf.mxu0
      %v1233 = vadd.f32 %v1099, %v1232
      %1234 = vmatmul.bf16.gmra.mxu0 %v683
      %v1235 = vpop.f32.mrf.mxu0
      %v1236 = vadd.f32 %v1102, %v1235
      %v1237 = vpop.f32.mrf.mxu0
      %v1238 = vadd.f32 %v1104, %v1237
      %1239 = vmatmul.bf16.gmra.mxu0 %v687
      %v1240 = vpop.f32.mrf.mxu0
      %v1241 = vadd.f32 %v1107, %v1240
      %v1242 = vpop.f32.mrf.mxu0
      %v1243 = vadd.f32 %v1109, %v1242
      %1244 = vmatmul.bf16.gmra.mxu0 %v691
      %v1245 = vpop.f32.mrf.mxu0
      %v1246 = vadd.f32 %v1112, %v1245
      %v1247 = vpop.f32.mrf.mxu0
      %v1248 = vadd.f32 %v1114, %v1247
      %1249 = vmatmul.bf16.gmra.mxu0 %v695
      %v1250 = vpop.f32.mrf.mxu0
      %v1251 = vadd.f32 %v1117, %v1250
      %v1252 = vpop.f32.mrf.mxu0
      %v1253 = vadd.f32 %v1119, %v1252
      %1254 = vmatmul.bf16.gmra.mxu0 %v699
      %v1255 = vpop.f32.mrf.mxu0
      %v1256 = vadd.f32 %v1122, %v1255
      %v1257 = vpop.f32.mrf.mxu0
      %v1258 = vadd.f32 %v1124, %v1257
      %1259 = vmatmul.bf16.gmra.mxu0 %v703
      %v1260 = vpop.f32.mrf.mxu0
      %v1261 = vadd.f32 %v1127, %v1260
      %v1262 = vpop.f32.mrf.mxu0
      %v1263 = vadd.f32 %v1129, %v1262
      %1264 = vmatmul.bf16.gmra.mxu0 %v707
      %v1265 = vpop.f32.mrf.mxu0
      %v1266 = vadd.f32 %v1132, %v1265
      %v1267 = vpop.f32.mrf.mxu0
      %v1268 = vadd.f32 %v1134, %v1267
      %1269 = vmatmul.bf16.gmra.mxu0 %v711
      %v1270 = vpop.f32.mrf.mxu0
      %v1271 = vadd.f32 %v1137, %v1270
      %v1272 = vpop.f32.mrf.mxu0
      %v1273 = vadd.f32 %v1139, %v1272
      %1274 = vmatmul.bf16.gmra.mxu0 %v715
      %v1275 = vpop.f32.mrf.mxu0
      %v1276 = vadd.f32 %v1142, %v1275
      %v1277 = vpop.f32.mrf.mxu0
      %v1278 = vadd.f32 %v1144, %v1277
      %1279 = vmatmul.bf16.gmra.mxu0 %v719
      %v1280 = vpop.f32.mrf.mxu0
      %v1281 = vadd.f32 %v1147, %v1280
      %v1282 = vpop.f32.mrf.mxu0
      %v1283 = vadd.f32 %v1149, %v1282
      %1284 = vmatmul.bf16.gmra.mxu0 %v723
      %v1285 = vpop.f32.mrf.mxu0
      %v1286 = vadd.f32 %v1152, %v1285
      %v1287 = vpop.f32.mrf.mxu0
      %v1288 = vadd.f32 %v1154, %v1287
      %1289 = vmatmul.bf16.gmra.mxu0 %v727
      %v1290 = vpop.f32.mrf.mxu0
      %v1291 = vadd.f32 %v1157, %v1290
      %v1292 = vpop.f32.mrf.mxu0
      %v1293 = vadd.f32 %v1159, %v1292
      %1294 = vmatmul.bf16.gmra.mxu0 %v731
      %v1295 = vpop.f32.mrf.mxu0
      %v1296 = vadd.f32 %v1162, %v1295
      %v1297 = vpop.f32.mrf.mxu0
      %v1298 = vadd.f32 %v1164, %v1297
      %1299 = vmatmul.bf16.gmra.mxu0 %v735
      %v1300 = vpop.f32.mrf.mxu0
      %v1301 = vadd.f32 %v1167, %v1300
      %v1302 = vpop.f32.mrf.mxu0
      %v1303 = vadd.f32 %v1169, %v1302
      %1304 = vmatmul.bf16.gmra.mxu0 %v739
      %v1305 = vpop.f32.mrf.mxu0
      %v1306 = vadd.f32 %v1172, %v1305
      %v1307 = vpop.f32.mrf.mxu0
      %v1308 = vadd.f32 %v1174, %v1307
      %1309 = vmatmul.bf16.gmra.mxu0 %v743
      %v1310 = vpop.f32.mrf.mxu0
      %v1311 = vadd.f32 %v1177, %v1310
      %v1312 = vpop.f32.mrf.mxu0
      %v1313 = vadd.f32 %v1179, %v1312
      %1314 = vdwg.mxu0
      %1315 = vmatpush.bf16.msra.mxu0 %v944
      %1316 = vmatpush.bf16.msra.mxu0 %v943
      %1317 = vmatpush.bf16.msra.mxu0 %v942
      %1318 = vmatpush.bf16.msra.mxu0 %v941
      %1319 = vmatpush.bf16.msra.mxu0 %v940
      %1320 = vmatpush.bf16.msra.mxu0 %v939
      %1321 = vmatpush.bf16.msra.mxu0 %v938
      %1322 = vmatpush.bf16.msra.mxu0 %v937
      %1323 = vmatmul.bf16.gmra.mxu0 %v648
      %v1324 = vpop.f32.mrf.mxu0
      %v1325 = vadd.f32 %v1191, %v1324
      %v1326 = vpop.f32.mrf.mxu0
      %v1327 = vadd.f32 %v1193, %v1326
      %1328 = vmatmul.bf16.gmra.mxu0 %v652
      %v1329 = vpop.f32.mrf.mxu0
      %v1330 = vadd.f32 %v1196, %v1329
      %v1331 = vpop.f32.mrf.mxu0
      %v1332 = vadd.f32 %v1198, %v1331
      %1333 = vmatmul.bf16.gmra.mxu0 %v656
      %v1334 = vpop.f32.mrf.mxu0
      %v1335 = vadd.f32 %v1201, %v1334
      %v1336 = vpop.f32.mrf.mxu0
      %v1337 = vadd.f32 %v1203, %v1336
      %1338 = vmatmul.bf16.gmra.mxu0 %v660
      %v1339 = vpop.f32.mrf.mxu0
      %v1340 = vadd.f32 %v1206, %v1339
      %v1341 = vpop.f32.mrf.mxu0
      %v1342 = vadd.f32 %v1208, %v1341
      %1343 = vmatmul.bf16.gmra.mxu0 %v664
      %v1344 = vpop.f32.mrf.mxu0
      %v1345 = vadd.f32 %v1211, %v1344
      %v1346 = vpop.f32.mrf.mxu0
      %v1347 = vadd.f32 %v1213, %v1346
      %1348 = vmatmul.bf16.gmra.mxu0 %v668
      %v1349 = vpop.f32.mrf.mxu0
      %v1350 = vadd.f32 %v1216, %v1349
      %v1351 = vpop.f32.mrf.mxu0
      %v1352 = vadd.f32 %v1218, %v1351
      %1353 = vmatmul.bf16.gmra.mxu0 %v672
      %v1354 = vpop.f32.mrf.mxu0
      %v1355 = vadd.f32 %v1221, %v1354
      %v1356 = vpop.f32.mrf.mxu0
      %v1357 = vadd.f32 %v1223, %v1356
      %1358 = vmatmul.bf16.gmra.mxu0 %v676
      %v1359 = vpop.f32.mrf.mxu0
      %v1360 = vadd.f32 %v1226, %v1359
      %v1361 = vpop.f32.mrf.mxu0
      %v1362 = vadd.f32 %v1228, %v1361
      %1363 = vmatmul.bf16.gmra.mxu0 %v680
      %v1364 = vpop.f32.mrf.mxu0
      %v1365 = vadd.f32 %v1231, %v1364
      %v1366 = vpop.f32.mrf.mxu0
      %v1367 = vadd.f32 %v1233, %v1366
      %1368 = vmatmul.bf16.gmra.mxu0 %v684
      %v1369 = vpop.f32.mrf.mxu0
      %v1370 = vadd.f32 %v1236, %v1369
      %v1371 = vpop.f32.mrf.mxu0
      %v1372 = vadd.f32 %v1238, %v1371
      %1373 = vmatmul.bf16.gmra.mxu0 %v688
      %v1374 = vpop.f32.mrf.mxu0
      %v1375 = vadd.f32 %v1241, %v1374
      %v1376 = vpop.f32.mrf.mxu0
      %v1377 = vadd.f32 %v1243, %v1376
      %1378 = vmatmul.bf16.gmra.mxu0 %v692
      %v1379 = vpop.f32.mrf.mxu0
      %v1380 = vadd.f32 %v1246, %v1379
      %v1381 = vpop.f32.mrf.mxu0
      %v1382 = vadd.f32 %v1248, %v1381
      %1383 = vmatmul.bf16.gmra.mxu0 %v696
      %v1384 = vpop.f32.mrf.mxu0
      %v1385 = vadd.f32 %v1251, %v1384
      %v1386 = vpop.f32.mrf.mxu0
      %v1387 = vadd.f32 %v1253, %v1386
      %1388 = vmatmul.bf16.gmra.mxu0 %v700
      %v1389 = vpop.f32.mrf.mxu0
      %v1390 = vadd.f32 %v1256, %v1389
      %v1391 = vpop.f32.mrf.mxu0
      %v1392 = vadd.f32 %v1258, %v1391
      %1393 = vmatmul.bf16.gmra.mxu0 %v704
      %v1394 = vpop.f32.mrf.mxu0
      %v1395 = vadd.f32 %v1261, %v1394
      %v1396 = vpop.f32.mrf.mxu0
      %v1397 = vadd.f32 %v1263, %v1396
      %1398 = vmatmul.bf16.gmra.mxu0 %v708
      %v1399 = vpop.f32.mrf.mxu0
      %v1400 = vadd.f32 %v1266, %v1399
      %v1401 = vpop.f32.mrf.mxu0
      %v1402 = vadd.f32 %v1268, %v1401
      %1403 = vmatmul.bf16.gmra.mxu0 %v712
      %v1404 = vpop.f32.mrf.mxu0
      %v1405 = vadd.f32 %v1271, %v1404
      %v1406 = vpop.f32.mrf.mxu0
      %v1407 = vadd.f32 %v1273, %v1406
      %1408 = vmatmul.bf16.gmra.mxu0 %v716
      %v1409 = vpop.f32.mrf.mxu0
      %v1410 = vadd.f32 %v1276, %v1409
      %v1411 = vpop.f32.mrf.mxu0
      %v1412 = vadd.f32 %v1278, %v1411
      %1413 = vmatmul.bf16.gmra.mxu0 %v720
      %v1414 = vpop.f32.mrf.mxu0
      %v1415 = vadd.f32 %v1281, %v1414
      %v1416 = vpop.f32.mrf.mxu0
      %v1417 = vadd.f32 %v1283, %v1416
      %1418 = vmatmul.bf16.gmra.mxu0 %v724
      %v1419 = vpop.f32.mrf.mxu0
      %v1420 = vadd.f32 %v1286, %v1419
      %v1421 = vpop.f32.mrf.mxu0
      %v1422 = vadd.f32 %v1288, %v1421
      %1423 = vmatmul.bf16.gmra.mxu0 %v728
      %v1424 = vpop.f32.mrf.mxu0
      %v1425 = vadd.f32 %v1291, %v1424
      %v1426 = vpop.f32.mrf.mxu0
      %v1427 = vadd.f32 %v1293, %v1426
      %1428 = vmatmul.bf16.gmra.mxu0 %v732
      %v1429 = vpop.f32.mrf.mxu0
      %v1430 = vadd.f32 %v1296, %v1429
      %v1431 = vpop.f32.mrf.mxu0
      %v1432 = vadd.f32 %v1298, %v1431
      %1433 = vmatmul.bf16.gmra.mxu0 %v736
      %v1434 = vpop.f32.mrf.mxu0
      %v1435 = vadd.f32 %v1301, %v1434
      %v1436 = vpop.f32.mrf.mxu0
      %v1437 = vadd.f32 %v1303, %v1436
      %1438 = vmatmul.bf16.gmra.mxu0 %v740
      %v1439 = vpop.f32.mrf.mxu0
      %v1440 = vadd.f32 %v1306, %v1439
      %v1441 = vpop.f32.mrf.mxu0
      %v1442 = vadd.f32 %v1308, %v1441
      %1443 = vmatmul.bf16.gmra.mxu0 %v744
      %v1444 = vpop.f32.mrf.mxu0
      %v1445 = vadd.f32 %v1311, %v1444
      %v1446 = vpop.f32.mrf.mxu0
      %v1447 = vadd.f32 %v1313, %v1446
      %1448 = vdwg.mxu0
      %1449 = vmatpush.bf16.msra.mxu0 0
      %1450 = vmatpush.bf16.msra.mxu0 0
      %1451 = vmatpush.bf16.msra.mxu0 0
      %1452 = vmatpush.bf16.msra.mxu0 0
      %1453 = vmatpush.bf16.msra.mxu0 0
      %1454 = vmatpush.bf16.msra.mxu0 0
      %1455 = vmatpush.bf16.msra.mxu0 0
      %1456 = vmatpush.bf16.msra.mxu0 %v945
      %1457 = vmatmul.bf16.gmra.mxu0 %v973
      %v1458 = vpop.f32.mrf.mxu0
      %v1459 = vadd.f32 %v1325, %v1458
      %v1460 = vpop.f32.mrf.mxu0
      %v1461 = vadd.f32 %v1327, %v1460
      %1462 = vmatmul.bf16.gmra.mxu0 %v976
      %v1463 = vpop.f32.mrf.mxu0
      %v1464 = vadd.f32 %v1330, %v1463
      %v1465 = vpop.f32.mrf.mxu0
      %v1466 = vadd.f32 %v1332, %v1465
      %1467 = vmatmul.bf16.gmra.mxu0 %v979
      %v1468 = vpop.f32.mrf.mxu0
      %v1469 = vadd.f32 %v1335, %v1468
      %v1470 = vpop.f32.mrf.mxu0
      %v1471 = vadd.f32 %v1337, %v1470
      %1472 = vmatmul.bf16.gmra.mxu0 %v982
      %v1473 = vpop.f32.mrf.mxu0
      %v1474 = vadd.f32 %v1340, %v1473
      %v1475 = vpop.f32.mrf.mxu0
      %v1476 = vadd.f32 %v1342, %v1475
      %1477 = vmatmul.bf16.gmra.mxu0 %v985
      %v1478 = vpop.f32.mrf.mxu0
      %v1479 = vadd.f32 %v1345, %v1478
      %v1480 = vpop.f32.mrf.mxu0
      %v1481 = vadd.f32 %v1347, %v1480
      %1482 = vmatmul.bf16.gmra.mxu0 %v988
      %v1483 = vpop.f32.mrf.mxu0
      %v1484 = vadd.f32 %v1350, %v1483
      %v1485 = vpop.f32.mrf.mxu0
      %v1486 = vadd.f32 %v1352, %v1485
      %1487 = vmatmul.bf16.gmra.mxu0 %v991
      %v1488 = vpop.f32.mrf.mxu0
      %v1489 = vadd.f32 %v1355, %v1488
      %v1490 = vpop.f32.mrf.mxu0
      %v1491 = vadd.f32 %v1357, %v1490
      %1492 = vmatmul.bf16.gmra.mxu0 %v994
      %v1493 = vpop.f32.mrf.mxu0
      %v1494 = vadd.f32 %v1360, %v1493
      %v1495 = vpop.f32.mrf.mxu0
      %v1496 = vadd.f32 %v1362, %v1495
      %1497 = vmatmul.bf16.gmra.mxu0 %v997
      %v1498 = vpop.f32.mrf.mxu0
      %v1499 = vadd.f32 %v1365, %v1498
      %v1500 = vpop.f32.mrf.mxu0
      %v1501 = vadd.f32 %v1367, %v1500
      %1502 = vmatmul.bf16.gmra.mxu0 %v1000
      %v1503 = vpop.f32.mrf.mxu0
      %v1504 = vadd.f32 %v1370, %v1503
      %v1505 = vpop.f32.mrf.mxu0
      %v1506 = vadd.f32 %v1372, %v1505
      %1507 = vmatmul.bf16.gmra.mxu0 %v1003
      %v1508 = vpop.f32.mrf.mxu0
      %v1509 = vadd.f32 %v1375, %v1508
      %v1510 = vpop.f32.mrf.mxu0
      %v1511 = vadd.f32 %v1377, %v1510
      %1512 = vmatmul.bf16.gmra.mxu0 %v1006
      %v1513 = vpop.f32.mrf.mxu0
      %v1514 = vadd.f32 %v1380, %v1513
      %v1515 = vpop.f32.mrf.mxu0
      %v1516 = vadd.f32 %v1382, %v1515
      %1517 = vmatmul.bf16.gmra.mxu0 %v1009
      %v1518 = vpop.f32.mrf.mxu0
      %v1519 = vadd.f32 %v1385, %v1518
      %v1520 = vpop.f32.mrf.mxu0
      %v1521 = vadd.f32 %v1387, %v1520
      %1522 = vmatmul.bf16.gmra.mxu0 %v1012
      %v1523 = vpop.f32.mrf.mxu0
      %v1524 = vadd.f32 %v1390, %v1523
      %v1525 = vpop.f32.mrf.mxu0
      %v1526 = vadd.f32 %v1392, %v1525
      %1527 = vmatmul.bf16.gmra.mxu0 %v1015
      %v1528 = vpop.f32.mrf.mxu0
      %v1529 = vadd.f32 %v1395, %v1528
      %v1530 = vpop.f32.mrf.mxu0
      %v1531 = vadd.f32 %v1397, %v1530
      %1532 = vmatmul.bf16.gmra.mxu0 %v1018
      %v1533 = vpop.f32.mrf.mxu0
      %v1534 = vadd.f32 %v1400, %v1533
      %v1535 = vpop.f32.mrf.mxu0
      %v1536 = vadd.f32 %v1402, %v1535
      %1537 = vmatmul.bf16.gmra.mxu0 %v1021
      %v1538 = vpop.f32.mrf.mxu0
      %v1539 = vadd.f32 %v1405, %v1538
      %v1540 = vpop.f32.mrf.mxu0
      %v1541 = vadd.f32 %v1407, %v1540
      %1542 = vmatmul.bf16.gmra.mxu0 %v1024
      %v1543 = vpop.f32.mrf.mxu0
      %v1544 = vadd.f32 %v1410, %v1543
      %v1545 = vpop.f32.mrf.mxu0
      %v1546 = vadd.f32 %v1412, %v1545
      %1547 = vmatmul.bf16.gmra.mxu0 %v1027
      %v1548 = vpop.f32.mrf.mxu0
      %v1549 = vadd.f32 %v1415, %v1548
      %v1550 = vpop.f32.mrf.mxu0
      %v1551 = vadd.f32 %v1417, %v1550
      %1552 = vmatmul.bf16.gmra.mxu0 %v1030
      %v1553 = vpop.f32.mrf.mxu0
      %v1554 = vadd.f32 %v1420, %v1553
      %v1555 = vpop.f32.mrf.mxu0
      %v1556 = vadd.f32 %v1422, %v1555
      %1557 = vmatmul.bf16.gmra.mxu0 %v1033
      %v1558 = vpop.f32.mrf.mxu0
      %v1559 = vadd.f32 %v1425, %v1558
      %v1560 = vpop.f32.mrf.mxu0
      %v1561 = vadd.f32 %v1427, %v1560
      %1562 = vmatmul.bf16.gmra.mxu0 %v1036
      %v1563 = vpop.f32.mrf.mxu0
      %v1564 = vadd.f32 %v1430, %v1563
      %v1565 = vpop.f32.mrf.mxu0
      %v1566 = vadd.f32 %v1432, %v1565
      %1567 = vmatmul.bf16.gmra.mxu0 %v1039
      %v1568 = vpop.f32.mrf.mxu0
      %v1569 = vadd.f32 %v1435, %v1568
      %v1570 = vpop.f32.mrf.mxu0
      %v1571 = vadd.f32 %v1437, %v1570
      %1572 = vmatmul.bf16.gmra.mxu0 %v1042
      %v1573 = vpop.f32.mrf.mxu0
      %v1574 = vadd.f32 %v1440, %v1573
      %v1575 = vpop.f32.mrf.mxu0
      %v1576 = vadd.f32 %v1442, %v1575
      %1577 = vmatmul.bf16.gmra.mxu0 %v1045
      %v1578 = vpop.f32.mrf.mxu0
      %v1579 = vadd.f32 %v1445, %v1578
      %v1580 = vpop.f32.mrf.mxu0
      %v1581 = vadd.f32 %v1447, %v1580
      %1582 = vdwg.mxu0
      %v1583 = vpack.c.bf16 %v1461, %v1459
      %v1584 = vpack.c.bf16 %v1466, %v1464
      %v1585 = vpack.c.bf16 %v1471, %v1469
      %v1586 = vpack.c.bf16 %v1476, %v1474
      %v1587 = vpack.c.bf16 %v1481, %v1479
      %v1588 = vpack.c.bf16 %v1486, %v1484
      %v1589 = vpack.c.bf16 %v1491, %v1489
      %v1590 = vpack.c.bf16 %v1496, %v1494
      %v1591 = vpack.c.bf16 %v1501, %v1499
      %v1592 = vpack.c.bf16 %v1506, %v1504
      %v1593 = vpack.c.bf16 %v1511, %v1509
      %v1594 = vpack.c.bf16 %v1516, %v1514
      %v1595 = vpack.c.bf16 %v1521, %v1519
      %v1596 = vpack.c.bf16 %v1526, %v1524
      %v1597 = vpack.c.bf16 %v1531, %v1529
      %v1598 = vpack.c.bf16 %v1536, %v1534
      %v1599 = vpack.c.bf16 %v1541, %v1539
      %v1600 = vpack.c.bf16 %v1546, %v1544
      %v1601 = vpack.c.bf16 %v1551, %v1549
      %v1602 = vpack.c.bf16 %v1556, %v1554
      %v1603 = vpack.c.bf16 %v1561, %v1559
      %v1604 = vpack.c.bf16 %v1566, %v1564
      %v1605 = vpack.c.bf16 %v1571, %v1569
      %v1606 = vpack.c.bf16 %v1576, %v1574
      %v1607 = vpack.c.bf16 %v1581, %v1579
      %v1608 = vld [vmem:[%s2] sm:$0xf]
      %v1609 = vld [vmem:[%s2 + $0x4] sm:$0xf]
      %v1610 = vld [vmem:[%s2 + $0x8] sm:$0xf]
      %v1611 = vld [vmem:[%s2 + $0xc] sm:$0xf]
      %v1612 = vld [vmem:[%s2 + $0x10] sm:$0xf]
      %v1613 = vld [vmem:[%s2 + $0x14] sm:$0xf]
      %v1614 = vld [vmem:[%s2 + $0x18] sm:$0xf]
      %v1615 = vld [vmem:[%s2 + $0x1c] sm:$0xf]
      %v1624 = vunpack.c.l.b16 %v1608
      %v1625 = vunpack.c.l.b16 %v1609
      %v1626 = vunpack.c.l.b16 %v1610
      %v1627 = vunpack.c.l.b16 %v1611
      %v1628 = vunpack.c.l.b16 %v1612
      %v1629 = vunpack.c.l.b16 %v1613
      %v1630 = vunpack.c.l.b16 %v1614
      %v1631 = vunpack.c.l.b16 %v1615
      %v1632 = vpack.c.b16 %v1625, %v1624
      %v1633 = vpack.c.b16 %v1627, %v1626
      %v1634 = vpack.c.b16 %v1629, %v1628
      %v1635 = vpack.c.b16 %v1631, %v1630
      %vm1640 = vcmask 523264
      %v1642 = vsel %vm1640, %v1583, 0
      %v1645 = vsel %vm1640, %v1584, 0
      %v1648 = vsel %vm1640, %v1585, 0
      %v1651 = vsel %vm1640, %v1586, 0
      %v1654 = vsel %vm1640, %v1587, 0
      %v1657 = vsel %vm1640, %v1588, 0
      %v1660 = vsel %vm1640, %v1589, 0
      %v1663 = vsel %vm1640, %v1590, 0
      %v1666 = vsel %vm1640, %v1591, 0
      %v1669 = vsel %vm1640, %v1592, 0
      %v1672 = vsel %vm1640, %v1593, 0
      %v1675 = vsel %vm1640, %v1594, 0
      %v1678 = vsel %vm1640, %v1595, 0
      %v1681 = vsel %vm1640, %v1596, 0
      %v1684 = vsel %vm1640, %v1597, 0
      %v1687 = vsel %vm1640, %v1598, 0
      %v1690 = vsel %vm1640, %v1599, 0
      %v1693 = vsel %vm1640, %v1600, 0
      %v1696 = vsel %vm1640, %v1601, 0
      %v1699 = vsel %vm1640, %v1602, 0
      %v1702 = vsel %vm1640, %v1603, 0
      %v1705 = vsel %vm1640, %v1604, 0
      %v1708 = vsel %vm1640, %v1605, 0
      %v1711 = vsel %vm1640, %v1606, 0
      %v1714 = vsel %vm1640, %v1607, 0
      %1716 = vmatpush.bf16.msra.mxu0 0
      %1717 = vmatpush.bf16.msra.mxu0 0
      %1718 = vmatpush.bf16.msra.mxu0 0
      %1719 = vmatpush.bf16.msra.mxu0 0
      %1720 = vmatpush.bf16.msra.mxu0 %v1635
      %1721 = vmatpush.bf16.msra.mxu0 %v1634
      %1722 = vmatpush.bf16.msra.mxu0 %v1633
      %1723 = vmatpush.bf16.msra.mxu0 %v1632
      %1724 = vmatmul.bf16.gmra.mxu0 %v1642
      %v1725 = vpop.f32.mrf.mxu0
      %v1726 = vadd.f32 0.0, %v1725
      %v1727 = vpop.f32.mrf.mxu0
      %v1728 = vadd.f32 0.0, %v1727
      %1729 = vmatmul.bf16.gmra.mxu0 %v1645
      %v1730 = vpop.f32.mrf.mxu0
      %v1731 = vadd.f32 0.0, %v1730
      %v1732 = vpop.f32.mrf.mxu0
      %v1733 = vadd.f32 0.0, %v1732
      %1734 = vmatmul.bf16.gmra.mxu0 %v1648
      %v1735 = vpop.f32.mrf.mxu0
      %v1736 = vadd.f32 0.0, %v1735
      %v1737 = vpop.f32.mrf.mxu0
      %v1738 = vadd.f32 0.0, %v1737
      %1739 = vmatmul.bf16.gmra.mxu0 %v1651
      %v1740 = vpop.f32.mrf.mxu0
      %v1741 = vadd.f32 0.0, %v1740
      %v1742 = vpop.f32.mrf.mxu0
      %v1743 = vadd.f32 0.0, %v1742
      %1744 = vmatmul.bf16.gmra.mxu0 %v1654
      %v1745 = vpop.f32.mrf.mxu0
      %v1746 = vadd.f32 0.0, %v1745
      %v1747 = vpop.f32.mrf.mxu0
      %v1748 = vadd.f32 0.0, %v1747
      %1749 = vmatmul.bf16.gmra.mxu0 %v1657
      %v1750 = vpop.f32.mrf.mxu0
      %v1751 = vadd.f32 0.0, %v1750
      %v1752 = vpop.f32.mrf.mxu0
      %v1753 = vadd.f32 0.0, %v1752
      %1754 = vmatmul.bf16.gmra.mxu0 %v1660
      %v1755 = vpop.f32.mrf.mxu0
      %v1756 = vadd.f32 0.0, %v1755
      %v1757 = vpop.f32.mrf.mxu0
      %v1758 = vadd.f32 0.0, %v1757
      %1759 = vmatmul.bf16.gmra.mxu0 %v1663
      %v1760 = vpop.f32.mrf.mxu0
      %v1761 = vadd.f32 0.0, %v1760
      %v1762 = vpop.f32.mrf.mxu0
      %v1763 = vadd.f32 0.0, %v1762
      %1764 = vmatmul.bf16.gmra.mxu0 %v1666
      %v1765 = vpop.f32.mrf.mxu0
      %v1766 = vadd.f32 0.0, %v1765
      %v1767 = vpop.f32.mrf.mxu0
      %v1768 = vadd.f32 0.0, %v1767
      %1769 = vmatmul.bf16.gmra.mxu0 %v1669
      %v1770 = vpop.f32.mrf.mxu0
      %v1771 = vadd.f32 0.0, %v1770
      %v1772 = vpop.f32.mrf.mxu0
      %v1773 = vadd.f32 0.0, %v1772
      %1774 = vmatmul.bf16.gmra.mxu0 %v1672
      %v1775 = vpop.f32.mrf.mxu0
      %v1776 = vadd.f32 0.0, %v1775
      %v1777 = vpop.f32.mrf.mxu0
      %v1778 = vadd.f32 0.0, %v1777
      %1779 = vmatmul.bf16.gmra.mxu0 %v1675
      %v1780 = vpop.f32.mrf.mxu0
      %v1781 = vadd.f32 0.0, %v1780
      %v1782 = vpop.f32.mrf.mxu0
      %v1783 = vadd.f32 0.0, %v1782
      %1784 = vmatmul.bf16.gmra.mxu0 %v1678
      %v1785 = vpop.f32.mrf.mxu0
      %v1786 = vadd.f32 0.0, %v1785
      %v1787 = vpop.f32.mrf.mxu0
      %v1788 = vadd.f32 0.0, %v1787
      %1789 = vmatmul.bf16.gmra.mxu0 %v1681
      %v1790 = vpop.f32.mrf.mxu0
      %v1791 = vadd.f32 0.0, %v1790
      %v1792 = vpop.f32.mrf.mxu0
      %v1793 = vadd.f32 0.0, %v1792
      %1794 = vmatmul.bf16.gmra.mxu0 %v1684
      %v1795 = vpop.f32.mrf.mxu0
      %v1796 = vadd.f32 0.0, %v1795
      %v1797 = vpop.f32.mrf.mxu0
      %v1798 = vadd.f32 0.0, %v1797
      %1799 = vmatmul.bf16.gmra.mxu0 %v1687
      %v1800 = vpop.f32.mrf.mxu0
      %v1801 = vadd.f32 0.0, %v1800
      %v1802 = vpop.f32.mrf.mxu0
      %v1803 = vadd.f32 0.0, %v1802
      %1804 = vmatmul.bf16.gmra.mxu0 %v1690
      %v1805 = vpop.f32.mrf.mxu0
      %v1806 = vadd.f32 0.0, %v1805
      %v1807 = vpop.f32.mrf.mxu0
      %v1808 = vadd.f32 0.0, %v1807
      %1809 = vmatmul.bf16.gmra.mxu0 %v1693
      %v1810 = vpop.f32.mrf.mxu0
      %v1811 = vadd.f32 0.0, %v1810
      %v1812 = vpop.f32.mrf.mxu0
      %v1813 = vadd.f32 0.0, %v1812
      %1814 = vmatmul.bf16.gmra.mxu0 %v1696
      %v1815 = vpop.f32.mrf.mxu0
      %v1816 = vadd.f32 0.0, %v1815
      %v1817 = vpop.f32.mrf.mxu0
      %v1818 = vadd.f32 0.0, %v1817
      %1819 = vmatmul.bf16.gmra.mxu0 %v1699
      %v1820 = vpop.f32.mrf.mxu0
      %v1821 = vadd.f32 0.0, %v1820
      %v1822 = vpop.f32.mrf.mxu0
      %v1823 = vadd.f32 0.0, %v1822
      %1824 = vmatmul.bf16.gmra.mxu0 %v1702
      %v1825 = vpop.f32.mrf.mxu0
      %v1826 = vadd.f32 0.0, %v1825
      %v1827 = vpop.f32.mrf.mxu0
      %v1828 = vadd.f32 0.0, %v1827
      %1829 = vmatmul.bf16.gmra.mxu0 %v1705
      %v1830 = vpop.f32.mrf.mxu0
      %v1831 = vadd.f32 0.0, %v1830
      %v1832 = vpop.f32.mrf.mxu0
      %v1833 = vadd.f32 0.0, %v1832
      %1834 = vmatmul.bf16.gmra.mxu0 %v1708
      %v1835 = vpop.f32.mrf.mxu0
      %v1836 = vadd.f32 0.0, %v1835
      %v1837 = vpop.f32.mrf.mxu0
      %v1838 = vadd.f32 0.0, %v1837
      %1839 = vmatmul.bf16.gmra.mxu0 %v1711
      %v1840 = vpop.f32.mrf.mxu0
      %v1841 = vadd.f32 0.0, %v1840
      %v1842 = vpop.f32.mrf.mxu0
      %v1843 = vadd.f32 0.0, %v1842
      %1844 = vmatmul.bf16.gmra.mxu0 %v1714
      %v1845 = vpop.f32.mrf.mxu0
      %v1846 = vadd.f32 0.0, %v1845
      %v1847 = vpop.f32.mrf.mxu0
      %v1848 = vadd.f32 0.0, %v1847
      %1849 = vdwg.mxu0
      %v1850 = vmax.f32 %v1726, 0.0
      %v1851 = vmax.f32 %v1728, 0.0
      %v1852 = vmax.f32 %v1731, 0.0
      %v1853 = vmax.f32 %v1733, 0.0
      %v1854 = vmax.f32 %v1736, 0.0
      %v1855 = vmax.f32 %v1738, 0.0
      %v1856 = vmax.f32 %v1741, 0.0
      %v1857 = vmax.f32 %v1743, 0.0
      %v1858 = vmax.f32 %v1746, 0.0
      %v1859 = vmax.f32 %v1748, 0.0
      %v1860 = vmax.f32 %v1751, 0.0
      %v1861 = vmax.f32 %v1753, 0.0
      %v1862 = vmax.f32 %v1756, 0.0
      %v1863 = vmax.f32 %v1758, 0.0
      %v1864 = vmax.f32 %v1761, 0.0
      %v1865 = vmax.f32 %v1763, 0.0
      %v1866 = vmax.f32 %v1766, 0.0
      %v1867 = vmax.f32 %v1768, 0.0
      %v1868 = vmax.f32 %v1771, 0.0
      %v1869 = vmax.f32 %v1773, 0.0
      %v1870 = vmax.f32 %v1776, 0.0
      %v1871 = vmax.f32 %v1778, 0.0
      %v1872 = vmax.f32 %v1781, 0.0
      %v1873 = vmax.f32 %v1783, 0.0
      %v1874 = vmax.f32 %v1786, 0.0
      %v1875 = vmax.f32 %v1788, 0.0
      %v1876 = vmax.f32 %v1791, 0.0
      %v1877 = vmax.f32 %v1793, 0.0
      %v1878 = vmax.f32 %v1796, 0.0
      %v1879 = vmax.f32 %v1798, 0.0
      %v1880 = vmax.f32 %v1801, 0.0
      %v1881 = vmax.f32 %v1803, 0.0
      %v1882 = vmax.f32 %v1806, 0.0
      %v1883 = vmax.f32 %v1808, 0.0
      %v1884 = vmax.f32 %v1811, 0.0
      %v1885 = vmax.f32 %v1813, 0.0
      %v1886 = vmax.f32 %v1816, 0.0
      %v1887 = vmax.f32 %v1818, 0.0
      %v1888 = vmax.f32 %v1821, 0.0
      %v1889 = vmax.f32 %v1823, 0.0
      %v1890 = vmax.f32 %v1826, 0.0
      %v1891 = vmax.f32 %v1828, 0.0
      %v1892 = vmax.f32 %v1831, 0.0
      %v1893 = vmax.f32 %v1833, 0.0
      %v1894 = vmax.f32 %v1836, 0.0
      %v1895 = vmax.f32 %v1838, 0.0
      %v1896 = vmax.f32 %v1841, 0.0
      %v1897 = vmax.f32 %v1843, 0.0
      %v1898 = vmax.f32 %v1846, 0.0
      %v1899 = vmax.f32 %v1848, 0.0
      %v1900 = vadd.f32 %v1850, %v1851
      %v1901 = vadd.f32 %v1900, %v1852
      %v1902 = vadd.f32 %v1901, %v1853
      %v1903 = vadd.f32 %v1902, %v1854
      %v1904 = vadd.f32 %v1903, %v1855
      %v1905 = vadd.f32 %v1904, %v1856
      %v1906 = vadd.f32 %v1905, %v1857
      %v1907 = vadd.f32 %v1906, %v1858
      %v1908 = vadd.f32 %v1907, %v1859
      %v1909 = vadd.f32 %v1908, %v1860
      %v1910 = vadd.f32 %v1909, %v1861
      %v1911 = vadd.f32 %v1910, %v1862
      %v1912 = vadd.f32 %v1911, %v1863
      %v1913 = vadd.f32 %v1912, %v1864
      %v1914 = vadd.f32 %v1913, %v1865
      %v1915 = vadd.f32 %v1914, %v1866
      %v1916 = vadd.f32 %v1915, %v1867
      %v1917 = vadd.f32 %v1916, %v1868
      %v1918 = vadd.f32 %v1917, %v1869
      %v1919 = vadd.f32 %v1918, %v1870
      %v1920 = vadd.f32 %v1919, %v1871
      %v1921 = vadd.f32 %v1920, %v1872
      %v1922 = vadd.f32 %v1921, %v1873
      %v1923 = vadd.f32 %v1922, %v1874
      %v1924 = vadd.f32 %v1923, %v1875
      %v1925 = vadd.f32 %v1924, %v1876
      %v1926 = vadd.f32 %v1925, %v1877
      %v1927 = vadd.f32 %v1926, %v1878
      %v1928 = vadd.f32 %v1927, %v1879
      %v1929 = vadd.f32 %v1928, %v1880
      %v1930 = vadd.f32 %v1929, %v1881
      %v1931 = vadd.f32 %v1930, %v1882
      %v1932 = vadd.f32 %v1931, %v1883
      %v1933 = vadd.f32 %v1932, %v1884
      %v1934 = vadd.f32 %v1933, %v1885
      %v1935 = vadd.f32 %v1934, %v1886
      %v1936 = vadd.f32 %v1935, %v1887
      %v1937 = vadd.f32 %v1936, %v1888
      %v1938 = vadd.f32 %v1937, %v1889
      %v1939 = vadd.f32 %v1938, %v1890
      %v1940 = vadd.f32 %v1939, %v1891
      %v1941 = vadd.f32 %v1940, %v1892
      %v1942 = vadd.f32 %v1941, %v1893
      %v1943 = vadd.f32 %v1942, %v1894
      %v1944 = vadd.f32 %v1943, %v1895
      %v1945 = vadd.f32 %v1944, %v1896
      %v1946 = vadd.f32 %v1945, %v1897
      %v1947 = vadd.f32 %v1946, %v1898
      %v1948 = vadd.f32 %v1947, %v1899
      %v1949 = vrot.slane %v1948, 4
      %v1950 = vadd.f32 %v1948, %v1949
      %v1951 = vrot.slane %v1950, 2
      %v1952 = vadd.f32 %v1950, %v1951
      %v1953 = vrot.slane %v1952, 1
      %v1954 = vadd.f32 %v1952, %v1953
      %p1955 = scmp.eq.s32.totalorder %s19, 0
      // Predicated region
      $region33: #{forward.5} parent=31 // pred_check
        %p1956 = pneg %p1955
      $region34: #{forward.5} parent=31 // pred_check_branch
        %1958 = sbr.rel (%p1956) target = $region36
      $region35: #{forward.5} parent=31 // pred_region
        %1959 = vst [vmem:[%s194] sm:$0x1] 0.0
      $region36: #{forward.5} parent=31 // pred_fallthru
        _
      %v1960 = vld [vmem:[%s194] sm:$0x1]
      %v1961 = vadd.f32 %v1960, %v1954
      %1962 = vst [vmem:[%s194] sm:$0x1] %v1961
      %p1963 = scmp.eq.s32.totalorder %s19, 1
      // Predicated region
      $region37: #{forward.5} parent=31 // pred_check
        %p1964 = pneg %p1963
      $region38: #{forward.5} parent=31 // pred_check_branch
        %1966 = sbr.rel (%p1964) target = $region40
      $region39: #{forward.5} parent=31 // pred_region
        %v1967 = vld [vmem:[%s194] sm:$0x1]
        %v1968 = vmul.f32 %v1967, 0.0016666667
        %1969 = vst [vmem:[%s194] sm:$0x1] %v1968
      $region40: #{forward.5} parent=31 // pred_fallthru
        _
      %p1970 = scmp.lt.s32.totalorder %s18, 3
      %s1971 = scalar_select %p1970, %s18, 3
      %s1972 = scalar_lea.vmem %s3, %s1971
      // Predicated region
      $region41: #{forward.5} parent=31 // pred_check
        %p1973 = pneg %p114
      $region42: #{forward.5} parent=31 // pred_check_branch
        %1975 = sbr.rel (%p1973) target = $region44
      $region43: #{forward.5} parent=31 // pred_region
        _
      $region44: #{forward.5} parent=31 // pred_fallthru
        _
    $region32: #{forward.5} parent=5 // pred_fallthru
      _
    %p1976 = scmp.le.s32.totalorder 2, %s9
    // Predicated region
    $region45: #{forward.5} parent=5 // pred_check
      %p1977 = pneg %p1976
    $region46: #{forward.5} parent=5 // pred_check_branch
      %1979 = sbr.rel (%p1977) target = $region48
    $region47: #{forward.5} parent=5 // pred_region
      %s1980 = ssub.s32 %s9, 2
      // Predicated region
      $region49: #{forward.5} parent=47 // pred_check
        %p1981 = pneg %p120
      $region50: #{forward.5} parent=47 // pred_check_branch
        %1983 = sbr.rel (%p1981) target = $region52
      $region51: #{forward.5} parent=47 // pred_region
        %p1984 = scmp.lt.s32.totalorder %s20, 3
        %s1985 = scalar_select %p1984, %s20, 3
        %s1986 = scalar_lea.vmem %s3, %s1985
      $region52: #{forward.5} parent=47 // pred_fallthru
        _
    $region48: #{forward.5} parent=5 // pred_fallthru
      _
  $region6: #{forward.5} parent=0 // loop_footer
    %s13 = sadd.s32 1, %s9
  $region7: #{forward.5} parent=0 // loop_footer_branch
    %8 = sbr.rel target = $region3
  $region8: #{forward.5} parent=0 // loop_exit
    _

</llo_original>
